<compile_context>
chip_gen: v5e
topology: v5e:2x2
jax: 0.10.0
libtpu: 0.0.40
codegen_flags: <defaults>
</compile_context>

<pallas_src>
import functools

import jax
import jax.numpy as jnp
from jax import lax
from jax.experimental import pallas as pl
from jax.experimental.pallas import tpu as pltpu

MXU_INPUT_DTYPE = jnp.bfloat16   # MXU operands; accumulation + epilogue stay float32
TILE_OH = 8                      # output rows per grid step (statically unrolled)

try:                             # generation-aware VMEM cap (v5e/v6e: 128 MiB, v7x: 64 MiB)
    _VMEM_CAP = int(pltpu.get_tpu_info().vmem_capacity_bytes)
except Exception:                # older jax / query unavailable -> conservative default
    _VMEM_CAP = 64 * 1024 * 1024


def _round_up(x, m):
    return (x + m - 1) // m * m


# --------------------------------------------------------------------------
# Pallas kernel: fused 3x3-conv tap accumulation + bias + ReLU over a row tile
# --------------------------------------------------------------------------
def _make_conv_kernel(*, ksize, stride, kw_taps, tile_oh, rows_a, wo):
    """Builds the kernel closure over static tiling parameters.

    Refs seen by the kernel:
      xa_ref : (1, rows_a, Wpck, Ceff)      main input row tile (bf16, W-packed)
      xb_ref : (1, halo,   Wpck, Ceff)      halo rows from the next tile
      w_ref  : (ksize*kw_taps, Ceff, Np)    folded & packed weight taps (bf16)
      b_ref  : (1, Np)                      folded bias (f32)
      o_ref  : (1, tile_oh, Wo, Np)         output tile (f32)
    """

    def kernel(xa_ref, xb_ref, w_ref, b_ref, o_ref):
        bias = b_ref[...]                                    # (1, Np) f32
        for oh in range(tile_oh):                            # static unroll
            acc = None
            for kh in range(ksize):
                r = stride * oh + kh                         # row inside (tile + halo)
                if r < rows_a:                               # static choice: main vs halo
                    row = xa_ref[0, r, :, :]                 # (Wpck, Ceff) bf16
                else:
                    row = xb_ref[0, r - rows_a, :, :]
                for j in range(kw_taps):
                    lhs = row[j:j + wo, :]                   # contiguous static slice
                    p = jnp.dot(lhs, w_ref[kh * kw_taps + j],
                                preferred_element_type=jnp.float32)
                    acc = p if acc is None else acc + p
            o_ref[0, oh, :, :] = jnp.maximum(acc + bias, 0.0).astype(o_ref.dtype)

    return kernel


def _conv_bias_relu(xpacked, w_taps, bias, *, batch, n_tiles, tile_oh, rows_a, halo,
                    wo, ksize, stride, kw_taps):
    """ReLU(folded_conv3x3(x) + bias) over row tiles with auto-pipelined halo blocks."""
    _, _, wpck, ceff = xpacked.shape
    n_taps, _, np_ = w_taps.shape
    assert n_taps == ksize * kw_taps and np_ % 128 == 0 and rows_a % halo == 0

    kernel = _make_conv_kernel(ksize=ksize, stride=stride, kw_taps=kw_taps,
                               tile_oh=tile_oh, rows_a=rows_a, wo=wo)

    # Per-step VMEM footprint (double-buffered streams) -> explicit scoped limit,
    # capped by the chip's VMEM capacity (conservative on v7x's 64 MiB).
    step_bytes = 2 * ((rows_a + halo) * wpck * ceff * 2      # input tile + halo (bf16)
                      + n_taps * ceff * np_ * 2              # weight taps (bf16)
                      + np_ * 4                              # bias (f32)
                      + tile_oh * wo * np_ * 4)              # output tile (f32)
    vmem_limit = max(32 * 1024 * 1024, min(3 * step_bytes, int(0.85 * _VMEM_CAP)))

    halo_scale = rows_a // halo   # halo block index = (t + 1) * rows_a / halo

    return pl.pallas_call(
        kernel,
        out_shape=jax.ShapeDtypeStruct((batch, n_tiles * tile_oh, wo, np_), jnp.float32),
        grid=(batch, n_tiles),
        in_specs=[
            # main row tile: rows [t*rows_a, (t+1)*rows_a)
            pl.BlockSpec((1, rows_a, wpck, ceff), lambda b, t: (b, t, 0, 0)),
            # halo rows: rows [(t+1)*rows_a, (t+1)*rows_a + halo)  (same array, re-read)
            pl.BlockSpec((1, halo, wpck, ceff),
                         lambda b, t: (b, (t + 1) * halo_scale, 0, 0)),
            # folded weight taps + bias: constant block index -> fetched once
            pl.BlockSpec((n_taps, ceff, np_), lambda b, t: (0, 0, 0)),
            pl.BlockSpec((1, np_), lambda b, t: (0, 0)),
        ],
        out_specs=pl.BlockSpec((1, tile_oh, wo, np_), lambda b, t: (b, t, 0, 0)),
        compiler_params=pltpu.CompilerParams(
            dimension_semantics=("parallel", "parallel"),   # megacore sharding on v7x
            vmem_limit_bytes=int(vmem_limit),
        ),
    )(xpacked, xpacked, w_taps, bias)


# --------------------------------------------------------------------------
# Plain-JAX glue: RepVGG-style folding (done once at init) + layout packing
# --------------------------------------------------------------------------
def _fold_and_pack(params, *, ksize, stride, has_identity, eps, dtype):
    """Fold 3x3*scale + 1x1*scale (+ identity*scale) + eval-BN into packed taps + bias."""
    w3 = params["w_conv"] * params["s_conv"][:, None, None, None]   # [cout,cin,k,k] OIHW
    w1 = params["w_1x1"] * params["s_1x1"][:, None]                 # [cout,cin]
    cout, cin = w1.shape
    if has_identity:                                                # identity == 1x1 eye
        w1 = w1 + params["s_id"][:, None] * jnp.eye(cin, dtype=w1.dtype)
    w3 = w3.at[:, :, ksize // 2, ksize // 2].add(w1)                # fold into center tap
    # TODO(synk): BatchNorm uses inference-mode running statistics; training-mode batch
    # statistics (and momentum updates) are not implemented.
    bn_s = params["bn_gamma"] * lax.rsqrt(params["bn_var"] + eps)
    bn_b = params["bn_beta"] - params["bn_mean"] * bn_s
    w3 = w3 * bn_s[:, None, None, None]

    # OIHW -> (kh, kw, cin, cout), then pack kw into (kw_taps, stride) groups so the
    # kernel's per-tap slices are contiguous even for strided convs.
    w = jnp.transpose(w3, (2, 3, 1, 0))                             # [k, k, cin, cout]
    kw_taps = (ksize - 1) // stride + 1
    w = jnp.pad(w, ((0, 0), (0, kw_taps * stride - ksize), (0, 0), (0, 0)))
    w = w.reshape(ksize, kw_taps, stride, cin, cout)
    w = w.reshape(ksize * kw_taps, stride * cin, cout)              # [n_taps, Ceff, cout]

    np_ = _round_up(cout, 128)                                      # lane-dense output
    w = jnp.pad(w, ((0, 0), (0, 0), (0, np_ - cout))).astype(dtype)
    bias = jnp.pad(bn_b, (0, np_ - cout)).astype(jnp.float32).reshape(1, np_)
    return w, bias


def _forward(w_taps, bias, x_nchw, *, ksize, stride, pad, cout):
    B, C, H, W = x_nchw.shape
    s = stride
    Ho = (H + 2 * pad - ksize) // s + 1
    Wo = (W + 2 * pad - ksize) // s + 1
    kw_taps = (ksize - 1) // s + 1
    halo = max(ksize - s, 1)                 # extra input rows needed past a row tile
    tile_oh = TILE_OH
    while (s * tile_oh) % halo:              # halo block offset must align to its size
        tile_oh += 1
    n_tiles = -(-Ho // tile_oh)
    rows_a = s * tile_oh                     # input rows per main tile
    h_tgt = max(n_tiles * rows_a + halo, H + 2 * pad)
    w_tgt = _round_up(max(W + 2 * pad, s * (Wo + kw_taps - 1)), s)

    # NCHW -> NHWC once at the API boundary; cast to bf16 BEFORE padding so the padded
    # array is written once at half width (review item: early cast + single pad pass).
    x = jnp.transpose(x_nchw, (0, 2, 3, 1)).astype(MXU_INPUT_DTYPE)
    x = jnp.pad(x, ((0, 0), (pad, h_tgt - H - pad), (pad, w_tgt - W - pad), (0, 0)))
    # Pack `stride` adjacent columns along the channel axis (layout-free reshape).
    xpacked = x.reshape(B, h_tgt, w_tgt // s, s * C)

    y = _conv_bias_relu(xpacked, w_taps, bias, batch=B, n_tiles=n_tiles,
                        tile_oh=tile_oh, rows_a=rows_a, halo=halo, wo=Wo,
                        ksize=ksize, stride=s, kw_taps=kw_taps)
    y = y[:, :Ho, :, :cout]                  # drop padded rows / channels
    # TODO(synk): keep NHWC end-to-end if the surrounding network allows it; this
    # transpose back to NCHW exists only for PyTorch layout parity.
    return jnp.transpose(y, (0, 3, 1, 2))


# --------------------------------------------------------------------------
# Module wrapper + parameter init + pure-JAX reference
# --------------------------------------------------------------------------
def init_linear_add_block_params(key, in_channels, out_channels, kernel_size,
                                 conv_scale_init=1.0, has_identity=False):
    ks = jax.random.split(key, 9)
    w_scale = 0.1
    # ScaleLayer / BN params get deterministic perturbations (stand-ins for trained
    # values) so the self-check actually exercises the folding math.
    p = {
        "w_conv": w_scale * jax.random.normal(
            ks[0], (out_channels, in_channels, kernel_size, kernel_size), jnp.float32),
        "w_1x1": w_scale * jax.random.normal(
            ks[1], (out_channels, in_channels), jnp.float32),
        "s_conv": conv_scale_init + 0.3 * jax.random.normal(ks[2], (out_channels,), jnp.float32),
        "s_1x1": conv_scale_init + 0.3 * jax.random.normal(ks[3], (out_channels,), jnp.float32),
        "bn_gamma": 1.0 + 0.3 * jax.random.normal(ks[4], (out_channels,), jnp.float32),
        "bn_beta": 0.3 * jax.random.normal(ks[5], (out_channels,), jnp.float32),
        "bn_mean": 0.3 * jax.random.normal(ks[6], (out_channels,), jnp.float32),
        "bn_var": 1.0 + 0.3 * jnp.abs(jax.random.normal(ks[7], (out_channels,), jnp.float32)),
    }
    if has_identity:
        p["s_id"] = 1.0 + 0.3 * jax.random.normal(ks[8], (out_channels,), jnp.float32)
    return p


class LinearAddBlock:
    """Pallas/TPU forward of yolov6 LinearAddBlock (inference semantics)."""

    def __init__(self, in_channels, out_channels, kernel_size=3, stride=1,
                 padding=1, dilation=1, groups=1, padding_mode="zeros",
                 use_se=False, is_csla=False, conv_scale_init=1.0, key=None):
        if use_se:
            raise NotImplementedError("se block not supported yet")   # matches reference
        if dilation != 1 or groups != 1 or padding_mode != "zeros":
            raise NotImplementedError("only dilation=1, groups=1, zeros padding supported")
        if padding != kernel_size // 2:
            raise NotImplementedError(
                "padding must equal kernel_size//2 so the 3x3/1x1 branches align")
        del is_csla  # only toggles requires_grad in the reference; no-op for forward
        if key is None:
            key = jax.random.PRNGKey(42)

        self.in_channels = in_channels
        self.out_channels = out_channels
        self.kernel_size = kernel_size
        self.stride = stride
        self.padding = padding
        self.has_identity = (in_channels == out_channels and stride == 1)
        self.params = init_linear_add_block_params(
            key, in_channels, out_channels, kernel_size,
            conv_scale_init=conv_scale_init, has_identity=self.has_identity)
        # Fold + pack + pad + cast ONCE here (review item: no per-call weight passes).
        self.w_taps, self.bias = _fold_and_pack(
            self.params, ksize=kernel_size, stride=stride,
            has_identity=self.has_identity, eps=1e-5, dtype=MXU_INPUT_DTYPE)
        self._forward = jax.jit(functools.partial(
            _forward, ksize=kernel_size, stride=stride, pad=padding, cout=out_channels))

    def __call__(self, x_nchw):
        return self._forward(self.w_taps, self.bias, x_nchw)

    forward = __call__


def _reference_forward(params, x_nchw, *, stride, padding, has_identity, eps=1e-5):
    """Unfused pure-JAX reference mirroring the PyTorch module (eval-mode BN)."""
    dn = ("NCHW", "OIHW", "NCHW")

    def per_c(v):
        return v[None, :, None, None]

    y3 = lax.conv_general_dilated(x_nchw, params["w_conv"], (stride, stride),
                                  ((padding, padding), (padding, padding)),
                                  dimension_numbers=dn)
    y1 = lax.conv_general_dilated(x_nchw, params["w_1x1"][:, :, None, None],
                                  (stride, stride), ((0, 0), (0, 0)),
                                  dimension_numbers=dn)
    out = y3 * per_c(params["s_conv"]) + y1 * per_c(params["s_1x1"])
    if has_identity:
        out = out + x_nchw * per_c(params["s_id"])
    bn_s = params["bn_gamma"] * lax.rsqrt(params["bn_var"] + eps)
    out = (out - per_c(params["bn_mean"])) * per_c(bn_s) + per_c(params["bn_beta"])
    return jnp.maximum(out, 0.0)


if __name__ == "__main__":
    root = jax.random.PRNGKey(0)
    k_x, k_p1, k_p2 = jax.random.split(root, 3)
    x = jax.random.normal(k_x, (2, 4, 16, 16), dtype=jnp.float32)   # NCHW, like PyTorch

    tol = 0.15 if MXU_INPUT_DTYPE == jnp.bfloat16 else 1e-3

    # Config 1: in == out, stride 1 -> identity branch active.
    blk1 = LinearAddBlock(4, 4, kernel_size=3, stride=1, padding=1, key=k_p1)
    y1 = jax.block_until_ready(blk1(x))
    assert y1.shape == (2, 4, 16, 16) and y1.dtype == jnp.float32, y1.shape
    ref1 = _reference_forward(blk1.params, x, stride=1, padding=1, has_identity=True)
    err1 = float(jnp.max(jnp.abs(y1 - ref1)))
    assert err1 < tol, f"identity-branch config: max abs err {err1}"

    # Config 2: out != in, stride 2 -> no identity branch, strided (W-packed) path.
    blk2 = LinearAddBlock(4, 8, kernel_size=3, stride=2, padding=1, key=k_p2)
    y2 = jax.block_until_ready(blk2(x))
    assert y2.shape == (2, 8, 8, 8) and y2.dtype == jnp.float32, y2.shape
    ref2 = _reference_forward(blk2.params, x, stride=2, padding=1, has_identity=False)
    err2 = float(jnp.max(jnp.abs(y2 - ref2)))
    assert err2 < tol, f"strided config: max abs err {err2}"

    print("KERNEL_OK")
</pallas_src>

<mosaic_0001>
module attributes {stable_mosaic.version = 11 : i64} {
  func.func @kernel(%arg0: i32, %arg1: i32, %arg2: memref<1x8x18x4xbf16, #tpu.memory_space<vmem>>, %arg3: memref<1x2x18x4xbf16, #tpu.memory_space<vmem>>, %arg4: memref<9x4x128xbf16, #tpu.memory_space<vmem>>, %arg5: memref<1x128xf32, #tpu.memory_space<vmem>>, %arg6: memref<1x8x16x128xf32, #tpu.memory_space<vmem>>) attributes {dimension_semantics = [#tpu.dimension_semantics<parallel>, #tpu.dimension_semantics<parallel>], iteration_bounds = array<i64: 2, 2>, scalar_prefetch = 0 : i64, scratch_operands = 0 : i64, tpu.core_type = #tpu.core_type<tc>, window_params = [{transform_indices = @transform_0, window_bounds = array<i64: 1, 8, 18, 4>}, {transform_indices = @transform_1, window_bounds = array<i64: 1, 2, 18, 4>}, {pipeline_mode = #tpu.pipeline_mode<synchronous>, transform_indices = @transform_2, window_bounds = array<i64: 9, 4, 128>}, {pipeline_mode = #tpu.pipeline_mode<synchronous>, transform_indices = @transform_3, window_bounds = array<i64: 1, 128>}, {transform_indices = @transform_4, window_bounds = array<i64: 1, 8, 16, 128>}]} {
    %c0 = arith.constant 0 : index
    %c0_0 = arith.constant 0 : index
    %0 = vector.load %arg5[%c0, %c0_0] : memref<1x128xf32, #tpu.memory_space<vmem>>, vector<1x128xf32>
    %c0_1 = arith.constant 0 : index
    %c0_2 = arith.constant 0 : index
    %c0_3 = arith.constant 0 : index
    %c0_4 = arith.constant 0 : index
    %1 = vector.load %arg2[%c0_1, %c0_2, %c0_3, %c0_4] : memref<1x8x18x4xbf16, #tpu.memory_space<vmem>>, vector<1x1x18x4xbf16>
    %2 = vector.shape_cast %1 : vector<1x1x18x4xbf16> to vector<18x4xbf16>
    %3 = vector.extract_strided_slice %2 {offsets = [0, 0], sizes = [16, 4], strides = [1, 1]} : vector<18x4xbf16> to vector<16x4xbf16>
    %c0_5 = arith.constant 0 : index
    %c0_6 = arith.constant 0 : index
    %c0_7 = arith.constant 0 : index
    %4 = vector.load %arg4[%c0_5, %c0_6, %c0_7] : memref<9x4x128xbf16, #tpu.memory_space<vmem>>, vector<1x4x128xbf16>
    %5 = vector.shape_cast %4 : vector<1x4x128xbf16> to vector<4x128xbf16>
    %cst = arith.constant dense<0.000000e+00> : vector<16x128xf32>
    %6 = tpu.matmul %3, %5, %cst {dimension_numbers = #tpu.dot_dimension_numbers<[1], [0], [0], [1], [0, 0, 1, 1], [], []>} : vector<16x4xbf16>, vector<4x128xbf16>, vector<16x128xf32> -> vector<16x128xf32>
    %7 = vector.extract_strided_slice %2 {offsets = [1, 0], sizes = [16, 4], strides = [1, 1]} : vector<18x4xbf16> to vector<16x4xbf16>
    %c1 = arith.constant 1 : index
    %c0_8 = arith.constant 0 : index
    %c0_9 = arith.constant 0 : index
    %8 = vector.load %arg4[%c1, %c0_8, %c0_9] : memref<9x4x128xbf16, #tpu.memory_space<vmem>>, vector<1x4x128xbf16>
    %9 = vector.shape_cast %8 : vector<1x4x128xbf16> to vector<4x128xbf16>
    %cst_10 = arith.constant dense<0.000000e+00> : vector<16x128xf32>
    %10 = tpu.matmul %7, %9, %cst_10 {dimension_numbers = #tpu.dot_dimension_numbers<[1], [0], [0], [1], [0, 0, 1, 1], [], []>} : vector<16x4xbf16>, vector<4x128xbf16>, vector<16x128xf32> -> vector<16x128xf32>
    %11 = arith.addf %6, %10 : vector<16x128xf32>
    %12 = vector.extract_strided_slice %2 {offsets = [2, 0], sizes = [16, 4], strides = [1, 1]} : vector<18x4xbf16> to vector<16x4xbf16>
    %c2 = arith.constant 2 : index
    %c0_11 = arith.constant 0 : index
    %c0_12 = arith.constant 0 : index
    %13 = vector.load %arg4[%c2, %c0_11, %c0_12] : memref<9x4x128xbf16, #tpu.memory_space<vmem>>, vector<1x4x128xbf16>
    %14 = vector.shape_cast %13 : vector<1x4x128xbf16> to vector<4x128xbf16>
    %cst_13 = arith.constant dense<0.000000e+00> : vector<16x128xf32>
    %15 = tpu.matmul %12, %14, %cst_13 {dimension_numbers = #tpu.dot_dimension_numbers<[1], [0], [0], [1], [0, 0, 1, 1], [], []>} : vector<16x4xbf16>, vector<4x128xbf16>, vector<16x128xf32> -> vector<16x128xf32>
    %16 = arith.addf %11, %15 : vector<16x128xf32>
    %c0_14 = arith.constant 0 : index
    %c1_15 = arith.constant 1 : index
    %c0_16 = arith.constant 0 : index
    %c0_17 = arith.constant 0 : index
    %17 = vector.load %arg2[%c0_14, %c1_15, %c0_16, %c0_17] : memref<1x8x18x4xbf16, #tpu.memory_space<vmem>>, vector<1x1x18x4xbf16>
    %18 = vector.shape_cast %17 : vector<1x1x18x4xbf16> to vector<18x4xbf16>
    %19 = vector.extract_strided_slice %18 {offsets = [0, 0], sizes = [16, 4], strides = [1, 1]} : vector<18x4xbf16> to vector<16x4xbf16>
    %c3 = arith.constant 3 : index
    %c0_18 = arith.constant 0 : index
    %c0_19 = arith.constant 0 : index
    %20 = vector.load %arg4[%c3, %c0_18, %c0_19] : memref<9x4x128xbf16, #tpu.memory_space<vmem>>, vector<1x4x128xbf16>
    %21 = vector.shape_cast %20 : vector<1x4x128xbf16> to vector<4x128xbf16>
    %cst_20 = arith.constant dense<0.000000e+00> : vector<16x128xf32>
    %22 = tpu.matmul %19, %21, %cst_20 {dimension_numbers = #tpu.dot_dimension_numbers<[1], [0], [0], [1], [0, 0, 1, 1], [], []>} : vector<16x4xbf16>, vector<4x128xbf16>, vector<16x128xf32> -> vector<16x128xf32>
    %23 = arith.addf %16, %22 : vector<16x128xf32>
    %24 = vector.extract_strided_slice %18 {offsets = [1, 0], sizes = [16, 4], strides = [1, 1]} : vector<18x4xbf16> to vector<16x4xbf16>
    %c4 = arith.constant 4 : index
    %c0_21 = arith.constant 0 : index
    %c0_22 = arith.constant 0 : index
    %25 = vector.load %arg4[%c4, %c0_21, %c0_22] : memref<9x4x128xbf16, #tpu.memory_space<vmem>>, vector<1x4x128xbf16>
    %26 = vector.shape_cast %25 : vector<1x4x128xbf16> to vector<4x128xbf16>
    %cst_23 = arith.constant dense<0.000000e+00> : vector<16x128xf32>
    %27 = tpu.matmul %24, %26, %cst_23 {dimension_numbers = #tpu.dot_dimension_numbers<[1], [0], [0], [1], [0, 0, 1, 1], [], []>} : vector<16x4xbf16>, vector<4x128xbf16>, vector<16x128xf32> -> vector<16x128xf32>
    %28 = arith.addf %23, %27 : vector<16x128xf32>
    %29 = vector.extract_strided_slice %18 {offsets = [2, 0], sizes = [16, 4], strides = [1, 1]} : vector<18x4xbf16> to vector<16x4xbf16>
    %c5 = arith.constant 5 : index
    %c0_24 = arith.constant 0 : index
    %c0_25 = arith.constant 0 : index
    %30 = vector.load %arg4[%c5, %c0_24, %c0_25] : memref<9x4x128xbf16, #tpu.memory_space<vmem>>, vector<1x4x128xbf16>
    %31 = vector.shape_cast %30 : vector<1x4x128xbf16> to vector<4x128xbf16>
    %cst_26 = arith.constant dense<0.000000e+00> : vector<16x128xf32>
    %32 = tpu.matmul %29, %31, %cst_26 {dimension_numbers = #tpu.dot_dimension_numbers<[1], [0], [0], [1], [0, 0, 1, 1], [], []>} : vector<16x4xbf16>, vector<4x128xbf16>, vector<16x128xf32> -> vector<16x128xf32>
    %33 = arith.addf %28, %32 : vector<16x128xf32>
    %c0_27 = arith.constant 0 : index
    %c2_28 = arith.constant 2 : index
    %c0_29 = arith.constant 0 : index
    %c0_30 = arith.constant 0 : index
    %34 = vector.load %arg2[%c0_27, %c2_28, %c0_29, %c0_30] : memref<1x8x18x4xbf16, #tpu.memory_space<vmem>>, vector<1x1x18x4xbf16>
    %35 = vector.shape_cast %34 : vector<1x1x18x4xbf16> to vector<18x4xbf16>
    %36 = vector.extract_strided_slice %35 {offsets = [0, 0], sizes = [16, 4], strides = [1, 1]} : vector<18x4xbf16> to vector<16x4xbf16>
    %c6 = arith.constant 6 : index
    %c0_31 = arith.constant 0 : index
    %c0_32 = arith.constant 0 : index
    %37 = vector.load %arg4[%c6, %c0_31, %c0_32] : memref<9x4x128xbf16, #tpu.memory_space<vmem>>, vector<1x4x128xbf16>
    %38 = vector.shape_cast %37 : vector<1x4x128xbf16> to vector<4x128xbf16>
    %cst_33 = arith.constant dense<0.000000e+00> : vector<16x128xf32>
    %39 = tpu.matmul %36, %38, %cst_33 {dimension_numbers = #tpu.dot_dimension_numbers<[1], [0], [0], [1], [0, 0, 1, 1], [], []>} : vector<16x4xbf16>, vector<4x128xbf16>, vector<16x128xf32> -> vector<16x128xf32>
    %40 = arith.addf %33, %39 : vector<16x128xf32>
    %41 = vector.extract_strided_slice %35 {offsets = [1, 0], sizes = [16, 4], strides = [1, 1]} : vector<18x4xbf16> to vector<16x4xbf16>
    %c7 = arith.constant 7 : index
    %c0_34 = arith.constant 0 : index
    %c0_35 = arith.constant 0 : index
    %42 = vector.load %arg4[%c7, %c0_34, %c0_35] : memref<9x4x128xbf16, #tpu.memory_space<vmem>>, vector<1x4x128xbf16>
    %43 = vector.shape_cast %42 : vector<1x4x128xbf16> to vector<4x128xbf16>
    %cst_36 = arith.constant dense<0.000000e+00> : vector<16x128xf32>
    %44 = tpu.matmul %41, %43, %cst_36 {dimension_numbers = #tpu.dot_dimension_numbers<[1], [0], [0], [1], [0, 0, 1, 1], [], []>} : vector<16x4xbf16>, vector<4x128xbf16>, vector<16x128xf32> -> vector<16x128xf32>
    %45 = arith.addf %40, %44 : vector<16x128xf32>
    %46 = vector.extract_strided_slice %35 {offsets = [2, 0], sizes = [16, 4], strides = [1, 1]} : vector<18x4xbf16> to vector<16x4xbf16>
    %c8 = arith.constant 8 : index
    %c0_37 = arith.constant 0 : index
    %c0_38 = arith.constant 0 : index
    %47 = vector.load %arg4[%c8, %c0_37, %c0_38] : memref<9x4x128xbf16, #tpu.memory_space<vmem>>, vector<1x4x128xbf16>
    %48 = vector.shape_cast %47 : vector<1x4x128xbf16> to vector<4x128xbf16>
    %cst_39 = arith.constant dense<0.000000e+00> : vector<16x128xf32>
    %49 = tpu.matmul %46, %48, %cst_39 {dimension_numbers = #tpu.dot_dimension_numbers<[1], [0], [0], [1], [0, 0, 1, 1], [], []>} : vector<16x4xbf16>, vector<4x128xbf16>, vector<16x128xf32> -> vector<16x128xf32>
    %50 = arith.addf %45, %49 : vector<16x128xf32>
    %51 = vector.broadcast %0 : vector<1x128xf32> to vector<16x128xf32>
    %52 = arith.addf %50, %51 : vector<16x128xf32>
    %cst_40 = arith.constant 0.000000e+00 : f32
    %53 = vector.broadcast %cst_40 : f32 to vector<16x128xf32>
    %54 = arith.maximumf %52, %53 : vector<16x128xf32>
    %c0_41 = arith.constant 0 : index
    %c0_42 = arith.constant 0 : index
    %c0_43 = arith.constant 0 : index
    %c0_44 = arith.constant 0 : index
    %55 = vector.load %arg6[%c0_41, %c0_42, %c0_43, %c0_44] : memref<1x8x16x128xf32, #tpu.memory_space<vmem>>, vector<1x1x16x128xf32>
    %56 = vector.shape_cast %55 : vector<1x1x16x128xf32> to vector<16x128xf32>
    %57 = vector.shape_cast %54 : vector<16x128xf32> to vector<1x1x16x128xf32>
    tpu.vector_store %arg6[%c0_41, %c0_42, %c0_43, %c0_44], %57 {strides = array<i32>} : memref<1x8x16x128xf32, #tpu.memory_space<vmem>>, vector<1x1x16x128xf32>,
    %c0_45 = arith.constant 0 : index
    %c1_46 = arith.constant 1 : index
    %c0_47 = arith.constant 0 : index
    %c0_48 = arith.constant 0 : index
    %58 = vector.load %arg2[%c0_45, %c1_46, %c0_47, %c0_48] : memref<1x8x18x4xbf16, #tpu.memory_space<vmem>>, vector<1x1x18x4xbf16>
    %59 = vector.shape_cast %58 : vector<1x1x18x4xbf16> to vector<18x4xbf16>
    %60 = vector.extract_strided_slice %59 {offsets = [0, 0], sizes = [16, 4], strides = [1, 1]} : vector<18x4xbf16> to vector<16x4xbf16>
    %c0_49 = arith.constant 0 : index
    %c0_50 = arith.constant 0 : index
    %c0_51 = arith.constant 0 : index
    %61 = vector.load %arg4[%c0_49, %c0_50, %c0_51] : memref<9x4x128xbf16, #tpu.memory_space<vmem>>, vector<1x4x128xbf16>
    %62 = vector.shape_cast %61 : vector<1x4x128xbf16> to vector<4x128xbf16>
    %cst_52 = arith.constant dense<0.000000e+00> : vector<16x128xf32>
    %63 = tpu.matmul %60, %62, %cst_52 {dimension_numbers = #tpu.dot_dimension_numbers<[1], [0], [0], [1], [0, 0, 1, 1], [], []>} : vector<16x4xbf16>, vector<4x128xbf16>, vector<16x128xf32> -> vector<16x128xf32>
    %64 = vector.extract_strided_slice %59 {offsets = [1, 0], sizes = [16, 4], strides = [1, 1]} : vector<18x4xbf16> to vector<16x4xbf16>
    %c1_53 = arith.constant 1 : index
    %c0_54 = arith.constant 0 : index
    %c0_55 = arith.constant 0 : index
    %65 = vector.load %arg4[%c1_53, %c0_54, %c0_55] : memref<9x4x128xbf16, #tpu.memory_space<vmem>>, vector<1x4x128xbf16>
    %66 = vector.shape_cast %65 : vector<1x4x128xbf16> to vector<4x128xbf16>
    %cst_56 = arith.constant dense<0.000000e+00> : vector<16x128xf32>
    %67 = tpu.matmul %64, %66, %cst_56 {dimension_numbers = #tpu.dot_dimension_numbers<[1], [0], [0], [1], [0, 0, 1, 1], [], []>} : vector<16x4xbf16>, vector<4x128xbf16>, vector<16x128xf32> -> vector<16x128xf32>
    %68 = arith.addf %63, %67 : vector<16x128xf32>
    %69 = vector.extract_strided_slice %59 {offsets = [2, 0], sizes = [16, 4], strides = [1, 1]} : vector<18x4xbf16> to vector<16x4xbf16>
    %c2_57 = arith.constant 2 : index
    %c0_58 = arith.constant 0 : index
    %c0_59 = arith.constant 0 : index
    %70 = vector.load %arg4[%c2_57, %c0_58, %c0_59] : memref<9x4x128xbf16, #tpu.memory_space<vmem>>, vector<1x4x128xbf16>
    %71 = vector.shape_cast %70 : vector<1x4x128xbf16> to vector<4x128xbf16>
    %cst_60 = arith.constant dense<0.000000e+00> : vector<16x128xf32>
    %72 = tpu.matmul %69, %71, %cst_60 {dimension_numbers = #tpu.dot_dimension_numbers<[1], [0], [0], [1], [0, 0, 1, 1], [], []>} : vector<16x4xbf16>, vector<4x128xbf16>, vector<16x128xf32> -> vector<16x128xf32>
    %73 = arith.addf %68, %72 : vector<16x128xf32>
    %c0_61 = arith.constant 0 : index
    %c2_62 = arith.constant 2 : index
    %c0_63 = arith.constant 0 : index
    %c0_64 = arith.constant 0 : index
    %74 = vector.load %arg2[%c0_61, %c2_62, %c0_63, %c0_64] : memref<1x8x18x4xbf16, #tpu.memory_space<vmem>>, vector<1x1x18x4xbf16>
    %75 = vector.shape_cast %74 : vector<1x1x18x4xbf16> to vector<18x4xbf16>
    %76 = vector.extract_strided_slice %75 {offsets = [0, 0], sizes = [16, 4], strides = [1, 1]} : vector<18x4xbf16> to vector<16x4xbf16>
    %c3_65 = arith.constant 3 : index
    %c0_66 = arith.constant 0 : index
    %c0_67 = arith.constant 0 : index
    %77 = vector.load %arg4[%c3_65, %c0_66, %c0_67] : memref<9x4x128xbf16, #tpu.memory_space<vmem>>, vector<1x4x128xbf16>
    %78 = vector.shape_cast %77 : vector<1x4x128xbf16> to vector<4x128xbf16>
    %cst_68 = arith.constant dense<0.000000e+00> : vector<16x128xf32>
    %79 = tpu.matmul %76, %78, %cst_68 {dimension_numbers = #tpu.dot_dimension_numbers<[1], [0], [0], [1], [0, 0, 1, 1], [], []>} : vector<16x4xbf16>, vector<4x128xbf16>, vector<16x128xf32> -> vector<16x128xf32>
    %80 = arith.addf %73, %79 : vector<16x128xf32>
    %81 = vector.extract_strided_slice %75 {offsets = [1, 0], sizes = [16, 4], strides = [1, 1]} : vector<18x4xbf16> to vector<16x4xbf16>
    %c4_69 = arith.constant 4 : index
    %c0_70 = arith.constant 0 : index
    %c0_71 = arith.constant 0 : index
    %82 = vector.load %arg4[%c4_69, %c0_70, %c0_71] : memref<9x4x128xbf16, #tpu.memory_space<vmem>>, vector<1x4x128xbf16>
    %83 = vector.shape_cast %82 : vector<1x4x128xbf16> to vector<4x128xbf16>
    %cst_72 = arith.constant dense<0.000000e+00> : vector<16x128xf32>
    %84 = tpu.matmul %81, %83, %cst_72 {dimension_numbers = #tpu.dot_dimension_numbers<[1], [0], [0], [1], [0, 0, 1, 1], [], []>} : vector<16x4xbf16>, vector<4x128xbf16>, vector<16x128xf32> -> vector<16x128xf32>
    %85 = arith.addf %80, %84 : vector<16x128xf32>
    %86 = vector.extract_strided_slice %75 {offsets = [2, 0], sizes = [16, 4], strides = [1, 1]} : vector<18x4xbf16> to vector<16x4xbf16>
    %c5_73 = arith.constant 5 : index
    %c0_74 = arith.constant 0 : index
    %c0_75 = arith.constant 0 : index
    %87 = vector.load %arg4[%c5_73, %c0_74, %c0_75] : memref<9x4x128xbf16, #tpu.memory_space<vmem>>, vector<1x4x128xbf16>
    %88 = vector.shape_cast %87 : vector<1x4x128xbf16> to vector<4x128xbf16>
    %cst_76 = arith.constant dense<0.000000e+00> : vector<16x128xf32>
    %89 = tpu.matmul %86, %88, %cst_76 {dimension_numbers = #tpu.dot_dimension_numbers<[1], [0], [0], [1], [0, 0, 1, 1], [], []>} : vector<16x4xbf16>, vector<4x128xbf16>, vector<16x128xf32> -> vector<16x128xf32>
    %90 = arith.addf %85, %89 : vector<16x128xf32>
    %c0_77 = arith.constant 0 : index
    %c3_78 = arith.constant 3 : index
    %c0_79 = arith.constant 0 : index
    %c0_80 = arith.constant 0 : index
    %91 = vector.load %arg2[%c0_77, %c3_78, %c0_79, %c0_80] : memref<1x8x18x4xbf16, #tpu.memory_space<vmem>>, vector<1x1x18x4xbf16>
    %92 = vector.shape_cast %91 : vector<1x1x18x4xbf16> to vector<18x4xbf16>
    %93 = vector.extract_strided_slice %92 {offsets = [0, 0], sizes = [16, 4], strides = [1, 1]} : vector<18x4xbf16> to vector<16x4xbf16>
    %c6_81 = arith.constant 6 : index
    %c0_82 = arith.constant 0 : index
    %c0_83 = arith.constant 0 : index
    %94 = vector.load %arg4[%c6_81, %c0_82, %c0_83] : memref<9x4x128xbf16, #tpu.memory_space<vmem>>, vector<1x4x128xbf16>
    %95 = vector.shape_cast %94 : vector<1x4x128xbf16> to vector<4x128xbf16>
    %cst_84 = arith.constant dense<0.000000e+00> : vector<16x128xf32>
    %96 = tpu.matmul %93, %95, %cst_84 {dimension_numbers = #tpu.dot_dimension_numbers<[1], [0], [0], [1], [0, 0, 1, 1], [], []>} : vector<16x4xbf16>, vector<4x128xbf16>, vector<16x128xf32> -> vector<16x128xf32>
    %97 = arith.addf %90, %96 : vector<16x128xf32>
    %98 = vector.extract_strided_slice %92 {offsets = [1, 0], sizes = [16, 4], strides = [1, 1]} : vector<18x4xbf16> to vector<16x4xbf16>
    %c7_85 = arith.constant 7 : index
    %c0_86 = arith.constant 0 : index
    %c0_87 = arith.constant 0 : index
    %99 = vector.load %arg4[%c7_85, %c0_86, %c0_87] : memref<9x4x128xbf16, #tpu.memory_space<vmem>>, vector<1x4x128xbf16>
    %100 = vector.shape_cast %99 : vector<1x4x128xbf16> to vector<4x128xbf16>
    %cst_88 = arith.constant dense<0.000000e+00> : vector<16x128xf32>
    %101 = tpu.matmul %98, %100, %cst_88 {dimension_numbers = #tpu.dot_dimension_numbers<[1], [0], [0], [1], [0, 0, 1, 1], [], []>} : vector<16x4xbf16>, vector<4x128xbf16>, vector<16x128xf32> -> vector<16x128xf32>
    %102 = arith.addf %97, %101 : vector<16x128xf32>
    %103 = vector.extract_strided_slice %92 {offsets = [2, 0], sizes = [16, 4], strides = [1, 1]} : vector<18x4xbf16> to vector<16x4xbf16>
    %c8_89 = arith.constant 8 : index
    %c0_90 = arith.constant 0 : index
    %c0_91 = arith.constant 0 : index
    %104 = vector.load %arg4[%c8_89, %c0_90, %c0_91] : memref<9x4x128xbf16, #tpu.memory_space<vmem>>, vector<1x4x128xbf16>
    %105 = vector.shape_cast %104 : vector<1x4x128xbf16> to vector<4x128xbf16>
    %cst_92 = arith.constant dense<0.000000e+00> : vector<16x128xf32>
    %106 = tpu.matmul %103, %105, %cst_92 {dimension_numbers = #tpu.dot_dimension_numbers<[1], [0], [0], [1], [0, 0, 1, 1], [], []>} : vector<16x4xbf16>, vector<4x128xbf16>, vector<16x128xf32> -> vector<16x128xf32>
    %107 = arith.addf %102, %106 : vector<16x128xf32>
    %108 = vector.broadcast %0 : vector<1x128xf32> to vector<16x128xf32>
    %109 = arith.addf %107, %108 : vector<16x128xf32>
    %cst_93 = arith.constant 0.000000e+00 : f32
    %110 = vector.broadcast %cst_93 : f32 to vector<16x128xf32>
    %111 = arith.maximumf %109, %110 : vector<16x128xf32>
    %c0_94 = arith.constant 0 : index
    %c1_95 = arith.constant 1 : index
    %c0_96 = arith.constant 0 : index
    %c0_97 = arith.constant 0 : index
    %112 = vector.load %arg6[%c0_94, %c1_95, %c0_96, %c0_97] : memref<1x8x16x128xf32, #tpu.memory_space<vmem>>, vector<1x1x16x128xf32>
    %113 = vector.shape_cast %112 : vector<1x1x16x128xf32> to vector<16x128xf32>
    %114 = vector.shape_cast %111 : vector<16x128xf32> to vector<1x1x16x128xf32>
    tpu.vector_store %arg6[%c0_94, %c1_95, %c0_96, %c0_97], %114 {strides = array<i32>} : memref<1x8x16x128xf32, #tpu.memory_space<vmem>>, vector<1x1x16x128xf32>,
    %c0_98 = arith.constant 0 : index
    %c2_99 = arith.constant 2 : index
    %c0_100 = arith.constant 0 : index
    %c0_101 = arith.constant 0 : index
    %115 = vector.load %arg2[%c0_98, %c2_99, %c0_100, %c0_101] : memref<1x8x18x4xbf16, #tpu.memory_space<vmem>>, vector<1x1x18x4xbf16>
    %116 = vector.shape_cast %115 : vector<1x1x18x4xbf16> to vector<18x4xbf16>
    %117 = vector.extract_strided_slice %116 {offsets = [0, 0], sizes = [16, 4], strides = [1, 1]} : vector<18x4xbf16> to vector<16x4xbf16>
    %c0_102 = arith.constant 0 : index
    %c0_103 = arith.constant 0 : index
    %c0_104 = arith.constant 0 : index
    %118 = vector.load %arg4[%c0_102, %c0_103, %c0_104] : memref<9x4x128xbf16, #tpu.memory_space<vmem>>, vector<1x4x128xbf16>
    %119 = vector.shape_cast %118 : vector<1x4x128xbf16> to vector<4x128xbf16>
    %cst_105 = arith.constant dense<0.000000e+00> : vector<16x128xf32>
    %120 = tpu.matmul %117, %119, %cst_105 {dimension_numbers = #tpu.dot_dimension_numbers<[1], [0], [0], [1], [0, 0, 1, 1], [], []>} : vector<16x4xbf16>, vector<4x128xbf16>, vector<16x128xf32> -> vector<16x128xf32>
    %121 = vector.extract_strided_slice %116 {offsets = [1, 0], sizes = [16, 4], strides = [1, 1]} : vector<18x4xbf16> to vector<16x4xbf16>
    %c1_106 = arith.constant 1 : index
    %c0_107 = arith.constant 0 : index
    %c0_108 = arith.constant 0 : index
    %122 = vector.load %arg4[%c1_106, %c0_107, %c0_108] : memref<9x4x128xbf16, #tpu.memory_space<vmem>>, vector<1x4x128xbf16>
    %123 = vector.shape_cast %122 : vector<1x4x128xbf16> to vector<4x128xbf16>
    %cst_109 = arith.constant dense<0.000000e+00> : vector<16x128xf32>
    %124 = tpu.matmul %121, %123, %cst_109 {dimension_numbers = #tpu.dot_dimension_numbers<[1], [0], [0], [1], [0, 0, 1, 1], [], []>} : vector<16x4xbf16>, vector<4x128xbf16>, vector<16x128xf32> -> vector<16x128xf32>
    %125 = arith.addf %120, %124 : vector<16x128xf32>
    %126 = vector.extract_strided_slice %116 {offsets = [2, 0], sizes = [16, 4], strides = [1, 1]} : vector<18x4xbf16> to vector<16x4xbf16>
    %c2_110 = arith.constant 2 : index
    %c0_111 = arith.constant 0 : index
    %c0_112 = arith.constant 0 : index
    %127 = vector.load %arg4[%c2_110, %c0_111, %c0_112] : memref<9x4x128xbf16, #tpu.memory_space<vmem>>, vector<1x4x128xbf16>
    %128 = vector.shape_cast %127 : vector<1x4x128xbf16> to vector<4x128xbf16>
    %cst_113 = arith.constant dense<0.000000e+00> : vector<16x128xf32>
    %129 = tpu.matmul %126, %128, %cst_113 {dimension_numbers = #tpu.dot_dimension_numbers<[1], [0], [0], [1], [0, 0, 1, 1], [], []>} : vector<16x4xbf16>, vector<4x128xbf16>, vector<16x128xf32> -> vector<16x128xf32>
    %130 = arith.addf %125, %129 : vector<16x128xf32>
    %c0_114 = arith.constant 0 : index
    %c3_115 = arith.constant 3 : index
    %c0_116 = arith.constant 0 : index
    %c0_117 = arith.constant 0 : index
    %131 = vector.load %arg2[%c0_114, %c3_115, %c0_116, %c0_117] : memref<1x8x18x4xbf16, #tpu.memory_space<vmem>>, vector<1x1x18x4xbf16>
    %132 = vector.shape_cast %131 : vector<1x1x18x4xbf16> to vector<18x4xbf16>
    %133 = vector.extract_strided_slice %132 {offsets = [0, 0], sizes = [16, 4], strides = [1, 1]} : vector<18x4xbf16> to vector<16x4xbf16>
    %c3_118 = arith.constant 3 : index
    %c0_119 = arith.constant 0 : index
    %c0_120 = arith.constant 0 : index
    %134 = vector.load %arg4[%c3_118, %c0_119, %c0_120] : memref<9x4x128xbf16, #tpu.memory_space<vmem>>, vector<1x4x128xbf16>
    %135 = vector.shape_cast %134 : vector<1x4x128xbf16> to vector<4x128xbf16>
    %cst_121 = arith.constant dense<0.000000e+00> : vector<16x128xf32>
    %136 = tpu.matmul %133, %135, %cst_121 {dimension_numbers = #tpu.dot_dimension_numbers<[1], [0], [0], [1], [0, 0, 1, 1], [], []>} : vector<16x4xbf16>, vector<4x128xbf16>, vector<16x128xf32> -> vector<16x128xf32>
    %137 = arith.addf %130, %136 : vector<16x128xf32>
    %138 = vector.extract_strided_slice %132 {offsets = [1, 0], sizes = [16, 4], strides = [1, 1]} : vector<18x4xbf16> to vector<16x4xbf16>
    %c4_122 = arith.constant 4 : index
    %c0_123 = arith.constant 0 : index
    %c0_124 = arith.constant 0 : index
    %139 = vector.load %arg4[%c4_122, %c0_123, %c0_124] : memref<9x4x128xbf16, #tpu.memory_space<vmem>>, vector<1x4x128xbf16>
    %140 = vector.shape_cast %139 : vector<1x4x128xbf16> to vector<4x128xbf16>
    %cst_125 = arith.constant dense<0.000000e+00> : vector<16x128xf32>
    %141 = tpu.matmul %138, %140, %cst_125 {dimension_numbers = #tpu.dot_dimension_numbers<[1], [0], [0], [1], [0, 0, 1, 1], [], []>} : vector<16x4xbf16>, vector<4x128xbf16>, vector<16x128xf32> -> vector<16x128xf32>
    %142 = arith.addf %137, %141 : vector<16x128xf32>
    %143 = vector.extract_strided_slice %132 {offsets = [2, 0], sizes = [16, 4], strides = [1, 1]} : vector<18x4xbf16> to vector<16x4xbf16>
    %c5_126 = arith.constant 5 : index
    %c0_127 = arith.constant 0 : index
    %c0_128 = arith.constant 0 : index
    %144 = vector.load %arg4[%c5_126, %c0_127, %c0_128] : memref<9x4x128xbf16, #tpu.memory_space<vmem>>, vector<1x4x128xbf16>
    %145 = vector.shape_cast %144 : vector<1x4x128xbf16> to vector<4x128xbf16>
    %cst_129 = arith.constant dense<0.000000e+00> : vector<16x128xf32>
    %146 = tpu.matmul %143, %145, %cst_129 {dimension_numbers = #tpu.dot_dimension_numbers<[1], [0], [0], [1], [0, 0, 1, 1], [], []>} : vector<16x4xbf16>, vector<4x128xbf16>, vector<16x128xf32> -> vector<16x128xf32>
    %147 = arith.addf %142, %146 : vector<16x128xf32>
    %c0_130 = arith.constant 0 : index
    %c4_131 = arith.constant 4 : index
    %c0_132 = arith.constant 0 : index
    %c0_133 = arith.constant 0 : index
    %148 = vector.load %arg2[%c0_130, %c4_131, %c0_132, %c0_133] : memref<1x8x18x4xbf16, #tpu.memory_space<vmem>>, vector<1x1x18x4xbf16>
    %149 = vector.shape_cast %148 : vector<1x1x18x4xbf16> to vector<18x4xbf16>
    %150 = vector.extract_strided_slice %149 {offsets = [0, 0], sizes = [16, 4], strides = [1, 1]} : vector<18x4xbf16> to vector<16x4xbf16>
    %c6_134 = arith.constant 6 : index
    %c0_135 = arith.constant 0 : index
    %c0_136 = arith.constant 0 : index
    %151 = vector.load %arg4[%c6_134, %c0_135, %c0_136] : memref<9x4x128xbf16, #tpu.memory_space<vmem>>, vector<1x4x128xbf16>
    %152 = vector.shape_cast %151 : vector<1x4x128xbf16> to vector<4x128xbf16>
    %cst_137 = arith.constant dense<0.000000e+00> : vector<16x128xf32>
    %153 = tpu.matmul %150, %152, %cst_137 {dimension_numbers = #tpu.dot_dimension_numbers<[1], [0], [0], [1], [0, 0, 1, 1], [], []>} : vector<16x4xbf16>, vector<4x128xbf16>, vector<16x128xf32> -> vector<16x128xf32>
    %154 = arith.addf %147, %153 : vector<16x128xf32>
    %155 = vector.extract_strided_slice %149 {offsets = [1, 0], sizes = [16, 4], strides = [1, 1]} : vector<18x4xbf16> to vector<16x4xbf16>
    %c7_138 = arith.constant 7 : index
    %c0_139 = arith.constant 0 : index
    %c0_140 = arith.constant 0 : index
    %156 = vector.load %arg4[%c7_138, %c0_139, %c0_140] : memref<9x4x128xbf16, #tpu.memory_space<vmem>>, vector<1x4x128xbf16>
    %157 = vector.shape_cast %156 : vector<1x4x128xbf16> to vector<4x128xbf16>
    %cst_141 = arith.constant dense<0.000000e+00> : vector<16x128xf32>
    %158 = tpu.matmul %155, %157, %cst_141 {dimension_numbers = #tpu.dot_dimension_numbers<[1], [0], [0], [1], [0, 0, 1, 1], [], []>} : vector<16x4xbf16>, vector<4x128xbf16>, vector<16x128xf32> -> vector<16x128xf32>
    %159 = arith.addf %154, %158 : vector<16x128xf32>
    %160 = vector.extract_strided_slice %149 {offsets = [2, 0], sizes = [16, 4], strides = [1, 1]} : vector<18x4xbf16> to vector<16x4xbf16>
    %c8_142 = arith.constant 8 : index
    %c0_143 = arith.constant 0 : index
    %c0_144 = arith.constant 0 : index
    %161 = vector.load %arg4[%c8_142, %c0_143, %c0_144] : memref<9x4x128xbf16, #tpu.memory_space<vmem>>, vector<1x4x128xbf16>
    %162 = vector.shape_cast %161 : vector<1x4x128xbf16> to vector<4x128xbf16>
    %cst_145 = arith.constant dense<0.000000e+00> : vector<16x128xf32>
    %163 = tpu.matmul %160, %162, %cst_145 {dimension_numbers = #tpu.dot_dimension_numbers<[1], [0], [0], [1], [0, 0, 1, 1], [], []>} : vector<16x4xbf16>, vector<4x128xbf16>, vector<16x128xf32> -> vector<16x128xf32>
    %164 = arith.addf %159, %163 : vector<16x128xf32>
    %165 = vector.broadcast %0 : vector<1x128xf32> to vector<16x128xf32>
    %166 = arith.addf %164, %165 : vector<16x128xf32>
    %cst_146 = arith.constant 0.000000e+00 : f32
    %167 = vector.broadcast %cst_146 : f32 to vector<16x128xf32>
    %168 = arith.maximumf %166, %167 : vector<16x128xf32>
    %c0_147 = arith.constant 0 : index
    %c2_148 = arith.constant 2 : index
    %c0_149 = arith.constant 0 : index
    %c0_150 = arith.constant 0 : index
    %169 = vector.load %arg6[%c0_147, %c2_148, %c0_149, %c0_150] : memref<1x8x16x128xf32, #tpu.memory_space<vmem>>, vector<1x1x16x128xf32>
    %170 = vector.shape_cast %169 : vector<1x1x16x128xf32> to vector<16x128xf32>
    %171 = vector.shape_cast %168 : vector<16x128xf32> to vector<1x1x16x128xf32>
    tpu.vector_store %arg6[%c0_147, %c2_148, %c0_149, %c0_150], %171 {strides = array<i32>} : memref<1x8x16x128xf32, #tpu.memory_space<vmem>>, vector<1x1x16x128xf32>,
    %c0_151 = arith.constant 0 : index
    %c3_152 = arith.constant 3 : index
    %c0_153 = arith.constant 0 : index
    %c0_154 = arith.constant 0 : index
    %172 = vector.load %arg2[%c0_151, %c3_152, %c0_153, %c0_154] : memref<1x8x18x4xbf16, #tpu.memory_space<vmem>>, vector<1x1x18x4xbf16>
    %173 = vector.shape_cast %172 : vector<1x1x18x4xbf16> to vector<18x4xbf16>
    %174 = vector.extract_strided_slice %173 {offsets = [0, 0], sizes = [16, 4], strides = [1, 1]} : vector<18x4xbf16> to vector<16x4xbf16>
    %c0_155 = arith.constant 0 : index
    %c0_156 = arith.constant 0 : index
    %c0_157 = arith.constant 0 : index
    %175 = vector.load %arg4[%c0_155, %c0_156, %c0_157] : memref<9x4x128xbf16, #tpu.memory_space<vmem>>, vector<1x4x128xbf16>
    %176 = vector.shape_cast %175 : vector<1x4x128xbf16> to vector<4x128xbf16>
    %cst_158 = arith.constant dense<0.000000e+00> : vector<16x128xf32>
    %177 = tpu.matmul %174, %176, %cst_158 {dimension_numbers = #tpu.dot_dimension_numbers<[1], [0], [0], [1], [0, 0, 1, 1], [], []>} : vector<16x4xbf16>, vector<4x128xbf16>, vector<16x128xf32> -> vector<16x128xf32>
    %178 = vector.extract_strided_slice %173 {offsets = [1, 0], sizes = [16, 4], strides = [1, 1]} : vector<18x4xbf16> to vector<16x4xbf16>
    %c1_159 = arith.constant 1 : index
    %c0_160 = arith.constant 0 : index
    %c0_161 = arith.constant 0 : index
    %179 = vector.load %arg4[%c1_159, %c0_160, %c0_161] : memref<9x4x128xbf16, #tpu.memory_space<vmem>>, vector<1x4x128xbf16>
    %180 = vector.shape_cast %179 : vector<1x4x128xbf16> to vector<4x128xbf16>
    %cst_162 = arith.constant dense<0.000000e+00> : vector<16x128xf32>
    %181 = tpu.matmul %178, %180, %cst_162 {dimension_numbers = #tpu.dot_dimension_numbers<[1], [0], [0], [1], [0, 0, 1, 1], [], []>} : vector<16x4xbf16>, vector<4x128xbf16>, vector<16x128xf32> -> vector<16x128xf32>
    %182 = arith.addf %177, %181 : vector<16x128xf32>
    %183 = vector.extract_strided_slice %173 {offsets = [2, 0], sizes = [16, 4], strides = [1, 1]} : vector<18x4xbf16> to vector<16x4xbf16>
    %c2_163 = arith.constant 2 : index
    %c0_164 = arith.constant 0 : index
    %c0_165 = arith.constant 0 : index
    %184 = vector.load %arg4[%c2_163, %c0_164, %c0_165] : memref<9x4x128xbf16, #tpu.memory_space<vmem>>, vector<1x4x128xbf16>
    %185 = vector.shape_cast %184 : vector<1x4x128xbf16> to vector<4x128xbf16>
    %cst_166 = arith.constant dense<0.000000e+00> : vector<16x128xf32>
    %186 = tpu.matmul %183, %185, %cst_166 {dimension_numbers = #tpu.dot_dimension_numbers<[1], [0], [0], [1], [0, 0, 1, 1], [], []>} : vector<16x4xbf16>, vector<4x128xbf16>, vector<16x128xf32> -> vector<16x128xf32>
    %187 = arith.addf %182, %186 : vector<16x128xf32>
    %c0_167 = arith.constant 0 : index
    %c4_168 = arith.constant 4 : index
    %c0_169 = arith.constant 0 : index
    %c0_170 = arith.constant 0 : index
    %188 = vector.load %arg2[%c0_167, %c4_168, %c0_169, %c0_170] : memref<1x8x18x4xbf16, #tpu.memory_space<vmem>>, vector<1x1x18x4xbf16>
    %189 = vector.shape_cast %188 : vector<1x1x18x4xbf16> to vector<18x4xbf16>
    %190 = vector.extract_strided_slice %189 {offsets = [0, 0], sizes = [16, 4], strides = [1, 1]} : vector<18x4xbf16> to vector<16x4xbf16>
    %c3_171 = arith.constant 3 : index
    %c0_172 = arith.constant 0 : index
    %c0_173 = arith.constant 0 : index
    %191 = vector.load %arg4[%c3_171, %c0_172, %c0_173] : memref<9x4x128xbf16, #tpu.memory_space<vmem>>, vector<1x4x128xbf16>
    %192 = vector.shape_cast %191 : vector<1x4x128xbf16> to vector<4x128xbf16>
    %cst_174 = arith.constant dense<0.000000e+00> : vector<16x128xf32>
    %193 = tpu.matmul %190, %192, %cst_174 {dimension_numbers = #tpu.dot_dimension_numbers<[1], [0], [0], [1], [0, 0, 1, 1], [], []>} : vector<16x4xbf16>, vector<4x128xbf16>, vector<16x128xf32> -> vector<16x128xf32>
    %194 = arith.addf %187, %193 : vector<16x128xf32>
    %195 = vector.extract_strided_slice %189 {offsets = [1, 0], sizes = [16, 4], strides = [1, 1]} : vector<18x4xbf16> to vector<16x4xbf16>
    %c4_175 = arith.constant 4 : index
    %c0_176 = arith.constant 0 : index
    %c0_177 = arith.constant 0 : index
    %196 = vector.load %arg4[%c4_175, %c0_176, %c0_177] : memref<9x4x128xbf16, #tpu.memory_space<vmem>>, vector<1x4x128xbf16>
    %197 = vector.shape_cast %196 : vector<1x4x128xbf16> to vector<4x128xbf16>
    %cst_178 = arith.constant dense<0.000000e+00> : vector<16x128xf32>
    %198 = tpu.matmul %195, %197, %cst_178 {dimension_numbers = #tpu.dot_dimension_numbers<[1], [0], [0], [1], [0, 0, 1, 1], [], []>} : vector<16x4xbf16>, vector<4x128xbf16>, vector<16x128xf32> -> vector<16x128xf32>
    %199 = arith.addf %194, %198 : vector<16x128xf32>
    %200 = vector.extract_strided_slice %189 {offsets = [2, 0], sizes = [16, 4], strides = [1, 1]} : vector<18x4xbf16> to vector<16x4xbf16>
    %c5_179 = arith.constant 5 : index
    %c0_180 = arith.constant 0 : index
    %c0_181 = arith.constant 0 : index
    %201 = vector.load %arg4[%c5_179, %c0_180, %c0_181] : memref<9x4x128xbf16, #tpu.memory_space<vmem>>, vector<1x4x128xbf16>
    %202 = vector.shape_cast %201 : vector<1x4x128xbf16> to vector<4x128xbf16>
    %cst_182 = arith.constant dense<0.000000e+00> : vector<16x128xf32>
    %203 = tpu.matmul %200, %202, %cst_182 {dimension_numbers = #tpu.dot_dimension_numbers<[1], [0], [0], [1], [0, 0, 1, 1], [], []>} : vector<16x4xbf16>, vector<4x128xbf16>, vector<16x128xf32> -> vector<16x128xf32>
    %204 = arith.addf %199, %203 : vector<16x128xf32>
    %c0_183 = arith.constant 0 : index
    %c5_184 = arith.constant 5 : index
    %c0_185 = arith.constant 0 : index
    %c0_186 = arith.constant 0 : index
    %205 = vector.load %arg2[%c0_183, %c5_184, %c0_185, %c0_186] : memref<1x8x18x4xbf16, #tpu.memory_space<vmem>>, vector<1x1x18x4xbf16>
    %206 = vector.shape_cast %205 : vector<1x1x18x4xbf16> to vector<18x4xbf16>
    %207 = vector.extract_strided_slice %206 {offsets = [0, 0], sizes = [16, 4], strides = [1, 1]} : vector<18x4xbf16> to vector<16x4xbf16>
    %c6_187 = arith.constant 6 : index
    %c0_188 = arith.constant 0 : index
    %c0_189 = arith.constant 0 : index
    %208 = vector.load %arg4[%c6_187, %c0_188, %c0_189] : memref<9x4x128xbf16, #tpu.memory_space<vmem>>, vector<1x4x128xbf16>
    %209 = vector.shape_cast %208 : vector<1x4x128xbf16> to vector<4x128xbf16>
    %cst_190 = arith.constant dense<0.000000e+00> : vector<16x128xf32>
    %210 = tpu.matmul %207, %209, %cst_190 {dimension_numbers = #tpu.dot_dimension_numbers<[1], [0], [0], [1], [0, 0, 1, 1], [], []>} : vector<16x4xbf16>, vector<4x128xbf16>, vector<16x128xf32> -> vector<16x128xf32>
    %211 = arith.addf %204, %210 : vector<16x128xf32>
    %212 = vector.extract_strided_slice %206 {offsets = [1, 0], sizes = [16, 4], strides = [1, 1]} : vector<18x4xbf16> to vector<16x4xbf16>
    %c7_191 = arith.constant 7 : index
    %c0_192 = arith.constant 0 : index
    %c0_193 = arith.constant 0 : index
    %213 = vector.load %arg4[%c7_191, %c0_192, %c0_193] : memref<9x4x128xbf16, #tpu.memory_space<vmem>>, vector<1x4x128xbf16>
    %214 = vector.shape_cast %213 : vector<1x4x128xbf16> to vector<4x128xbf16>
    %cst_194 = arith.constant dense<0.000000e+00> : vector<16x128xf32>
    %215 = tpu.matmul %212, %214, %cst_194 {dimension_numbers = #tpu.dot_dimension_numbers<[1], [0], [0], [1], [0, 0, 1, 1], [], []>} : vector<16x4xbf16>, vector<4x128xbf16>, vector<16x128xf32> -> vector<16x128xf32>
    %216 = arith.addf %211, %215 : vector<16x128xf32>
    %217 = vector.extract_strided_slice %206 {offsets = [2, 0], sizes = [16, 4], strides = [1, 1]} : vector<18x4xbf16> to vector<16x4xbf16>
    %c8_195 = arith.constant 8 : index
    %c0_196 = arith.constant 0 : index
    %c0_197 = arith.constant 0 : index
    %218 = vector.load %arg4[%c8_195, %c0_196, %c0_197] : memref<9x4x128xbf16, #tpu.memory_space<vmem>>, vector<1x4x128xbf16>
    %219 = vector.shape_cast %218 : vector<1x4x128xbf16> to vector<4x128xbf16>
    %cst_198 = arith.constant dense<0.000000e+00> : vector<16x128xf32>
    %220 = tpu.matmul %217, %219, %cst_198 {dimension_numbers = #tpu.dot_dimension_numbers<[1], [0], [0], [1], [0, 0, 1, 1], [], []>} : vector<16x4xbf16>, vector<4x128xbf16>, vector<16x128xf32> -> vector<16x128xf32>
    %221 = arith.addf %216, %220 : vector<16x128xf32>
    %222 = vector.broadcast %0 : vector<1x128xf32> to vector<16x128xf32>
    %223 = arith.addf %221, %222 : vector<16x128xf32>
    %cst_199 = arith.constant 0.000000e+00 : f32
    %224 = vector.broadcast %cst_199 : f32 to vector<16x128xf32>
    %225 = arith.maximumf %223, %224 : vector<16x128xf32>
    %c0_200 = arith.constant 0 : index
    %c3_201 = arith.constant 3 : index
    %c0_202 = arith.constant 0 : index
    %c0_203 = arith.constant 0 : index
    %226 = vector.load %arg6[%c0_200, %c3_201, %c0_202, %c0_203] : memref<1x8x16x128xf32, #tpu.memory_space<vmem>>, vector<1x1x16x128xf32>
    %227 = vector.shape_cast %226 : vector<1x1x16x128xf32> to vector<16x128xf32>
    %228 = vector.shape_cast %225 : vector<16x128xf32> to vector<1x1x16x128xf32>
    tpu.vector_store %arg6[%c0_200, %c3_201, %c0_202, %c0_203], %228 {strides = array<i32>} : memref<1x8x16x128xf32, #tpu.memory_space<vmem>>, vector<1x1x16x128xf32>,
    %c0_204 = arith.constant 0 : index
    %c4_205 = arith.constant 4 : index
    %c0_206 = arith.constant 0 : index
    %c0_207 = arith.constant 0 : index
    %229 = vector.load %arg2[%c0_204, %c4_205, %c0_206, %c0_207] : memref<1x8x18x4xbf16, #tpu.memory_space<vmem>>, vector<1x1x18x4xbf16>
    %230 = vector.shape_cast %229 : vector<1x1x18x4xbf16> to vector<18x4xbf16>
    %231 = vector.extract_strided_slice %230 {offsets = [0, 0], sizes = [16, 4], strides = [1, 1]} : vector<18x4xbf16> to vector<16x4xbf16>
    %c0_208 = arith.constant 0 : index
    %c0_209 = arith.constant 0 : index
    %c0_210 = arith.constant 0 : index
    %232 = vector.load %arg4[%c0_208, %c0_209, %c0_210] : memref<9x4x128xbf16, #tpu.memory_space<vmem>>, vector<1x4x128xbf16>
    %233 = vector.shape_cast %232 : vector<1x4x128xbf16> to vector<4x128xbf16>
    %cst_211 = arith.constant dense<0.000000e+00> : vector<16x128xf32>
    %234 = tpu.matmul %231, %233, %cst_211 {dimension_numbers = #tpu.dot_dimension_numbers<[1], [0], [0], [1], [0, 0, 1, 1], [], []>} : vector<16x4xbf16>, vector<4x128xbf16>, vector<16x128xf32> -> vector<16x128xf32>
    %235 = vector.extract_strided_slice %230 {offsets = [1, 0], sizes = [16, 4], strides = [1, 1]} : vector<18x4xbf16> to vector<16x4xbf16>
    %c1_212 = arith.constant 1 : index
    %c0_213 = arith.constant 0 : index
    %c0_214 = arith.constant 0 : index
    %236 = vector.load %arg4[%c1_212, %c0_213, %c0_214] : memref<9x4x128xbf16, #tpu.memory_space<vmem>>, vector<1x4x128xbf16>
    %237 = vector.shape_cast %236 : vector<1x4x128xbf16> to vector<4x128xbf16>
    %cst_215 = arith.constant dense<0.000000e+00> : vector<16x128xf32>
    %238 = tpu.matmul %235, %237, %cst_215 {dimension_numbers = #tpu.dot_dimension_numbers<[1], [0], [0], [1], [0, 0, 1, 1], [], []>} : vector<16x4xbf16>, vector<4x128xbf16>, vector<16x128xf32> -> vector<16x128xf32>
    %239 = arith.addf %234, %238 : vector<16x128xf32>
    %240 = vector.extract_strided_slice %230 {offsets = [2, 0], sizes = [16, 4], strides = [1, 1]} : vector<18x4xbf16> to vector<16x4xbf16>
    %c2_216 = arith.constant 2 : index
    %c0_217 = arith.constant 0 : index
    %c0_218 = arith.constant 0 : index
    %241 = vector.load %arg4[%c2_216, %c0_217, %c0_218] : memref<9x4x128xbf16, #tpu.memory_space<vmem>>, vector<1x4x128xbf16>
    %242 = vector.shape_cast %241 : vector<1x4x128xbf16> to vector<4x128xbf16>
    %cst_219 = arith.constant dense<0.000000e+00> : vector<16x128xf32>
    %243 = tpu.matmul %240, %242, %cst_219 {dimension_numbers = #tpu.dot_dimension_numbers<[1], [0], [0], [1], [0, 0, 1, 1], [], []>} : vector<16x4xbf16>, vector<4x128xbf16>, vector<16x128xf32> -> vector<16x128xf32>
    %244 = arith.addf %239, %243 : vector<16x128xf32>
    %c0_220 = arith.constant 0 : index
    %c5_221 = arith.constant 5 : index
    %c0_222 = arith.constant 0 : index
    %c0_223 = arith.constant 0 : index
    %245 = vector.load %arg2[%c0_220, %c5_221, %c0_222, %c0_223] : memref<1x8x18x4xbf16, #tpu.memory_space<vmem>>, vector<1x1x18x4xbf16>
    %246 = vector.shape_cast %245 : vector<1x1x18x4xbf16> to vector<18x4xbf16>
    %247 = vector.extract_strided_slice %246 {offsets = [0, 0], sizes = [16, 4], strides = [1, 1]} : vector<18x4xbf16> to vector<16x4xbf16>
    %c3_224 = arith.constant 3 : index
    %c0_225 = arith.constant 0 : index
    %c0_226 = arith.constant 0 : index
    %248 = vector.load %arg4[%c3_224, %c0_225, %c0_226] : memref<9x4x128xbf16, #tpu.memory_space<vmem>>, vector<1x4x128xbf16>
    %249 = vector.shape_cast %248 : vector<1x4x128xbf16> to vector<4x128xbf16>
    %cst_227 = arith.constant dense<0.000000e+00> : vector<16x128xf32>
    %250 = tpu.matmul %247, %249, %cst_227 {dimension_numbers = #tpu.dot_dimension_numbers<[1], [0], [0], [1], [0, 0, 1, 1], [], []>} : vector<16x4xbf16>, vector<4x128xbf16>, vector<16x128xf32> -> vector<16x128xf32>
    %251 = arith.addf %244, %250 : vector<16x128xf32>
    %252 = vector.extract_strided_slice %246 {offsets = [1, 0], sizes = [16, 4], strides = [1, 1]} : vector<18x4xbf16> to vector<16x4xbf16>
    %c4_228 = arith.constant 4 : index
    %c0_229 = arith.constant 0 : index
    %c0_230 = arith.constant 0 : index
    %253 = vector.load %arg4[%c4_228, %c0_229, %c0_230] : memref<9x4x128xbf16, #tpu.memory_space<vmem>>, vector<1x4x128xbf16>
    %254 = vector.shape_cast %253 : vector<1x4x128xbf16> to vector<4x128xbf16>
    %cst_231 = arith.constant dense<0.000000e+00> : vector<16x128xf32>
    %255 = tpu.matmul %252, %254, %cst_231 {dimension_numbers = #tpu.dot_dimension_numbers<[1], [0], [0], [1], [0, 0, 1, 1], [], []>} : vector<16x4xbf16>, vector<4x128xbf16>, vector<16x128xf32> -> vector<16x128xf32>
    %256 = arith.addf %251, %255 : vector<16x128xf32>
    %257 = vector.extract_strided_slice %246 {offsets = [2, 0], sizes = [16, 4], strides = [1, 1]} : vector<18x4xbf16> to vector<16x4xbf16>
    %c5_232 = arith.constant 5 : index
    %c0_233 = arith.constant 0 : index
    %c0_234 = arith.constant 0 : index
    %258 = vector.load %arg4[%c5_232, %c0_233, %c0_234] : memref<9x4x128xbf16, #tpu.memory_space<vmem>>, vector<1x4x128xbf16>
    %259 = vector.shape_cast %258 : vector<1x4x128xbf16> to vector<4x128xbf16>
    %cst_235 = arith.constant dense<0.000000e+00> : vector<16x128xf32>
    %260 = tpu.matmul %257, %259, %cst_235 {dimension_numbers = #tpu.dot_dimension_numbers<[1], [0], [0], [1], [0, 0, 1, 1], [], []>} : vector<16x4xbf16>, vector<4x128xbf16>, vector<16x128xf32> -> vector<16x128xf32>
    %261 = arith.addf %256, %260 : vector<16x128xf32>
    %c0_236 = arith.constant 0 : index
    %c6_237 = arith.constant 6 : index
    %c0_238 = arith.constant 0 : index
    %c0_239 = arith.constant 0 : index
    %262 = vector.load %arg2[%c0_236, %c6_237, %c0_238, %c0_239] : memref<1x8x18x4xbf16, #tpu.memory_space<vmem>>, vector<1x1x18x4xbf16>
    %263 = vector.shape_cast %262 : vector<1x1x18x4xbf16> to vector<18x4xbf16>
    %264 = vector.extract_strided_slice %263 {offsets = [0, 0], sizes = [16, 4], strides = [1, 1]} : vector<18x4xbf16> to vector<16x4xbf16>
    %c6_240 = arith.constant 6 : index
    %c0_241 = arith.constant 0 : index
    %c0_242 = arith.constant 0 : index
    %265 = vector.load %arg4[%c6_240, %c0_241, %c0_242] : memref<9x4x128xbf16, #tpu.memory_space<vmem>>, vector<1x4x128xbf16>
    %266 = vector.shape_cast %265 : vector<1x4x128xbf16> to vector<4x128xbf16>
    %cst_243 = arith.constant dense<0.000000e+00> : vector<16x128xf32>
    %267 = tpu.matmul %264, %266, %cst_243 {dimension_numbers = #tpu.dot_dimension_numbers<[1], [0], [0], [1], [0, 0, 1, 1], [], []>} : vector<16x4xbf16>, vector<4x128xbf16>, vector<16x128xf32> -> vector<16x128xf32>
    %268 = arith.addf %261, %267 : vector<16x128xf32>
    %269 = vector.extract_strided_slice %263 {offsets = [1, 0], sizes = [16, 4], strides = [1, 1]} : vector<18x4xbf16> to vector<16x4xbf16>
    %c7_244 = arith.constant 7 : index
    %c0_245 = arith.constant 0 : index
    %c0_246 = arith.constant 0 : index
    %270 = vector.load %arg4[%c7_244, %c0_245, %c0_246] : memref<9x4x128xbf16, #tpu.memory_space<vmem>>, vector<1x4x128xbf16>
    %271 = vector.shape_cast %270 : vector<1x4x128xbf16> to vector<4x128xbf16>
    %cst_247 = arith.constant dense<0.000000e+00> : vector<16x128xf32>
    %272 = tpu.matmul %269, %271, %cst_247 {dimension_numbers = #tpu.dot_dimension_numbers<[1], [0], [0], [1], [0, 0, 1, 1], [], []>} : vector<16x4xbf16>, vector<4x128xbf16>, vector<16x128xf32> -> vector<16x128xf32>
    %273 = arith.addf %268, %272 : vector<16x128xf32>
    %274 = vector.extract_strided_slice %263 {offsets = [2, 0], sizes = [16, 4], strides = [1, 1]} : vector<18x4xbf16> to vector<16x4xbf16>
    %c8_248 = arith.constant 8 : index
    %c0_249 = arith.constant 0 : index
    %c0_250 = arith.constant 0 : index
    %275 = vector.load %arg4[%c8_248, %c0_249, %c0_250] : memref<9x4x128xbf16, #tpu.memory_space<vmem>>, vector<1x4x128xbf16>
    %276 = vector.shape_cast %275 : vector<1x4x128xbf16> to vector<4x128xbf16>
    %cst_251 = arith.constant dense<0.000000e+00> : vector<16x128xf32>
    %277 = tpu.matmul %274, %276, %cst_251 {dimension_numbers = #tpu.dot_dimension_numbers<[1], [0], [0], [1], [0, 0, 1, 1], [], []>} : vector<16x4xbf16>, vector<4x128xbf16>, vector<16x128xf32> -> vector<16x128xf32>
    %278 = arith.addf %273, %277 : vector<16x128xf32>
    %279 = vector.broadcast %0 : vector<1x128xf32> to vector<16x128xf32>
    %280 = arith.addf %278, %279 : vector<16x128xf32>
    %cst_252 = arith.constant 0.000000e+00 : f32
    %281 = vector.broadcast %cst_252 : f32 to vector<16x128xf32>
    %282 = arith.maximumf %280, %281 : vector<16x128xf32>
    %c0_253 = arith.constant 0 : index
    %c4_254 = arith.constant 4 : index
    %c0_255 = arith.constant 0 : index
    %c0_256 = arith.constant 0 : index
    %283 = vector.load %arg6[%c0_253, %c4_254, %c0_255, %c0_256] : memref<1x8x16x128xf32, #tpu.memory_space<vmem>>, vector<1x1x16x128xf32>
    %284 = vector.shape_cast %283 : vector<1x1x16x128xf32> to vector<16x128xf32>
    %285 = vector.shape_cast %282 : vector<16x128xf32> to vector<1x1x16x128xf32>
    tpu.vector_store %arg6[%c0_253, %c4_254, %c0_255, %c0_256], %285 {strides = array<i32>} : memref<1x8x16x128xf32, #tpu.memory_space<vmem>>, vector<1x1x16x128xf32>,
    %c0_257 = arith.constant 0 : index
    %c5_258 = arith.constant 5 : index
    %c0_259 = arith.constant 0 : index
    %c0_260 = arith.constant 0 : index
    %286 = vector.load %arg2[%c0_257, %c5_258, %c0_259, %c0_260] : memref<1x8x18x4xbf16, #tpu.memory_space<vmem>>, vector<1x1x18x4xbf16>
    %287 = vector.shape_cast %286 : vector<1x1x18x4xbf16> to vector<18x4xbf16>
    %288 = vector.extract_strided_slice %287 {offsets = [0, 0], sizes = [16, 4], strides = [1, 1]} : vector<18x4xbf16> to vector<16x4xbf16>
    %c0_261 = arith.constant 0 : index
    %c0_262 = arith.constant 0 : index
    %c0_263 = arith.constant 0 : index
    %289 = vector.load %arg4[%c0_261, %c0_262, %c0_263] : memref<9x4x128xbf16, #tpu.memory_space<vmem>>, vector<1x4x128xbf16>
    %290 = vector.shape_cast %289 : vector<1x4x128xbf16> to vector<4x128xbf16>
    %cst_264 = arith.constant dense<0.000000e+00> : vector<16x128xf32>
    %291 = tpu.matmul %288, %290, %cst_264 {dimension_numbers = #tpu.dot_dimension_numbers<[1], [0], [0], [1], [0, 0, 1, 1], [], []>} : vector<16x4xbf16>, vector<4x128xbf16>, vector<16x128xf32> -> vector<16x128xf32>
    %292 = vector.extract_strided_slice %287 {offsets = [1, 0], sizes = [16, 4], strides = [1, 1]} : vector<18x4xbf16> to vector<16x4xbf16>
    %c1_265 = arith.constant 1 : index
    %c0_266 = arith.constant 0 : index
    %c0_267 = arith.constant 0 : index
    %293 = vector.load %arg4[%c1_265, %c0_266, %c0_267] : memref<9x4x128xbf16, #tpu.memory_space<vmem>>, vector<1x4x128xbf16>
    %294 = vector.shape_cast %293 : vector<1x4x128xbf16> to vector<4x128xbf16>
    %cst_268 = arith.constant dense<0.000000e+00> : vector<16x128xf32>
    %295 = tpu.matmul %292, %294, %cst_268 {dimension_numbers = #tpu.dot_dimension_numbers<[1], [0], [0], [1], [0, 0, 1, 1], [], []>} : vector<16x4xbf16>, vector<4x128xbf16>, vector<16x128xf32> -> vector<16x128xf32>
    %296 = arith.addf %291, %295 : vector<16x128xf32>
    %297 = vector.extract_strided_slice %287 {offsets = [2, 0], sizes = [16, 4], strides = [1, 1]} : vector<18x4xbf16> to vector<16x4xbf16>
    %c2_269 = arith.constant 2 : index
    %c0_270 = arith.constant 0 : index
    %c0_271 = arith.constant 0 : index
    %298 = vector.load %arg4[%c2_269, %c0_270, %c0_271] : memref<9x4x128xbf16, #tpu.memory_space<vmem>>, vector<1x4x128xbf16>
    %299 = vector.shape_cast %298 : vector<1x4x128xbf16> to vector<4x128xbf16>
    %cst_272 = arith.constant dense<0.000000e+00> : vector<16x128xf32>
    %300 = tpu.matmul %297, %299, %cst_272 {dimension_numbers = #tpu.dot_dimension_numbers<[1], [0], [0], [1], [0, 0, 1, 1], [], []>} : vector<16x4xbf16>, vector<4x128xbf16>, vector<16x128xf32> -> vector<16x128xf32>
    %301 = arith.addf %296, %300 : vector<16x128xf32>
    %c0_273 = arith.constant 0 : index
    %c6_274 = arith.constant 6 : index
    %c0_275 = arith.constant 0 : index
    %c0_276 = arith.constant 0 : index
    %302 = vector.load %arg2[%c0_273, %c6_274, %c0_275, %c0_276] : memref<1x8x18x4xbf16, #tpu.memory_space<vmem>>, vector<1x1x18x4xbf16>
    %303 = vector.shape_cast %302 : vector<1x1x18x4xbf16> to vector<18x4xbf16>
    %304 = vector.extract_strided_slice %303 {offsets = [0, 0], sizes = [16, 4], strides = [1, 1]} : vector<18x4xbf16> to vector<16x4xbf16>
    %c3_277 = arith.constant 3 : index
    %c0_278 = arith.constant 0 : index
    %c0_279 = arith.constant 0 : index
    %305 = vector.load %arg4[%c3_277, %c0_278, %c0_279] : memref<9x4x128xbf16, #tpu.memory_space<vmem>>, vector<1x4x128xbf16>
    %306 = vector.shape_cast %305 : vector<1x4x128xbf16> to vector<4x128xbf16>
    %cst_280 = arith.constant dense<0.000000e+00> : vector<16x128xf32>
    %307 = tpu.matmul %304, %306, %cst_280 {dimension_numbers = #tpu.dot_dimension_numbers<[1], [0], [0], [1], [0, 0, 1, 1], [], []>} : vector<16x4xbf16>, vector<4x128xbf16>, vector<16x128xf32> -> vector<16x128xf32>
    %308 = arith.addf %301, %307 : vector<16x128xf32>
    %309 = vector.extract_strided_slice %303 {offsets = [1, 0], sizes = [16, 4], strides = [1, 1]} : vector<18x4xbf16> to vector<16x4xbf16>
    %c4_281 = arith.constant 4 : index
    %c0_282 = arith.constant 0 : index
    %c0_283 = arith.constant 0 : index
    %310 = vector.load %arg4[%c4_281, %c0_282, %c0_283] : memref<9x4x128xbf16, #tpu.memory_space<vmem>>, vector<1x4x128xbf16>
    %311 = vector.shape_cast %310 : vector<1x4x128xbf16> to vector<4x128xbf16>
    %cst_284 = arith.constant dense<0.000000e+00> : vector<16x128xf32>
    %312 = tpu.matmul %309, %311, %cst_284 {dimension_numbers = #tpu.dot_dimension_numbers<[1], [0], [0], [1], [0, 0, 1, 1], [], []>} : vector<16x4xbf16>, vector<4x128xbf16>, vector<16x128xf32> -> vector<16x128xf32>
    %313 = arith.addf %308, %312 : vector<16x128xf32>
    %314 = vector.extract_strided_slice %303 {offsets = [2, 0], sizes = [16, 4], strides = [1, 1]} : vector<18x4xbf16> to vector<16x4xbf16>
    %c5_285 = arith.constant 5 : index
    %c0_286 = arith.constant 0 : index
    %c0_287 = arith.constant 0 : index
    %315 = vector.load %arg4[%c5_285, %c0_286, %c0_287] : memref<9x4x128xbf16, #tpu.memory_space<vmem>>, vector<1x4x128xbf16>
    %316 = vector.shape_cast %315 : vector<1x4x128xbf16> to vector<4x128xbf16>
    %cst_288 = arith.constant dense<0.000000e+00> : vector<16x128xf32>
    %317 = tpu.matmul %314, %316, %cst_288 {dimension_numbers = #tpu.dot_dimension_numbers<[1], [0], [0], [1], [0, 0, 1, 1], [], []>} : vector<16x4xbf16>, vector<4x128xbf16>, vector<16x128xf32> -> vector<16x128xf32>
    %318 = arith.addf %313, %317 : vector<16x128xf32>
    %c0_289 = arith.constant 0 : index
    %c7_290 = arith.constant 7 : index
    %c0_291 = arith.constant 0 : index
    %c0_292 = arith.constant 0 : index
    %319 = vector.load %arg2[%c0_289, %c7_290, %c0_291, %c0_292] : memref<1x8x18x4xbf16, #tpu.memory_space<vmem>>, vector<1x1x18x4xbf16>
    %320 = vector.shape_cast %319 : vector<1x1x18x4xbf16> to vector<18x4xbf16>
    %321 = vector.extract_strided_slice %320 {offsets = [0, 0], sizes = [16, 4], strides = [1, 1]} : vector<18x4xbf16> to vector<16x4xbf16>
    %c6_293 = arith.constant 6 : index
    %c0_294 = arith.constant 0 : index
    %c0_295 = arith.constant 0 : index
    %322 = vector.load %arg4[%c6_293, %c0_294, %c0_295] : memref<9x4x128xbf16, #tpu.memory_space<vmem>>, vector<1x4x128xbf16>
    %323 = vector.shape_cast %322 : vector<1x4x128xbf16> to vector<4x128xbf16>
    %cst_296 = arith.constant dense<0.000000e+00> : vector<16x128xf32>
    %324 = tpu.matmul %321, %323, %cst_296 {dimension_numbers = #tpu.dot_dimension_numbers<[1], [0], [0], [1], [0, 0, 1, 1], [], []>} : vector<16x4xbf16>, vector<4x128xbf16>, vector<16x128xf32> -> vector<16x128xf32>
    %325 = arith.addf %318, %324 : vector<16x128xf32>
    %326 = vector.extract_strided_slice %320 {offsets = [1, 0], sizes = [16, 4], strides = [1, 1]} : vector<18x4xbf16> to vector<16x4xbf16>
    %c7_297 = arith.constant 7 : index
    %c0_298 = arith.constant 0 : index
    %c0_299 = arith.constant 0 : index
    %327 = vector.load %arg4[%c7_297, %c0_298, %c0_299] : memref<9x4x128xbf16, #tpu.memory_space<vmem>>, vector<1x4x128xbf16>
    %328 = vector.shape_cast %327 : vector<1x4x128xbf16> to vector<4x128xbf16>
    %cst_300 = arith.constant dense<0.000000e+00> : vector<16x128xf32>
    %329 = tpu.matmul %326, %328, %cst_300 {dimension_numbers = #tpu.dot_dimension_numbers<[1], [0], [0], [1], [0, 0, 1, 1], [], []>} : vector<16x4xbf16>, vector<4x128xbf16>, vector<16x128xf32> -> vector<16x128xf32>
    %330 = arith.addf %325, %329 : vector<16x128xf32>
    %331 = vector.extract_strided_slice %320 {offsets = [2, 0], sizes = [16, 4], strides = [1, 1]} : vector<18x4xbf16> to vector<16x4xbf16>
    %c8_301 = arith.constant 8 : index
    %c0_302 = arith.constant 0 : index
    %c0_303 = arith.constant 0 : index
    %332 = vector.load %arg4[%c8_301, %c0_302, %c0_303] : memref<9x4x128xbf16, #tpu.memory_space<vmem>>, vector<1x4x128xbf16>
    %333 = vector.shape_cast %332 : vector<1x4x128xbf16> to vector<4x128xbf16>
    %cst_304 = arith.constant dense<0.000000e+00> : vector<16x128xf32>
    %334 = tpu.matmul %331, %333, %cst_304 {dimension_numbers = #tpu.dot_dimension_numbers<[1], [0], [0], [1], [0, 0, 1, 1], [], []>} : vector<16x4xbf16>, vector<4x128xbf16>, vector<16x128xf32> -> vector<16x128xf32>
    %335 = arith.addf %330, %334 : vector<16x128xf32>
    %336 = vector.broadcast %0 : vector<1x128xf32> to vector<16x128xf32>
    %337 = arith.addf %335, %336 : vector<16x128xf32>
    %cst_305 = arith.constant 0.000000e+00 : f32
    %338 = vector.broadcast %cst_305 : f32 to vector<16x128xf32>
    %339 = arith.maximumf %337, %338 : vector<16x128xf32>
    %c0_306 = arith.constant 0 : index
    %c5_307 = arith.constant 5 : index
    %c0_308 = arith.constant 0 : index
    %c0_309 = arith.constant 0 : index
    %340 = vector.load %arg6[%c0_306, %c5_307, %c0_308, %c0_309] : memref<1x8x16x128xf32, #tpu.memory_space<vmem>>, vector<1x1x16x128xf32>
    %341 = vector.shape_cast %340 : vector<1x1x16x128xf32> to vector<16x128xf32>
    %342 = vector.shape_cast %339 : vector<16x128xf32> to vector<1x1x16x128xf32>
    tpu.vector_store %arg6[%c0_306, %c5_307, %c0_308, %c0_309], %342 {strides = array<i32>} : memref<1x8x16x128xf32, #tpu.memory_space<vmem>>, vector<1x1x16x128xf32>,
    %c0_310 = arith.constant 0 : index
    %c6_311 = arith.constant 6 : index
    %c0_312 = arith.constant 0 : index
    %c0_313 = arith.constant 0 : index
    %343 = vector.load %arg2[%c0_310, %c6_311, %c0_312, %c0_313] : memref<1x8x18x4xbf16, #tpu.memory_space<vmem>>, vector<1x1x18x4xbf16>
    %344 = vector.shape_cast %343 : vector<1x1x18x4xbf16> to vector<18x4xbf16>
    %345 = vector.extract_strided_slice %344 {offsets = [0, 0], sizes = [16, 4], strides = [1, 1]} : vector<18x4xbf16> to vector<16x4xbf16>
    %c0_314 = arith.constant 0 : index
    %c0_315 = arith.constant 0 : index
    %c0_316 = arith.constant 0 : index
    %346 = vector.load %arg4[%c0_314, %c0_315, %c0_316] : memref<9x4x128xbf16, #tpu.memory_space<vmem>>, vector<1x4x128xbf16>
    %347 = vector.shape_cast %346 : vector<1x4x128xbf16> to vector<4x128xbf16>
    %cst_317 = arith.constant dense<0.000000e+00> : vector<16x128xf32>
    %348 = tpu.matmul %345, %347, %cst_317 {dimension_numbers = #tpu.dot_dimension_numbers<[1], [0], [0], [1], [0, 0, 1, 1], [], []>} : vector<16x4xbf16>, vector<4x128xbf16>, vector<16x128xf32> -> vector<16x128xf32>
    %349 = vector.extract_strided_slice %344 {offsets = [1, 0], sizes = [16, 4], strides = [1, 1]} : vector<18x4xbf16> to vector<16x4xbf16>
    %c1_318 = arith.constant 1 : index
    %c0_319 = arith.constant 0 : index
    %c0_320 = arith.constant 0 : index
    %350 = vector.load %arg4[%c1_318, %c0_319, %c0_320] : memref<9x4x128xbf16, #tpu.memory_space<vmem>>, vector<1x4x128xbf16>
    %351 = vector.shape_cast %350 : vector<1x4x128xbf16> to vector<4x128xbf16>
    %cst_321 = arith.constant dense<0.000000e+00> : vector<16x128xf32>
    %352 = tpu.matmul %349, %351, %cst_321 {dimension_numbers = #tpu.dot_dimension_numbers<[1], [0], [0], [1], [0, 0, 1, 1], [], []>} : vector<16x4xbf16>, vector<4x128xbf16>, vector<16x128xf32> -> vector<16x128xf32>
    %353 = arith.addf %348, %352 : vector<16x128xf32>
    %354 = vector.extract_strided_slice %344 {offsets = [2, 0], sizes = [16, 4], strides = [1, 1]} : vector<18x4xbf16> to vector<16x4xbf16>
    %c2_322 = arith.constant 2 : index
    %c0_323 = arith.constant 0 : index
    %c0_324 = arith.constant 0 : index
    %355 = vector.load %arg4[%c2_322, %c0_323, %c0_324] : memref<9x4x128xbf16, #tpu.memory_space<vmem>>, vector<1x4x128xbf16>
    %356 = vector.shape_cast %355 : vector<1x4x128xbf16> to vector<4x128xbf16>
    %cst_325 = arith.constant dense<0.000000e+00> : vector<16x128xf32>
    %357 = tpu.matmul %354, %356, %cst_325 {dimension_numbers = #tpu.dot_dimension_numbers<[1], [0], [0], [1], [0, 0, 1, 1], [], []>} : vector<16x4xbf16>, vector<4x128xbf16>, vector<16x128xf32> -> vector<16x128xf32>
    %358 = arith.addf %353, %357 : vector<16x128xf32>
    %c0_326 = arith.constant 0 : index
    %c7_327 = arith.constant 7 : index
    %c0_328 = arith.constant 0 : index
    %c0_329 = arith.constant 0 : index
    %359 = vector.load %arg2[%c0_326, %c7_327, %c0_328, %c0_329] : memref<1x8x18x4xbf16, #tpu.memory_space<vmem>>, vector<1x1x18x4xbf16>
    %360 = vector.shape_cast %359 : vector<1x1x18x4xbf16> to vector<18x4xbf16>
    %361 = vector.extract_strided_slice %360 {offsets = [0, 0], sizes = [16, 4], strides = [1, 1]} : vector<18x4xbf16> to vector<16x4xbf16>
    %c3_330 = arith.constant 3 : index
    %c0_331 = arith.constant 0 : index
    %c0_332 = arith.constant 0 : index
    %362 = vector.load %arg4[%c3_330, %c0_331, %c0_332] : memref<9x4x128xbf16, #tpu.memory_space<vmem>>, vector<1x4x128xbf16>
    %363 = vector.shape_cast %362 : vector<1x4x128xbf16> to vector<4x128xbf16>
    %cst_333 = arith.constant dense<0.000000e+00> : vector<16x128xf32>
    %364 = tpu.matmul %361, %363, %cst_333 {dimension_numbers = #tpu.dot_dimension_numbers<[1], [0], [0], [1], [0, 0, 1, 1], [], []>} : vector<16x4xbf16>, vector<4x128xbf16>, vector<16x128xf32> -> vector<16x128xf32>
    %365 = arith.addf %358, %364 : vector<16x128xf32>
    %366 = vector.extract_strided_slice %360 {offsets = [1, 0], sizes = [16, 4], strides = [1, 1]} : vector<18x4xbf16> to vector<16x4xbf16>
    %c4_334 = arith.constant 4 : index
    %c0_335 = arith.constant 0 : index
    %c0_336 = arith.constant 0 : index
    %367 = vector.load %arg4[%c4_334, %c0_335, %c0_336] : memref<9x4x128xbf16, #tpu.memory_space<vmem>>, vector<1x4x128xbf16>
    %368 = vector.shape_cast %367 : vector<1x4x128xbf16> to vector<4x128xbf16>
    %cst_337 = arith.constant dense<0.000000e+00> : vector<16x128xf32>
    %369 = tpu.matmul %366, %368, %cst_337 {dimension_numbers = #tpu.dot_dimension_numbers<[1], [0], [0], [1], [0, 0, 1, 1], [], []>} : vector<16x4xbf16>, vector<4x128xbf16>, vector<16x128xf32> -> vector<16x128xf32>
    %370 = arith.addf %365, %369 : vector<16x128xf32>
    %371 = vector.extract_strided_slice %360 {offsets = [2, 0], sizes = [16, 4], strides = [1, 1]} : vector<18x4xbf16> to vector<16x4xbf16>
    %c5_338 = arith.constant 5 : index
    %c0_339 = arith.constant 0 : index
    %c0_340 = arith.constant 0 : index
    %372 = vector.load %arg4[%c5_338, %c0_339, %c0_340] : memref<9x4x128xbf16, #tpu.memory_space<vmem>>, vector<1x4x128xbf16>
    %373 = vector.shape_cast %372 : vector<1x4x128xbf16> to vector<4x128xbf16>
    %cst_341 = arith.constant dense<0.000000e+00> : vector<16x128xf32>
    %374 = tpu.matmul %371, %373, %cst_341 {dimension_numbers = #tpu.dot_dimension_numbers<[1], [0], [0], [1], [0, 0, 1, 1], [], []>} : vector<16x4xbf16>, vector<4x128xbf16>, vector<16x128xf32> -> vector<16x128xf32>
    %375 = arith.addf %370, %374 : vector<16x128xf32>
    %c0_342 = arith.constant 0 : index
    %c0_343 = arith.constant 0 : index
    %c0_344 = arith.constant 0 : index
    %c0_345 = arith.constant 0 : index
    %376 = vector.load %arg3[%c0_342, %c0_343, %c0_344, %c0_345] : memref<1x2x18x4xbf16, #tpu.memory_space<vmem>>, vector<1x1x18x4xbf16>
    %377 = vector.shape_cast %376 : vector<1x1x18x4xbf16> to vector<18x4xbf16>
    %378 = vector.extract_strided_slice %377 {offsets = [0, 0], sizes = [16, 4], strides = [1, 1]} : vector<18x4xbf16> to vector<16x4xbf16>
    %c6_346 = arith.constant 6 : index
    %c0_347 = arith.constant 0 : index
    %c0_348 = arith.constant 0 : index
    %379 = vector.load %arg4[%c6_346, %c0_347, %c0_348] : memref<9x4x128xbf16, #tpu.memory_space<vmem>>, vector<1x4x128xbf16>
    %380 = vector.shape_cast %379 : vector<1x4x128xbf16> to vector<4x128xbf16>
    %cst_349 = arith.constant dense<0.000000e+00> : vector<16x128xf32>
    %381 = tpu.matmul %378, %380, %cst_349 {dimension_numbers = #tpu.dot_dimension_numbers<[1], [0], [0], [1], [0, 0, 1, 1], [], []>} : vector<16x4xbf16>, vector<4x128xbf16>, vector<16x128xf32> -> vector<16x128xf32>
    %382 = arith.addf %375, %381 : vector<16x128xf32>
    %383 = vector.extract_strided_slice %377 {offsets = [1, 0], sizes = [16, 4], strides = [1, 1]} : vector<18x4xbf16> to vector<16x4xbf16>
    %c7_350 = arith.constant 7 : index
    %c0_351 = arith.constant 0 : index
    %c0_352 = arith.constant 0 : index
    %384 = vector.load %arg4[%c7_350, %c0_351, %c0_352] : memref<9x4x128xbf16, #tpu.memory_space<vmem>>, vector<1x4x128xbf16>
    %385 = vector.shape_cast %384 : vector<1x4x128xbf16> to vector<4x128xbf16>
    %cst_353 = arith.constant dense<0.000000e+00> : vector<16x128xf32>
    %386 = tpu.matmul %383, %385, %cst_353 {dimension_numbers = #tpu.dot_dimension_numbers<[1], [0], [0], [1], [0, 0, 1, 1], [], []>} : vector<16x4xbf16>, vector<4x128xbf16>, vector<16x128xf32> -> vector<16x128xf32>
    %387 = arith.addf %382, %386 : vector<16x128xf32>
    %388 = vector.extract_strided_slice %377 {offsets = [2, 0], sizes = [16, 4], strides = [1, 1]} : vector<18x4xbf16> to vector<16x4xbf16>
    %c8_354 = arith.constant 8 : index
    %c0_355 = arith.constant 0 : index
    %c0_356 = arith.constant 0 : index
    %389 = vector.load %arg4[%c8_354, %c0_355, %c0_356] : memref<9x4x128xbf16, #tpu.memory_space<vmem>>, vector<1x4x128xbf16>
    %390 = vector.shape_cast %389 : vector<1x4x128xbf16> to vector<4x128xbf16>
    %cst_357 = arith.constant dense<0.000000e+00> : vector<16x128xf32>
    %391 = tpu.matmul %388, %390, %cst_357 {dimension_numbers = #tpu.dot_dimension_numbers<[1], [0], [0], [1], [0, 0, 1, 1], [], []>} : vector<16x4xbf16>, vector<4x128xbf16>, vector<16x128xf32> -> vector<16x128xf32>
    %392 = arith.addf %387, %391 : vector<16x128xf32>
    %393 = vector.broadcast %0 : vector<1x128xf32> to vector<16x128xf32>
    %394 = arith.addf %392, %393 : vector<16x128xf32>
    %cst_358 = arith.constant 0.000000e+00 : f32
    %395 = vector.broadcast %cst_358 : f32 to vector<16x128xf32>
    %396 = arith.maximumf %394, %395 : vector<16x128xf32>
    %c0_359 = arith.constant 0 : index
    %c6_360 = arith.constant 6 : index
    %c0_361 = arith.constant 0 : index
    %c0_362 = arith.constant 0 : index
    %397 = vector.load %arg6[%c0_359, %c6_360, %c0_361, %c0_362] : memref<1x8x16x128xf32, #tpu.memory_space<vmem>>, vector<1x1x16x128xf32>
    %398 = vector.shape_cast %397 : vector<1x1x16x128xf32> to vector<16x128xf32>
    %399 = vector.shape_cast %396 : vector<16x128xf32> to vector<1x1x16x128xf32>
    tpu.vector_store %arg6[%c0_359, %c6_360, %c0_361, %c0_362], %399 {strides = array<i32>} : memref<1x8x16x128xf32, #tpu.memory_space<vmem>>, vector<1x1x16x128xf32>,
    %c0_363 = arith.constant 0 : index
    %c7_364 = arith.constant 7 : index
    %c0_365 = arith.constant 0 : index
    %c0_366 = arith.constant 0 : index
    %400 = vector.load %arg2[%c0_363, %c7_364, %c0_365, %c0_366] : memref<1x8x18x4xbf16, #tpu.memory_space<vmem>>, vector<1x1x18x4xbf16>
    %401 = vector.shape_cast %400 : vector<1x1x18x4xbf16> to vector<18x4xbf16>
    %402 = vector.extract_strided_slice %401 {offsets = [0, 0], sizes = [16, 4], strides = [1, 1]} : vector<18x4xbf16> to vector<16x4xbf16>
    %c0_367 = arith.constant 0 : index
    %c0_368 = arith.constant 0 : index
    %c0_369 = arith.constant 0 : index
    %403 = vector.load %arg4[%c0_367, %c0_368, %c0_369] : memref<9x4x128xbf16, #tpu.memory_space<vmem>>, vector<1x4x128xbf16>
    %404 = vector.shape_cast %403 : vector<1x4x128xbf16> to vector<4x128xbf16>
    %cst_370 = arith.constant dense<0.000000e+00> : vector<16x128xf32>
    %405 = tpu.matmul %402, %404, %cst_370 {dimension_numbers = #tpu.dot_dimension_numbers<[1], [0], [0], [1], [0, 0, 1, 1], [], []>} : vector<16x4xbf16>, vector<4x128xbf16>, vector<16x128xf32> -> vector<16x128xf32>
    %406 = vector.extract_strided_slice %401 {offsets = [1, 0], sizes = [16, 4], strides = [1, 1]} : vector<18x4xbf16> to vector<16x4xbf16>
    %c1_371 = arith.constant 1 : index
    %c0_372 = arith.constant 0 : index
    %c0_373 = arith.constant 0 : index
    %407 = vector.load %arg4[%c1_371, %c0_372, %c0_373] : memref<9x4x128xbf16, #tpu.memory_space<vmem>>, vector<1x4x128xbf16>
    %408 = vector.shape_cast %407 : vector<1x4x128xbf16> to vector<4x128xbf16>
    %cst_374 = arith.constant dense<0.000000e+00> : vector<16x128xf32>
    %409 = tpu.matmul %406, %408, %cst_374 {dimension_numbers = #tpu.dot_dimension_numbers<[1], [0], [0], [1], [0, 0, 1, 1], [], []>} : vector<16x4xbf16>, vector<4x128xbf16>, vector<16x128xf32> -> vector<16x128xf32>
    %410 = arith.addf %405, %409 : vector<16x128xf32>
    %411 = vector.extract_strided_slice %401 {offsets = [2, 0], sizes = [16, 4], strides = [1, 1]} : vector<18x4xbf16> to vector<16x4xbf16>
    %c2_375 = arith.constant 2 : index
    %c0_376 = arith.constant 0 : index
    %c0_377 = arith.constant 0 : index
    %412 = vector.load %arg4[%c2_375, %c0_376, %c0_377] : memref<9x4x128xbf16, #tpu.memory_space<vmem>>, vector<1x4x128xbf16>
    %413 = vector.shape_cast %412 : vector<1x4x128xbf16> to vector<4x128xbf16>
    %cst_378 = arith.constant dense<0.000000e+00> : vector<16x128xf32>
    %414 = tpu.matmul %411, %413, %cst_378 {dimension_numbers = #tpu.dot_dimension_numbers<[1], [0], [0], [1], [0, 0, 1, 1], [], []>} : vector<16x4xbf16>, vector<4x128xbf16>, vector<16x128xf32> -> vector<16x128xf32>
    %415 = arith.addf %410, %414 : vector<16x128xf32>
    %c0_379 = arith.constant 0 : index
    %c0_380 = arith.constant 0 : index
    %c0_381 = arith.constant 0 : index
    %c0_382 = arith.constant 0 : index
    %416 = vector.load %arg3[%c0_379, %c0_380, %c0_381, %c0_382] : memref<1x2x18x4xbf16, #tpu.memory_space<vmem>>, vector<1x1x18x4xbf16>
    %417 = vector.shape_cast %416 : vector<1x1x18x4xbf16> to vector<18x4xbf16>
    %418 = vector.extract_strided_slice %417 {offsets = [0, 0], sizes = [16, 4], strides = [1, 1]} : vector<18x4xbf16> to vector<16x4xbf16>
    %c3_383 = arith.constant 3 : index
    %c0_384 = arith.constant 0 : index
    %c0_385 = arith.constant 0 : index
    %419 = vector.load %arg4[%c3_383, %c0_384, %c0_385] : memref<9x4x128xbf16, #tpu.memory_space<vmem>>, vector<1x4x128xbf16>
    %420 = vector.shape_cast %419 : vector<1x4x128xbf16> to vector<4x128xbf16>
    %cst_386 = arith.constant dense<0.000000e+00> : vector<16x128xf32>
    %421 = tpu.matmul %418, %420, %cst_386 {dimension_numbers = #tpu.dot_dimension_numbers<[1], [0], [0], [1], [0, 0, 1, 1], [], []>} : vector<16x4xbf16>, vector<4x128xbf16>, vector<16x128xf32> -> vector<16x128xf32>
    %422 = arith.addf %415, %421 : vector<16x128xf32>
    %423 = vector.extract_strided_slice %417 {offsets = [1, 0], sizes = [16, 4], strides = [1, 1]} : vector<18x4xbf16> to vector<16x4xbf16>
    %c4_387 = arith.constant 4 : index
    %c0_388 = arith.constant 0 : index
    %c0_389 = arith.constant 0 : index
    %424 = vector.load %arg4[%c4_387, %c0_388, %c0_389] : memref<9x4x128xbf16, #tpu.memory_space<vmem>>, vector<1x4x128xbf16>
    %425 = vector.shape_cast %424 : vector<1x4x128xbf16> to vector<4x128xbf16>
    %cst_390 = arith.constant dense<0.000000e+00> : vector<16x128xf32>
    %426 = tpu.matmul %423, %425, %cst_390 {dimension_numbers = #tpu.dot_dimension_numbers<[1], [0], [0], [1], [0, 0, 1, 1], [], []>} : vector<16x4xbf16>, vector<4x128xbf16>, vector<16x128xf32> -> vector<16x128xf32>
    %427 = arith.addf %422, %426 : vector<16x128xf32>
    %428 = vector.extract_strided_slice %417 {offsets = [2, 0], sizes = [16, 4], strides = [1, 1]} : vector<18x4xbf16> to vector<16x4xbf16>
    %c5_391 = arith.constant 5 : index
    %c0_392 = arith.constant 0 : index
    %c0_393 = arith.constant 0 : index
    %429 = vector.load %arg4[%c5_391, %c0_392, %c0_393] : memref<9x4x128xbf16, #tpu.memory_space<vmem>>, vector<1x4x128xbf16>
    %430 = vector.shape_cast %429 : vector<1x4x128xbf16> to vector<4x128xbf16>
    %cst_394 = arith.constant dense<0.000000e+00> : vector<16x128xf32>
    %431 = tpu.matmul %428, %430, %cst_394 {dimension_numbers = #tpu.dot_dimension_numbers<[1], [0], [0], [1], [0, 0, 1, 1], [], []>} : vector<16x4xbf16>, vector<4x128xbf16>, vector<16x128xf32> -> vector<16x128xf32>
    %432 = arith.addf %427, %431 : vector<16x128xf32>
    %c0_395 = arith.constant 0 : index
    %c1_396 = arith.constant 1 : index
    %c0_397 = arith.constant 0 : index
    %c0_398 = arith.constant 0 : index
    %433 = vector.load %arg3[%c0_395, %c1_396, %c0_397, %c0_398] : memref<1x2x18x4xbf16, #tpu.memory_space<vmem>>, vector<1x1x18x4xbf16>
    %434 = vector.shape_cast %433 : vector<1x1x18x4xbf16> to vector<18x4xbf16>
    %435 = vector.extract_strided_slice %434 {offsets = [0, 0], sizes = [16, 4], strides = [1, 1]} : vector<18x4xbf16> to vector<16x4xbf16>
    %c6_399 = arith.constant 6 : index
    %c0_400 = arith.constant 0 : index
    %c0_401 = arith.constant 0 : index
    %436 = vector.load %arg4[%c6_399, %c0_400, %c0_401] : memref<9x4x128xbf16, #tpu.memory_space<vmem>>, vector<1x4x128xbf16>
    %437 = vector.shape_cast %436 : vector<1x4x128xbf16> to vector<4x128xbf16>
    %cst_402 = arith.constant dense<0.000000e+00> : vector<16x128xf32>
    %438 = tpu.matmul %435, %437, %cst_402 {dimension_numbers = #tpu.dot_dimension_numbers<[1], [0], [0], [1], [0, 0, 1, 1], [], []>} : vector<16x4xbf16>, vector<4x128xbf16>, vector<16x128xf32> -> vector<16x128xf32>
    %439 = arith.addf %432, %438 : vector<16x128xf32>
    %440 = vector.extract_strided_slice %434 {offsets = [1, 0], sizes = [16, 4], strides = [1, 1]} : vector<18x4xbf16> to vector<16x4xbf16>
    %c7_403 = arith.constant 7 : index
    %c0_404 = arith.constant 0 : index
    %c0_405 = arith.constant 0 : index
    %441 = vector.load %arg4[%c7_403, %c0_404, %c0_405] : memref<9x4x128xbf16, #tpu.memory_space<vmem>>, vector<1x4x128xbf16>
    %442 = vector.shape_cast %441 : vector<1x4x128xbf16> to vector<4x128xbf16>
    %cst_406 = arith.constant dense<0.000000e+00> : vector<16x128xf32>
    %443 = tpu.matmul %440, %442, %cst_406 {dimension_numbers = #tpu.dot_dimension_numbers<[1], [0], [0], [1], [0, 0, 1, 1], [], []>} : vector<16x4xbf16>, vector<4x128xbf16>, vector<16x128xf32> -> vector<16x128xf32>
    %444 = arith.addf %439, %443 : vector<16x128xf32>
    %445 = vector.extract_strided_slice %434 {offsets = [2, 0], sizes = [16, 4], strides = [1, 1]} : vector<18x4xbf16> to vector<16x4xbf16>
    %c8_407 = arith.constant 8 : index
    %c0_408 = arith.constant 0 : index
    %c0_409 = arith.constant 0 : index
    %446 = vector.load %arg4[%c8_407, %c0_408, %c0_409] : memref<9x4x128xbf16, #tpu.memory_space<vmem>>, vector<1x4x128xbf16>
    %447 = vector.shape_cast %446 : vector<1x4x128xbf16> to vector<4x128xbf16>
    %cst_410 = arith.constant dense<0.000000e+00> : vector<16x128xf32>
    %448 = tpu.matmul %445, %447, %cst_410 {dimension_numbers = #tpu.dot_dimension_numbers<[1], [0], [0], [1], [0, 0, 1, 1], [], []>} : vector<16x4xbf16>, vector<4x128xbf16>, vector<16x128xf32> -> vector<16x128xf32>
    %449 = arith.addf %444, %448 : vector<16x128xf32>
    %450 = vector.broadcast %0 : vector<1x128xf32> to vector<16x128xf32>
    %451 = arith.addf %449, %450 : vector<16x128xf32>
    %cst_411 = arith.constant 0.000000e+00 : f32
    %452 = vector.broadcast %cst_411 : f32 to vector<16x128xf32>
    %453 = arith.maximumf %451, %452 : vector<16x128xf32>
    %c0_412 = arith.constant 0 : index
    %c7_413 = arith.constant 7 : index
    %c0_414 = arith.constant 0 : index
    %c0_415 = arith.constant 0 : index
    %454 = vector.load %arg6[%c0_412, %c7_413, %c0_414, %c0_415] : memref<1x8x16x128xf32, #tpu.memory_space<vmem>>, vector<1x1x16x128xf32>
    %455 = vector.shape_cast %454 : vector<1x1x16x128xf32> to vector<16x128xf32>
    %456 = vector.shape_cast %453 : vector<16x128xf32> to vector<1x1x16x128xf32>
    tpu.vector_store %arg6[%c0_412, %c7_413, %c0_414, %c0_415], %456 {strides = array<i32>} : memref<1x8x16x128xf32, #tpu.memory_space<vmem>>, vector<1x1x16x128xf32>,
    return
  }
  func.func @transform_0(%arg0: i32, %arg1: i32) -> (i32, i32, i32, i32) {
    %c0_i32 = arith.constant 0 : i32
    %c0_i32_0 = arith.constant 0 : i32
    %c0_i32_1 = arith.constant 0 : i32
    return %arg0, %arg1, %c0_i32, %c0_i32_0 : i32, i32, i32, i32
  }
  func.func @transform_1(%arg0: i32, %arg1: i32) -> (i32, i32, i32, i32) {
    %c1_i32 = arith.constant 1 : i32
    %0 = arith.addi %arg1, %c1_i32 : i32
    %c4_i32 = arith.constant 4 : i32
    %1 = arith.muli %0, %c4_i32 : i32
    %c0_i32 = arith.constant 0 : i32
    %c0_i32_0 = arith.constant 0 : i32
    %c0_i32_1 = arith.constant 0 : i32
    return %arg0, %1, %c0_i32, %c0_i32_0 : i32, i32, i32, i32
  }
  func.func @transform_2(%arg0: i32, %arg1: i32) -> (i32, i32, i32) {
    %c0_i32 = arith.constant 0 : i32
    %c0_i32_0 = arith.constant 0 : i32
    %c0_i32_1 = arith.constant 0 : i32
    %c0_i32_2 = arith.constant 0 : i32
    return %c0_i32, %c0_i32_0, %c0_i32_1 : i32, i32, i32
  }
  func.func @transform_3(%arg0: i32, %arg1: i32) -> (i32, i32) {
    %c0_i32 = arith.constant 0 : i32
    %c0_i32_0 = arith.constant 0 : i32
    %c0_i32_1 = arith.constant 0 : i32
    return %c0_i32, %c0_i32_0 : i32, i32
  }
  func.func @transform_4(%arg0: i32, %arg1: i32) -> (i32, i32, i32, i32) {
    %c0_i32 = arith.constant 0 : i32
    %c0_i32_0 = arith.constant 0 : i32
    %c0_i32_1 = arith.constant 0 : i32
    return %arg0, %arg1, %c0_i32, %c0_i32_0 : i32, i32, i32, i32
  }
}

</mosaic_0001>

<llo_original>
// kernel: _forward.1
$region0: #{_forward.1}
  #allocation0 [shape = 'u32[]', space=smem, size = 0x4, offset = 0x4, fixed_abs, tag = 'smem constant byte address 0x4 - core index']
  #allocation1 [shape = 'u32[72,128]{1,0:T(1,128)}', space=vmem, size = 0x9000, scoped, tag = 'internal scratch']
  %s0 = inlined_call_operand.vmem [shape: bf16[2,18,18,4], index: 0, kind: input, shape index: {}, may-alias: {0,1}]
  %s1 = inlined_call_operand.vmem [shape: bf16[2,18,18,4], index: 1, kind: input, shape index: {}, may-alias: {0,1}]
  %s2 = inlined_call_operand.vmem [shape: bf16[9,4,128], index: 2, kind: input, shape index: {}]
  %s3 = inlined_call_operand.vmem [shape: f32[1,128], index: 3, kind: input, shape index: {}]
  %s4 = inlined_call_operand.vmem [shape: f32[2,16,16,128], index: 4, kind: output, shape index: {}]
  %s5 = sld [smem:[#allocation0]]
  $region49: #{_forward.1} parent=0
    _
  %s7 = ssub.s32 1, %s5
  %s8 = scalar_select 0, %s7, %s5
  loop: start=0, step=1, limit=6
  $region2: #{_forward.1} parent=0 // loop_pre_header
    _
  $region3: #{_forward.1} parent=0 // loop_header
    %s10 = sphi 0, %s14
    %p11 = scmp.ge.s32.totalorder %s10, 6
    %s17 = sphi 0, %s29
    %s18 = sphi 0, %s25
    %s19 = sphi 0, %s17
    %s20 = sphi 0, %s18
    %s21 = sphi 0, %s19
    %s22 = sphi 0, %s20
    %s34 = sphi 0, %s36
    %s37 = sphi 0, %s34
    %s38 = sphi 0, %s37
    %s54 = sphi 0, %s38
    %s66 = sphi 0, %s68
    %s69 = sphi 0, %s66
    %s70 = sphi 0, %s69
    %s86 = sphi 0, %s70
    %s90 = sphi 0, %s90
    %s92 = sphi 0, %s90
    %s93 = sphi 0, %s92
    %s107 = sphi 0, %s93
    %s111 = sphi 0, %s111
    %s113 = sphi 0, %s111
    %s114 = sphi 0, %s113
    %s128 = sphi 0, %s114
    %s136 = sphi 0, %s138
    %s139 = sphi 0, %s136
    %s140 = sphi 0, %s139
    %s156 = sphi 0, %s140
  $region4: #{_forward.1} parent=0 // loop_header_branch
    %13 = sbr.rel (%p11) target = $region8
  $region5: #{_forward.1} parent=0 // loop_body
    %s15 = ssub.s32 %s10, 1
    %s16 = ssub.s32 %s10, 2
    %s23 = sadd.s32 1, %s18
    %p24 = scmp.ge.s32.totalorder %s23, 2
    %s25 = scalar_select %p24, 0, %s23
    %s26 = sadd.s32 1, %s17
    %s27 = scalar_select %p24, %s26, %s17
    %p28 = scmp.ge.s32.totalorder %s27, 2
    %s29 = scalar_select %p28, 0, %s27
    %s30 = ssub.s32 %s17, %s29
    %s31 = ssub.s32 %s18, %s25
    %s32 = sor.u32 %s30, %s31
    %p33 = scmp.eq.s32.totalorder %s32, 0
    %s35 = sadd.s32 %s34, 1
    %s36 = scalar_select %p33, %s34, %s35
    %p39 = pneg %p33
    %p40 = scmp.eq.s32.totalorder %s10, 3
    %p41 = por %p39, %p40
    %p42 = scmp.ne.s32.totalorder %s34, %s37
    %p43 = scmp.eq.s32.totalorder %s10, 0
    %p44 = por %p42, %p43
    %p45 = scmp.ne.s32.totalorder %s34, %s37
    %p46 = scmp.eq.s32.totalorder %s15, 3
    %p47 = por %p45, %p46
    %p48 = scmp.ne.s32.totalorder %s37, %s38
    %p49 = scmp.eq.s32.totalorder %s15, 0
    %p50 = por %p48, %p49
    %p51 = scmp.ne.s32.totalorder %s37, %s38
    %p52 = scmp.eq.s32.totalorder %s16, 3
    %p53 = por %p51, %p52
    %p55 = scmp.ne.s32.totalorder %s38, %s54
    %p56 = scmp.eq.s32.totalorder %s16, 0
    %p57 = por %p55, %p56
    %s58 = sadd.s32 %s18, 1
    %s59 = smul.u32 %s58, 4
    %s60 = sadd.s32 %s25, 1
    %s61 = smul.u32 %s60, 4
    %s62 = ssub.s32 %s17, %s29
    %s63 = ssub.s32 %s59, %s61
    %s64 = sor.u32 %s62, %s63
    %p65 = scmp.eq.s32.totalorder %s64, 0
    %s67 = sadd.s32 %s66, 1
    %s68 = scalar_select %p65, %s66, %s67
    %p71 = pneg %p65
    %p72 = scmp.eq.s32.totalorder %s10, 3
    %p73 = por %p71, %p72
    %p74 = scmp.ne.s32.totalorder %s66, %s69
    %p75 = scmp.eq.s32.totalorder %s10, 0
    %p76 = por %p74, %p75
    %p77 = scmp.ne.s32.totalorder %s66, %s69
    %p78 = scmp.eq.s32.totalorder %s15, 3
    %p79 = por %p77, %p78
    %p80 = scmp.ne.s32.totalorder %s69, %s70
    %p81 = scmp.eq.s32.totalorder %s15, 0
    %p82 = por %p80, %p81
    %p83 = scmp.ne.s32.totalorder %s69, %s70
    %p84 = scmp.eq.s32.totalorder %s16, 3
    %p85 = por %p83, %p84
    %p87 = scmp.ne.s32.totalorder %s70, %s86
    %p88 = scmp.eq.s32.totalorder %s16, 0
    %p89 = por %p87, %p88
    %s91 = sadd.s32 %s90, 1
    %p94 = scmp.eq.s32.totalorder %s10, 3
    %p95 = scmp.ne.s32.totalorder %s90, %s92
    %p96 = scmp.eq.s32.totalorder %s10, 0
    %p97 = por %p95, %p96
    %p98 = scmp.ne.s32.totalorder %s90, %s92
    %p99 = scmp.eq.s32.totalorder %s15, 3
    %p100 = por %p98, %p99
    %p101 = scmp.ne.s32.totalorder %s92, %s93
    %p102 = scmp.eq.s32.totalorder %s15, 0
    %p103 = por %p101, %p102
    %p104 = scmp.ne.s32.totalorder %s92, %s93
    %p105 = scmp.eq.s32.totalorder %s16, 3
    %p106 = por %p104, %p105
    %p108 = scmp.ne.s32.totalorder %s93, %s107
    %p109 = scmp.eq.s32.totalorder %s16, 0
    %p110 = por %p108, %p109
    %s112 = sadd.s32 %s111, 1
    %p115 = scmp.eq.s32.totalorder %s10, 3
    %p116 = scmp.ne.s32.totalorder %s111, %s113
    %p117 = scmp.eq.s32.totalorder %s10, 0
    %p118 = por %p116, %p117
    %p119 = scmp.ne.s32.totalorder %s111, %s113
    %p120 = scmp.eq.s32.totalorder %s15, 3
    %p121 = por %p119, %p120
    %p122 = scmp.ne.s32.totalorder %s113, %s114
    %p123 = scmp.eq.s32.totalorder %s15, 0
    %p124 = por %p122, %p123
    %p125 = scmp.ne.s32.totalorder %s113, %s114
    %p126 = scmp.eq.s32.totalorder %s16, 3
    %p127 = por %p125, %p126
    %p129 = scmp.ne.s32.totalorder %s114, %s128
    %p130 = scmp.eq.s32.totalorder %s16, 0
    %p131 = por %p129, %p130
    %s132 = ssub.s32 %s17, %s29
    %s133 = ssub.s32 %s18, %s25
    %s134 = sor.u32 %s132, %s133
    %p135 = scmp.eq.s32.totalorder %s134, 0
    %s137 = sadd.s32 %s136, 1
    %s138 = scalar_select %p135, %s136, %s137
    %p141 = pneg %p135
    %p142 = scmp.eq.s32.totalorder %s10, 3
    %p143 = por %p141, %p142
    %p144 = scmp.ne.s32.totalorder %s136, %s139
    %p145 = scmp.eq.s32.totalorder %s10, 0
    %p146 = por %p144, %p145
    %p147 = scmp.ne.s32.totalorder %s136, %s139
    %p148 = scmp.eq.s32.totalorder %s15, 3
    %p149 = por %p147, %p148
    %p150 = scmp.ne.s32.totalorder %s139, %s140
    %p151 = scmp.eq.s32.totalorder %s15, 0
    %p152 = por %p150, %p151
    %p153 = scmp.ne.s32.totalorder %s139, %s140
    %p154 = scmp.eq.s32.totalorder %s16, 3
    %p155 = por %p153, %p154
    %p157 = scmp.ne.s32.totalorder %s140, %s156
    %p158 = scmp.eq.s32.totalorder %s16, 0
    %p159 = por %p157, %p158
    %p160 = scmp.le.s32.totalorder 1, %s10
    %p161 = scmp.lt.s32.totalorder %s10, 5
    %p162 = pnand %p160, %p161
    %p163 = pneg %p162
    // Predicated region
    $region9: #{_forward.1} parent=5 // pred_check
      _
    $region10: #{_forward.1} parent=5 // pred_check_branch
      %165 = sbr.rel (%p162) target = $region12
    $region11: #{_forward.1} parent=5 // pred_region
      %s166 = ssub.s32 %s10, 1
      // Predicated region
      $region13: #{_forward.1} parent=11 // pred_check
        %p167 = pneg %p103
      $region14: #{_forward.1} parent=11 // pred_check_branch
        %169 = sbr.rel (%p167) target = $region16
      $region15: #{_forward.1} parent=11 // pred_region
        _
      $region16: #{_forward.1} parent=11 // pred_fallthru
        _
      // Predicated region
      $region17: #{_forward.1} parent=11 // pred_check
        %p170 = pneg %p124
      $region18: #{_forward.1} parent=11 // pred_check_branch
        %172 = sbr.rel (%p170) target = $region20
      $region19: #{_forward.1} parent=11 // pred_region
        _
      $region20: #{_forward.1} parent=11 // pred_fallthru
        _
    $region12: #{_forward.1} parent=5 // pred_fallthru
      _
    %p173 = scmp.lt.s32.totalorder %s10, 4
    // Predicated region
    $region21: #{_forward.1} parent=5 // pred_check
      %p174 = pneg %p173
    $region22: #{_forward.1} parent=5 // pred_check_branch
      %176 = sbr.rel (%p174) target = $region24
    $region23: #{_forward.1} parent=5 // pred_region
      // Predicated region
      $region25: #{_forward.1} parent=23 // pred_check
        %p177 = pneg %p44
      $region26: #{_forward.1} parent=23 // pred_check_branch
        %179 = sbr.rel (%p177) target = $region28
      $region27: #{_forward.1} parent=23 // pred_region
        %s180 = smul.u32 8, %s18
        %s181 = ssub.s32 18, %s180
        %p182 = scmp.lt.s32.totalorder %s181, 8
        %s183 = scalar_select %p182, %s181, 8
        %s184 = smul.u32 4, %s183
        %s185 = smul.u32 %s184, 3
        %p186 = scmp.lt.s32.totalorder %s17, 1
        %s187 = scalar_select %p186, %s17, 1
        %p188 = scmp.lt.s32.totalorder %s180, 17
        %s189 = scalar_select %p188, %s180, 17
        %s190 = smul.addr %s189, 3
        %s191 = smul.addr %s187, 54
        %s192 = sadd.s32 %s190, %s191
        %s193 = smul.addr %s192, 4
        %s194 = scalar_lea.vmem %s0, %s193
        %s195 = smul.u32 8, %s18
        %s196 = ssub.s32 18, %s195
        %p197 = scmp.lt.s32.totalorder %s196, 8
        %s198 = scalar_select %p197, %s196, 8
        %s199 = smul.u32 4, %s198
        %s200 = smul.u32 %s199, 3
      $region28: #{_forward.1} parent=23 // pred_fallthru
        _
      // Predicated region
      $region29: #{_forward.1} parent=23 // pred_check
        %p201 = pneg %p76
      $region30: #{_forward.1} parent=23 // pred_check_branch
        %203 = sbr.rel (%p201) target = $region32
      $region31: #{_forward.1} parent=23 // pred_region
        %s204 = sadd.s32 %s18, 1
        %s205 = smul.u32 %s204, 4
        %s206 = smul.u32 2, %s205
        %p207 = scmp.lt.s32.totalorder %s17, 1
        %s208 = scalar_select %p207, %s17, 1
        %p209 = scmp.lt.s32.totalorder %s206, 17
        %s210 = scalar_select %p209, %s206, 17
        %s211 = smul.addr %s210, 3
        %s212 = smul.addr %s208, 54
        %s213 = sadd.s32 %s211, %s212
        %s214 = smul.addr %s213, 4
        %s215 = scalar_lea.vmem %s1, %s214
        %s216 = sadd.s32 %s18, 1
        %s217 = smul.u32 %s216, 4
        %s218 = smul.u32 2, %s217
      $region32: #{_forward.1} parent=23 // pred_fallthru
        _
    $region24: #{_forward.1} parent=5 // pred_fallthru
      _
    %p219 = scmp.le.s32.totalorder 1, %s10
    %p220 = scmp.lt.s32.totalorder %s10, 5
    %p221 = pnand %p219, %p220
    %p222 = pneg %p221
    // Predicated region
    $region33: #{_forward.1} parent=5 // pred_check
      _
    $region34: #{_forward.1} parent=5 // pred_check_branch
      %224 = sbr.rel (%p221) target = $region36
    $region35: #{_forward.1} parent=5 // pred_region
      %s225 = ssub.s32 %s10, 1
      %s226 = smul.u32 8, %s20
      %s227 = ssub.s32 18, %s226
      %p228 = scmp.lt.s32.totalorder %s227, 8
      %s229 = scalar_select %p228, %s227, 8
      %s230 = smul.u32 4, %s229
      %s231 = smul.u32 %s230, 3
      %p232 = scmp.lt.s32.totalorder %s19, 1
      %s233 = scalar_select %p232, %s19, 1
      %p234 = scmp.lt.s32.totalorder %s226, 17
      %s235 = scalar_select %p234, %s226, 17
      %s236 = smul.addr %s235, 3
      %s237 = smul.addr %s233, 54
      %s238 = sadd.s32 %s236, %s237
      %s239 = smul.addr %s238, 4
      %s240 = scalar_lea.vmem %s0, %s239
      %p241 = pneg %p50
      %p242 = pneg %p47
      %s243 = sadd.s32 %s20, 1
      %s244 = smul.u32 %s243, 4
      %s245 = smul.u32 2, %s244
      %p246 = scmp.lt.s32.totalorder %s19, 1
      %s247 = scalar_select %p246, %s19, 1
      %p248 = scmp.lt.s32.totalorder %s245, 17
      %s249 = scalar_select %p248, %s245, 17
      %s250 = smul.addr %s249, 3
      %s251 = smul.addr %s247, 54
      %s252 = sadd.s32 %s250, %s251
      %s253 = smul.addr %s252, 4
      %s254 = scalar_lea.vmem %s1, %s253
      %p255 = pneg %p82
      %p256 = pneg %p79
      %p257 = pneg %p103
      %p258 = pneg %p100
      %p259 = pneg %p124
      %p260 = pneg %p121
      %p261 = pneg %p152
      %p262 = pneg %p149
      %s263 = smul.u32 8, %s20
      %p264 = scmp.lt.s32.totalorder %s19, 1
      %s265 = scalar_select %p264, %s19, 1
      %p266 = scmp.lt.s32.totalorder %s263, 15
      %s267 = scalar_select %p266, %s263, 15
      %s268 = smul.addr %s267, 2
      %s269 = smul.addr %s265, 32
      %s270 = sadd.s32 %s268, %s269
      %s271 = smul.addr %s270, 8
      %s272 = scalar_lea.vmem %s4, %s271
      %s273 = smul.u32 8, %s20
      %s274 = ssub.s32 18, %s273
      %p275 = scmp.lt.s32.totalorder %s274, 8
      %s276 = scalar_select %p275, %s274, 8
      %s277 = smul.u32 4, %s276
      %s278 = smul.u32 %s277, 3
      %p279 = scmp.lt.s32.totalorder %s19, 1
      %s280 = scalar_select %p279, %s19, 1
      %p281 = scmp.lt.s32.totalorder %s273, 17
      %s282 = scalar_select %p281, %s273, 17
      %s283 = smul.addr %s282, 3
      %s284 = smul.addr %s280, 54
      %s285 = sadd.s32 %s283, %s284
      %s286 = smul.addr %s285, 4
      %s287 = scalar_lea.vmem %s0, %s286
      %s288 = smul.u32 8, %s20
      %s289 = ssub.s32 18, %s288
      %p290 = scmp.lt.s32.totalorder %s289, 8
      %s291 = scalar_select %p290, %s289, 8
      %s292 = smul.u32 4, %s291
      %s293 = smul.u32 %s292, 3
      %s294 = sadd.s32 %s20, 1
      %s295 = smul.u32 %s294, 4
      %s296 = smul.u32 2, %s295
      %p297 = scmp.lt.s32.totalorder %s19, 1
      %s298 = scalar_select %p297, %s19, 1
      %p299 = scmp.lt.s32.totalorder %s296, 17
      %s300 = scalar_select %p299, %s296, 17
      %s301 = smul.addr %s300, 3
      %s302 = smul.addr %s298, 54
      %s303 = sadd.s32 %s301, %s302
      %s304 = smul.addr %s303, 4
      %s305 = scalar_lea.vmem %s1, %s304
      %s306 = sadd.s32 %s20, 1
      %s307 = smul.u32 %s306, 4
      %s308 = smul.u32 2, %s307
      %s309 = smul.u32 8, %s20
      %p310 = scmp.lt.s32.totalorder %s19, 1
      %s311 = scalar_select %p310, %s19, 1
      %p312 = scmp.lt.s32.totalorder %s309, 15
      %s313 = scalar_select %p312, %s309, 15
      %s314 = smul.addr %s313, 2
      %s315 = smul.addr %s311, 32
      %s316 = sadd.s32 %s314, %s315
      %s317 = smul.addr %s316, 8
      %s318 = scalar_lea.vmem %s4, %s317
      %s319 = smul.u32 8, %s20
      %v321 = vld [vmem:[%s3] sm:$0x1]
      %v322 = vld [vmem:[%s287] sm:$0xf]
      %v323 = vld [vmem:[%s287 + $0x4] sm:$0xf]
      %v324 = vld [vmem:[%s287 + $0x8] sm:$0x1]
      %v325 = vld [vmem:[%s2] sm:$0x3]
      %s326 = scalar_lea.vmem %s2, 2
      %v327 = vld [vmem:[%s326] sm:$0x3]
      %v331 = vunpack.c.l.b16 %v322
      %v332 = vunpack.c.l.b16 %v323
      %v333 = vunpack.c.l.b16 %v324
      %v334 = vpack.c.b16 %v332, %v331
      %v335 = vpack.c.b16 %v333, %v333
      %vm336 = vsmask.f32 7424
      %v338 = vshrl.u32 %v334, 16
      %v340 = vshll.u32 %v334, 16
      %v342 = vrot.slane %v340, 1
      %v343 = vor.u32 %v338, %v342
      %v345 = vshll.u32 %v335, 16
      %v347 = vrot.slane %v345, 1
      %v348 = vsel %vm336, %v343, %v347
      %vm349 = vcmask 31744
      %v351 = vsel %vm349, %v348, 0
      %vm353 = vcmask 1041408
      %v355 = vsel %vm353, %v327, 0
      %357 = vmatpush.bf16.msra.mxu0 0
      %358 = vmatpush.bf16.msra.mxu0 0
      %359 = vmatpush.bf16.msra.mxu0 0
      %360 = vmatpush.bf16.msra.mxu0 0
      %361 = vmatpush.bf16.msra.mxu0 0
      %362 = vmatpush.bf16.msra.mxu0 0
      %363 = vmatpush.bf16.msra.mxu0 0
      %364 = vmatpush.bf16.msra.mxu0 %v355
      %365 = vmatmul.bf16.gmra.mxu0 %v351
      %v366 = vpop.f32.mrf.mxu0
      %v367 = vadd.f32 0.0, %v366
      %v368 = vpop.f32.mrf.mxu0
      %v369 = vadd.f32 0.0, %v368
      %370 = vdwg.mxu0
      %v371 = vsel %vm349, %v334, 0
      %v374 = vsel %vm353, %v325, 0
      %376 = vmatpush.bf16.msra.mxu0 0
      %377 = vmatpush.bf16.msra.mxu0 0
      %378 = vmatpush.bf16.msra.mxu0 0
      %379 = vmatpush.bf16.msra.mxu0 0
      %380 = vmatpush.bf16.msra.mxu0 0
      %381 = vmatpush.bf16.msra.mxu0 0
      %382 = vmatpush.bf16.msra.mxu0 0
      %383 = vmatpush.bf16.msra.mxu0 %v374
      %384 = vmatmul.bf16.gmra.mxu0 %v371
      %v385 = vpop.f32.mrf.mxu0
      %v386 = vadd.f32 %v367, %v385
      %v387 = vpop.f32.mrf.mxu0
      %v388 = vadd.f32 %v369, %v387
      %389 = vdwg.mxu0
      %s390 = scalar_lea.vmem %s2, 4
      %v391 = vld [vmem:[%s390] sm:$0x3]
      %vm392 = vcmask 1046528
      %v393 = vrot.slane %v334, 1
      %v394 = vrot.slane %v335, 1
      %v395 = vsel %vm392, %v393, %v394
      %v397 = vsel %vm349, %v395, 0
      %v400 = vsel %vm353, %v391, 0
      %402 = vmatpush.bf16.msra.mxu0 0
      %403 = vmatpush.bf16.msra.mxu0 0
      %404 = vmatpush.bf16.msra.mxu0 0
      %405 = vmatpush.bf16.msra.mxu0 0
      %406 = vmatpush.bf16.msra.mxu0 0
      %407 = vmatpush.bf16.msra.mxu0 0
      %408 = vmatpush.bf16.msra.mxu0 0
      %409 = vmatpush.bf16.msra.mxu0 %v400
      %410 = vmatmul.bf16.gmra.mxu0 %v397
      %v411 = vpop.f32.mrf.mxu0
      %v412 = vadd.f32 0.0, %v411
      %v413 = vpop.f32.mrf.mxu0
      %v414 = vadd.f32 0.0, %v413
      %415 = vdwg.mxu0
      %v416 = vadd.f32 %v386, %v412
      %v417 = vadd.f32 %v388, %v414
      %s418 = scalar_lea.vmem %s287, 12
      %v419 = vld [vmem:[%s418] sm:$0xf]
      %v420 = vld [vmem:[%s418 + $0x4] sm:$0xf]
      %v421 = vld [vmem:[%s418 + $0x8] sm:$0x1]
      %s422 = scalar_lea.vmem %s2, 6
      %v423 = vld [vmem:[%s422] sm:$0x3]
      %v426 = vunpack.c.l.b16 %v419
      %v427 = vunpack.c.l.b16 %v420
      %v428 = vpack.c.b16 %v427, %v426
      %v430 = vsel %vm349, %v428, 0
      %v433 = vsel %vm353, %v423, 0
      %435 = vmatpush.bf16.msra.mxu0 0
      %436 = vmatpush.bf16.msra.mxu0 0
      %437 = vmatpush.bf16.msra.mxu0 0
      %438 = vmatpush.bf16.msra.mxu0 0
      %439 = vmatpush.bf16.msra.mxu0 0
      %440 = vmatpush.bf16.msra.mxu0 0
      %441 = vmatpush.bf16.msra.mxu0 0
      %442 = vmatpush.bf16.msra.mxu0 %v433
      %443 = vmatmul.bf16.gmra.mxu0 %v430
      %v444 = vpop.f32.mrf.mxu0
      %v445 = vadd.f32 0.0, %v444
      %v446 = vpop.f32.mrf.mxu0
      %v447 = vadd.f32 0.0, %v446
      %448 = vdwg.mxu0
      %v449 = vadd.f32 %v416, %v445
      %v450 = vadd.f32 %v417, %v447
      %s451 = scalar_lea.vmem %s2, 8
      %v452 = vld [vmem:[%s451] sm:$0x3]
      %v454 = vunpack.c.l.b16 %v421
      %v455 = vpack.c.b16 %v454, %v454
      %v456 = vshrl.u32 %v428, 16
      %v458 = vshll.u32 %v428, 16
      %v460 = vrot.slane %v458, 1
      %v461 = vor.u32 %v456, %v460
      %v463 = vshll.u32 %v455, 16
      %v465 = vrot.slane %v463, 1
      %v466 = vsel %vm336, %v461, %v465
      %v468 = vsel %vm349, %v466, 0
      %v471 = vsel %vm353, %v452, 0
      %473 = vmatpush.bf16.msra.mxu0 0
      %474 = vmatpush.bf16.msra.mxu0 0
      %475 = vmatpush.bf16.msra.mxu0 0
      %476 = vmatpush.bf16.msra.mxu0 0
      %477 = vmatpush.bf16.msra.mxu0 0
      %478 = vmatpush.bf16.msra.mxu0 0
      %479 = vmatpush.bf16.msra.mxu0 0
      %480 = vmatpush.bf16.msra.mxu0 %v471
      %481 = vmatmul.bf16.gmra.mxu0 %v468
      %v482 = vpop.f32.mrf.mxu0
      %v483 = vadd.f32 0.0, %v482
      %v484 = vpop.f32.mrf.mxu0
      %v485 = vadd.f32 0.0, %v484
      %486 = vdwg.mxu0
      %v487 = vadd.f32 %v449, %v483
      %v488 = vadd.f32 %v450, %v485
      %s489 = scalar_lea.vmem %s2, 10
      %v490 = vld [vmem:[%s489] sm:$0x3]
      %v491 = vrot.slane %v428, 1
      %v492 = vrot.slane %v455, 1
      %v493 = vsel %vm392, %v491, %v492
      %v495 = vsel %vm349, %v493, 0
      %v498 = vsel %vm353, %v490, 0
      %500 = vmatpush.bf16.msra.mxu0 0
      %501 = vmatpush.bf16.msra.mxu0 0
      %502 = vmatpush.bf16.msra.mxu0 0
      %503 = vmatpush.bf16.msra.mxu0 0
      %504 = vmatpush.bf16.msra.mxu0 0
      %505 = vmatpush.bf16.msra.mxu0 0
      %506 = vmatpush.bf16.msra.mxu0 0
      %507 = vmatpush.bf16.msra.mxu0 %v498
      %508 = vmatmul.bf16.gmra.mxu0 %v495
      %v509 = vpop.f32.mrf.mxu0
      %v510 = vadd.f32 0.0, %v509
      %v511 = vpop.f32.mrf.mxu0
      %v512 = vadd.f32 0.0, %v511
      %513 = vdwg.mxu0
      %v514 = vadd.f32 %v487, %v510
      %v515 = vadd.f32 %v488, %v512
      %s516 = scalar_lea.vmem %s287, 24
      %v517 = vld [vmem:[%s516] sm:$0xf]
      %v518 = vld [vmem:[%s516 + $0x4] sm:$0xf]
      %v519 = vld [vmem:[%s516 + $0x8] sm:$0x1]
      %s520 = scalar_lea.vmem %s2, 12
      %v521 = vld [vmem:[%s520] sm:$0x3]
      %v524 = vunpack.c.l.b16 %v517
      %v525 = vunpack.c.l.b16 %v518
      %v526 = vpack.c.b16 %v525, %v524
      %v528 = vsel %vm349, %v526, 0
      %v531 = vsel %vm353, %v521, 0
      %533 = vmatpush.bf16.msra.mxu0 0
      %534 = vmatpush.bf16.msra.mxu0 0
      %535 = vmatpush.bf16.msra.mxu0 0
      %536 = vmatpush.bf16.msra.mxu0 0
      %537 = vmatpush.bf16.msra.mxu0 0
      %538 = vmatpush.bf16.msra.mxu0 0
      %539 = vmatpush.bf16.msra.mxu0 0
      %540 = vmatpush.bf16.msra.mxu0 %v531
      %541 = vmatmul.bf16.gmra.mxu0 %v528
      %v542 = vpop.f32.mrf.mxu0
      %v543 = vadd.f32 0.0, %v542
      %v544 = vpop.f32.mrf.mxu0
      %v545 = vadd.f32 0.0, %v544
      %546 = vdwg.mxu0
      %v547 = vadd.f32 %v514, %v543
      %v548 = vadd.f32 %v515, %v545
      %s549 = scalar_lea.vmem %s2, 14
      %v550 = vld [vmem:[%s549] sm:$0x3]
      %v552 = vunpack.c.l.b16 %v519
      %v553 = vpack.c.b16 %v552, %v552
      %v554 = vshrl.u32 %v526, 16
      %v556 = vshll.u32 %v526, 16
      %v558 = vrot.slane %v556, 1
      %v559 = vor.u32 %v554, %v558
      %v561 = vshll.u32 %v553, 16
      %v563 = vrot.slane %v561, 1
      %v564 = vsel %vm336, %v559, %v563
      %v566 = vsel %vm349, %v564, 0
      %v569 = vsel %vm353, %v550, 0
      %571 = vmatpush.bf16.msra.mxu0 0
      %572 = vmatpush.bf16.msra.mxu0 0
      %573 = vmatpush.bf16.msra.mxu0 0
      %574 = vmatpush.bf16.msra.mxu0 0
      %575 = vmatpush.bf16.msra.mxu0 0
      %576 = vmatpush.bf16.msra.mxu0 0
      %577 = vmatpush.bf16.msra.mxu0 0
      %578 = vmatpush.bf16.msra.mxu0 %v569
      %579 = vmatmul.bf16.gmra.mxu0 %v566
      %v580 = vpop.f32.mrf.mxu0
      %v581 = vadd.f32 0.0, %v580
      %v582 = vpop.f32.mrf.mxu0
      %v583 = vadd.f32 0.0, %v582
      %584 = vdwg.mxu0
      %v585 = vadd.f32 %v547, %v581
      %v586 = vadd.f32 %v548, %v583
      %s587 = scalar_lea.vmem %s2, 16
      %v588 = vld [vmem:[%s587] sm:$0x3]
      %v589 = vrot.slane %v526, 1
      %v590 = vrot.slane %v553, 1
      %v591 = vsel %vm392, %v589, %v590
      %v593 = vsel %vm349, %v591, 0
      %v596 = vsel %vm353, %v588, 0
      %598 = vmatpush.bf16.msra.mxu0 0
      %599 = vmatpush.bf16.msra.mxu0 0
      %600 = vmatpush.bf16.msra.mxu0 0
      %601 = vmatpush.bf16.msra.mxu0 0
      %602 = vmatpush.bf16.msra.mxu0 0
      %603 = vmatpush.bf16.msra.mxu0 0
      %604 = vmatpush.bf16.msra.mxu0 0
      %605 = vmatpush.bf16.msra.mxu0 %v596
      %606 = vmatmul.bf16.gmra.mxu0 %v593
      %v607 = vpop.f32.mrf.mxu0
      %v608 = vadd.f32 0.0, %v607
      %v609 = vpop.f32.mrf.mxu0
      %v610 = vadd.f32 0.0, %v609
      %611 = vdwg.mxu0
      %v612 = vadd.f32 %v585, %v608
      %v613 = vadd.f32 %v586, %v610
      %v615 = vperm.slane %v321, 0
      %v617 = vadd.f32 %v612, %v615
      %v618 = vadd.f32 %v613, %v615
      %v619 = vmax.f32 %v617, 0.0
      %v620 = vmax.f32 %v618, 0.0
      %621 = vst [vmem:[%s318] sm:$0xff] %v619
      %622 = vst [vmem:[%s318 + $0x8] sm:$0xff] %v620
      %v623 = vld [vmem:[%s418] sm:$0xf]
      %v624 = vld [vmem:[%s418 + $0x4] sm:$0xf]
      %v625 = vld [vmem:[%s418 + $0x8] sm:$0x1]
      %v626 = vld [vmem:[%s2] sm:$0x3]
      %v627 = vld [vmem:[%s326] sm:$0x3]
      %v631 = vunpack.c.l.b16 %v623
      %v632 = vunpack.c.l.b16 %v624
      %v633 = vunpack.c.l.b16 %v625
      %v634 = vpack.c.b16 %v632, %v631
      %v635 = vpack.c.b16 %v633, %v633
      %v637 = vshrl.u32 %v634, 16
      %v639 = vshll.u32 %v634, 16
      %v641 = vrot.slane %v639, 1
      %v642 = vor.u32 %v637, %v641
      %v644 = vshll.u32 %v635, 16
      %v646 = vrot.slane %v644, 1
      %v647 = vsel %vm336, %v642, %v646
      %v649 = vsel %vm349, %v647, 0
      %v652 = vsel %vm353, %v627, 0
      %654 = vmatpush.bf16.msra.mxu0 0
      %655 = vmatpush.bf16.msra.mxu0 0
      %656 = vmatpush.bf16.msra.mxu0 0
      %657 = vmatpush.bf16.msra.mxu0 0
      %658 = vmatpush.bf16.msra.mxu0 0
      %659 = vmatpush.bf16.msra.mxu0 0
      %660 = vmatpush.bf16.msra.mxu0 0
      %661 = vmatpush.bf16.msra.mxu0 %v652
      %662 = vmatmul.bf16.gmra.mxu0 %v649
      %v663 = vpop.f32.mrf.mxu0
      %v664 = vadd.f32 0.0, %v663
      %v665 = vpop.f32.mrf.mxu0
      %v666 = vadd.f32 0.0, %v665
      %667 = vdwg.mxu0
      %v668 = vsel %vm349, %v634, 0
      %v671 = vsel %vm353, %v626, 0
      %673 = vmatpush.bf16.msra.mxu0 0
      %674 = vmatpush.bf16.msra.mxu0 0
      %675 = vmatpush.bf16.msra.mxu0 0
      %676 = vmatpush.bf16.msra.mxu0 0
      %677 = vmatpush.bf16.msra.mxu0 0
      %678 = vmatpush.bf16.msra.mxu0 0
      %679 = vmatpush.bf16.msra.mxu0 0
      %680 = vmatpush.bf16.msra.mxu0 %v671
      %681 = vmatmul.bf16.gmra.mxu0 %v668
      %v682 = vpop.f32.mrf.mxu0
      %v683 = vadd.f32 %v664, %v682
      %v684 = vpop.f32.mrf.mxu0
      %v685 = vadd.f32 %v666, %v684
      %686 = vdwg.mxu0
      %v687 = vld [vmem:[%s390] sm:$0x3]
      %v688 = vrot.slane %v634, 1
      %v689 = vrot.slane %v635, 1
      %v690 = vsel %vm392, %v688, %v689
      %v692 = vsel %vm349, %v690, 0
      %v695 = vsel %vm353, %v687, 0
      %697 = vmatpush.bf16.msra.mxu0 0
      %698 = vmatpush.bf16.msra.mxu0 0
      %699 = vmatpush.bf16.msra.mxu0 0
      %700 = vmatpush.bf16.msra.mxu0 0
      %701 = vmatpush.bf16.msra.mxu0 0
      %702 = vmatpush.bf16.msra.mxu0 0
      %703 = vmatpush.bf16.msra.mxu0 0
      %704 = vmatpush.bf16.msra.mxu0 %v695
      %705 = vmatmul.bf16.gmra.mxu0 %v692
      %v706 = vpop.f32.mrf.mxu0
      %v707 = vadd.f32 0.0, %v706
      %v708 = vpop.f32.mrf.mxu0
      %v709 = vadd.f32 0.0, %v708
      %710 = vdwg.mxu0
      %v711 = vadd.f32 %v683, %v707
      %v712 = vadd.f32 %v685, %v709
      %v713 = vld [vmem:[%s516] sm:$0xf]
      %v714 = vld [vmem:[%s516 + $0x4] sm:$0xf]
      %v715 = vld [vmem:[%s516 + $0x8] sm:$0x1]
      %v716 = vld [vmem:[%s422] sm:$0x3]
      %v719 = vunpack.c.l.b16 %v713
      %v720 = vunpack.c.l.b16 %v714
      %v721 = vpack.c.b16 %v720, %v719
      %v723 = vsel %vm349, %v721, 0
      %v726 = vsel %vm353, %v716, 0
      %728 = vmatpush.bf16.msra.mxu0 0
      %729 = vmatpush.bf16.msra.mxu0 0
      %730 = vmatpush.bf16.msra.mxu0 0
      %731 = vmatpush.bf16.msra.mxu0 0
      %732 = vmatpush.bf16.msra.mxu0 0
      %733 = vmatpush.bf16.msra.mxu0 0
      %734 = vmatpush.bf16.msra.mxu0 0
      %735 = vmatpush.bf16.msra.mxu0 %v726
      %736 = vmatmul.bf16.gmra.mxu0 %v723
      %v737 = vpop.f32.mrf.mxu0
      %v738 = vadd.f32 0.0, %v737
      %v739 = vpop.f32.mrf.mxu0
      %v740 = vadd.f32 0.0, %v739
      %741 = vdwg.mxu0
      %v742 = vadd.f32 %v711, %v738
      %v743 = vadd.f32 %v712, %v740
      %v744 = vld [vmem:[%s451] sm:$0x3]
      %v746 = vunpack.c.l.b16 %v715
      %v747 = vpack.c.b16 %v746, %v746
      %v748 = vshrl.u32 %v721, 16
      %v750 = vshll.u32 %v721, 16
      %v752 = vrot.slane %v750, 1
      %v753 = vor.u32 %v748, %v752
      %v755 = vshll.u32 %v747, 16
      %v757 = vrot.slane %v755, 1
      %v758 = vsel %vm336, %v753, %v757
      %v760 = vsel %vm349, %v758, 0
      %v763 = vsel %vm353, %v744, 0
      %765 = vmatpush.bf16.msra.mxu0 0
      %766 = vmatpush.bf16.msra.mxu0 0
      %767 = vmatpush.bf16.msra.mxu0 0
      %768 = vmatpush.bf16.msra.mxu0 0
      %769 = vmatpush.bf16.msra.mxu0 0
      %770 = vmatpush.bf16.msra.mxu0 0
      %771 = vmatpush.bf16.msra.mxu0 0
      %772 = vmatpush.bf16.msra.mxu0 %v763
      %773 = vmatmul.bf16.gmra.mxu0 %v760
      %v774 = vpop.f32.mrf.mxu0
      %v775 = vadd.f32 0.0, %v774
      %v776 = vpop.f32.mrf.mxu0
      %v777 = vadd.f32 0.0, %v776
      %778 = vdwg.mxu0
      %v779 = vadd.f32 %v742, %v775
      %v780 = vadd.f32 %v743, %v777
      %v781 = vld [vmem:[%s489] sm:$0x3]
      %v782 = vrot.slane %v721, 1
      %v783 = vrot.slane %v747, 1
      %v784 = vsel %vm392, %v782, %v783
      %v786 = vsel %vm349, %v784, 0
      %v789 = vsel %vm353, %v781, 0
      %791 = vmatpush.bf16.msra.mxu0 0
      %792 = vmatpush.bf16.msra.mxu0 0
      %793 = vmatpush.bf16.msra.mxu0 0
      %794 = vmatpush.bf16.msra.mxu0 0
      %795 = vmatpush.bf16.msra.mxu0 0
      %796 = vmatpush.bf16.msra.mxu0 0
      %797 = vmatpush.bf16.msra.mxu0 0
      %798 = vmatpush.bf16.msra.mxu0 %v789
      %799 = vmatmul.bf16.gmra.mxu0 %v786
      %v800 = vpop.f32.mrf.mxu0
      %v801 = vadd.f32 0.0, %v800
      %v802 = vpop.f32.mrf.mxu0
      %v803 = vadd.f32 0.0, %v802
      %804 = vdwg.mxu0
      %v805 = vadd.f32 %v779, %v801
      %v806 = vadd.f32 %v780, %v803
      %s807 = scalar_lea.vmem %s287, 36
      %v808 = vld [vmem:[%s807] sm:$0xf]
      %v809 = vld [vmem:[%s807 + $0x4] sm:$0xf]
      %v810 = vld [vmem:[%s807 + $0x8] sm:$0x1]
      %v811 = vld [vmem:[%s520] sm:$0x3]
      %v814 = vunpack.c.l.b16 %v808
      %v815 = vunpack.c.l.b16 %v809
      %v816 = vpack.c.b16 %v815, %v814
      %v818 = vsel %vm349, %v816, 0
      %v821 = vsel %vm353, %v811, 0
      %823 = vmatpush.bf16.msra.mxu0 0
      %824 = vmatpush.bf16.msra.mxu0 0
      %825 = vmatpush.bf16.msra.mxu0 0
      %826 = vmatpush.bf16.msra.mxu0 0
      %827 = vmatpush.bf16.msra.mxu0 0
      %828 = vmatpush.bf16.msra.mxu0 0
      %829 = vmatpush.bf16.msra.mxu0 0
      %830 = vmatpush.bf16.msra.mxu0 %v821
      %831 = vmatmul.bf16.gmra.mxu0 %v818
      %v832 = vpop.f32.mrf.mxu0
      %v833 = vadd.f32 0.0, %v832
      %v834 = vpop.f32.mrf.mxu0
      %v835 = vadd.f32 0.0, %v834
      %836 = vdwg.mxu0
      %v837 = vadd.f32 %v805, %v833
      %v838 = vadd.f32 %v806, %v835
      %v839 = vld [vmem:[%s549] sm:$0x3]
      %v841 = vunpack.c.l.b16 %v810
      %v842 = vpack.c.b16 %v841, %v841
      %v843 = vshrl.u32 %v816, 16
      %v845 = vshll.u32 %v816, 16
      %v847 = vrot.slane %v845, 1
      %v848 = vor.u32 %v843, %v847
      %v850 = vshll.u32 %v842, 16
      %v852 = vrot.slane %v850, 1
      %v853 = vsel %vm336, %v848, %v852
      %v855 = vsel %vm349, %v853, 0
      %v858 = vsel %vm353, %v839, 0
      %860 = vmatpush.bf16.msra.mxu0 0
      %861 = vmatpush.bf16.msra.mxu0 0
      %862 = vmatpush.bf16.msra.mxu0 0
      %863 = vmatpush.bf16.msra.mxu0 0
      %864 = vmatpush.bf16.msra.mxu0 0
      %865 = vmatpush.bf16.msra.mxu0 0
      %866 = vmatpush.bf16.msra.mxu0 0
      %867 = vmatpush.bf16.msra.mxu0 %v858
      %868 = vmatmul.bf16.gmra.mxu0 %v855
      %v869 = vpop.f32.mrf.mxu0
      %v870 = vadd.f32 0.0, %v869
      %v871 = vpop.f32.mrf.mxu0
      %v872 = vadd.f32 0.0, %v871
      %873 = vdwg.mxu0
      %v874 = vadd.f32 %v837, %v870
      %v875 = vadd.f32 %v838, %v872
      %v876 = vld [vmem:[%s587] sm:$0x3]
      %v877 = vrot.slane %v816, 1
      %v878 = vrot.slane %v842, 1
      %v879 = vsel %vm392, %v877, %v878
      %v881 = vsel %vm349, %v879, 0
      %v884 = vsel %vm353, %v876, 0
      %886 = vmatpush.bf16.msra.mxu0 0
      %887 = vmatpush.bf16.msra.mxu0 0
      %888 = vmatpush.bf16.msra.mxu0 0
      %889 = vmatpush.bf16.msra.mxu0 0
      %890 = vmatpush.bf16.msra.mxu0 0
      %891 = vmatpush.bf16.msra.mxu0 0
      %892 = vmatpush.bf16.msra.mxu0 0
      %893 = vmatpush.bf16.msra.mxu0 %v884
      %894 = vmatmul.bf16.gmra.mxu0 %v881
      %v895 = vpop.f32.mrf.mxu0
      %v896 = vadd.f32 0.0, %v895
      %v897 = vpop.f32.mrf.mxu0
      %v898 = vadd.f32 0.0, %v897
      %899 = vdwg.mxu0
      %v900 = vadd.f32 %v874, %v896
      %v901 = vadd.f32 %v875, %v898
      %v902 = vadd.f32 %v900, %v615
      %v903 = vadd.f32 %v901, %v615
      %v904 = vmax.f32 %v902, 0.0
      %v905 = vmax.f32 %v903, 0.0
      %s906 = scalar_lea.vmem %s318, 16
      %907 = vst [vmem:[%s906] sm:$0xff] %v904
      %908 = vst [vmem:[%s906 + $0x8] sm:$0xff] %v905
      %v909 = vld [vmem:[%s516] sm:$0xf]
      %v910 = vld [vmem:[%s516 + $0x4] sm:$0xf]
      %v911 = vld [vmem:[%s516 + $0x8] sm:$0x1]
      %v912 = vld [vmem:[%s2] sm:$0x3]
      %v913 = vld [vmem:[%s326] sm:$0x3]
      %v917 = vunpack.c.l.b16 %v909
      %v918 = vunpack.c.l.b16 %v910
      %v919 = vunpack.c.l.b16 %v911
      %v920 = vpack.c.b16 %v918, %v917
      %v921 = vpack.c.b16 %v919, %v919
      %v923 = vshrl.u32 %v920, 16
      %v925 = vshll.u32 %v920, 16
      %v927 = vrot.slane %v925, 1
      %v928 = vor.u32 %v923, %v927
      %v930 = vshll.u32 %v921, 16
      %v932 = vrot.slane %v930, 1
      %v933 = vsel %vm336, %v928, %v932
      %v935 = vsel %vm349, %v933, 0
      %v938 = vsel %vm353, %v913, 0
      %940 = vmatpush.bf16.msra.mxu0 0
      %941 = vmatpush.bf16.msra.mxu0 0
      %942 = vmatpush.bf16.msra.mxu0 0
      %943 = vmatpush.bf16.msra.mxu0 0
      %944 = vmatpush.bf16.msra.mxu0 0
      %945 = vmatpush.bf16.msra.mxu0 0
      %946 = vmatpush.bf16.msra.mxu0 0
      %947 = vmatpush.bf16.msra.mxu0 %v938
      %948 = vmatmul.bf16.gmra.mxu0 %v935
      %v949 = vpop.f32.mrf.mxu0
      %v950 = vadd.f32 0.0, %v949
      %v951 = vpop.f32.mrf.mxu0
      %v952 = vadd.f32 0.0, %v951
      %953 = vdwg.mxu0
      %v954 = vsel %vm349, %v920, 0
      %v957 = vsel %vm353, %v912, 0
      %959 = vmatpush.bf16.msra.mxu0 0
      %960 = vmatpush.bf16.msra.mxu0 0
      %961 = vmatpush.bf16.msra.mxu0 0
      %962 = vmatpush.bf16.msra.mxu0 0
      %963 = vmatpush.bf16.msra.mxu0 0
      %964 = vmatpush.bf16.msra.mxu0 0
      %965 = vmatpush.bf16.msra.mxu0 0
      %966 = vmatpush.bf16.msra.mxu0 %v957
      %967 = vmatmul.bf16.gmra.mxu0 %v954
      %v968 = vpop.f32.mrf.mxu0
      %v969 = vadd.f32 %v950, %v968
      %v970 = vpop.f32.mrf.mxu0
      %v971 = vadd.f32 %v952, %v970
      %972 = vdwg.mxu0
      %v973 = vld [vmem:[%s390] sm:$0x3]
      %v974 = vrot.slane %v920, 1
      %v975 = vrot.slane %v921, 1
      %v976 = vsel %vm392, %v974, %v975
      %v978 = vsel %vm349, %v976, 0
      %v981 = vsel %vm353, %v973, 0
      %983 = vmatpush.bf16.msra.mxu0 0
      %984 = vmatpush.bf16.msra.mxu0 0
      %985 = vmatpush.bf16.msra.mxu0 0
      %986 = vmatpush.bf16.msra.mxu0 0
      %987 = vmatpush.bf16.msra.mxu0 0
      %988 = vmatpush.bf16.msra.mxu0 0
      %989 = vmatpush.bf16.msra.mxu0 0
      %990 = vmatpush.bf16.msra.mxu0 %v981
      %991 = vmatmul.bf16.gmra.mxu0 %v978
      %v992 = vpop.f32.mrf.mxu0
      %v993 = vadd.f32 0.0, %v992
      %v994 = vpop.f32.mrf.mxu0
      %v995 = vadd.f32 0.0, %v994
      %996 = vdwg.mxu0
      %v997 = vadd.f32 %v969, %v993
      %v998 = vadd.f32 %v971, %v995
      %v999 = vld [vmem:[%s807] sm:$0xf]
      %v1000 = vld [vmem:[%s807 + $0x4] sm:$0xf]
      %v1001 = vld [vmem:[%s807 + $0x8] sm:$0x1]
      %v1002 = vld [vmem:[%s422] sm:$0x3]
      %v1005 = vunpack.c.l.b16 %v999
      %v1006 = vunpack.c.l.b16 %v1000
      %v1007 = vpack.c.b16 %v1006, %v1005
      %v1009 = vsel %vm349, %v1007, 0
      %v1012 = vsel %vm353, %v1002, 0
      %1014 = vmatpush.bf16.msra.mxu0 0
      %1015 = vmatpush.bf16.msra.mxu0 0
      %1016 = vmatpush.bf16.msra.mxu0 0
      %1017 = vmatpush.bf16.msra.mxu0 0
      %1018 = vmatpush.bf16.msra.mxu0 0
      %1019 = vmatpush.bf16.msra.mxu0 0
      %1020 = vmatpush.bf16.msra.mxu0 0
      %1021 = vmatpush.bf16.msra.mxu0 %v1012
      %1022 = vmatmul.bf16.gmra.mxu0 %v1009
      %v1023 = vpop.f32.mrf.mxu0
      %v1024 = vadd.f32 0.0, %v1023
      %v1025 = vpop.f32.mrf.mxu0
      %v1026 = vadd.f32 0.0, %v1025
      %1027 = vdwg.mxu0
      %v1028 = vadd.f32 %v997, %v1024
      %v1029 = vadd.f32 %v998, %v1026
      %v1030 = vld [vmem:[%s451] sm:$0x3]
      %v1032 = vunpack.c.l.b16 %v1001
      %v1033 = vpack.c.b16 %v1032, %v1032
      %v1034 = vshrl.u32 %v1007, 16
      %v1036 = vshll.u32 %v1007, 16
      %v1038 = vrot.slane %v1036, 1
      %v1039 = vor.u32 %v1034, %v1038
      %v1041 = vshll.u32 %v1033, 16
      %v1043 = vrot.slane %v1041, 1
      %v1044 = vsel %vm336, %v1039, %v1043
      %v1046 = vsel %vm349, %v1044, 0
      %v1049 = vsel %vm353, %v1030, 0
      %1051 = vmatpush.bf16.msra.mxu0 0
      %1052 = vmatpush.bf16.msra.mxu0 0
      %1053 = vmatpush.bf16.msra.mxu0 0
      %1054 = vmatpush.bf16.msra.mxu0 0
      %1055 = vmatpush.bf16.msra.mxu0 0
      %1056 = vmatpush.bf16.msra.mxu0 0
      %1057 = vmatpush.bf16.msra.mxu0 0
      %1058 = vmatpush.bf16.msra.mxu0 %v1049
      %1059 = vmatmul.bf16.gmra.mxu0 %v1046
      %v1060 = vpop.f32.mrf.mxu0
      %v1061 = vadd.f32 0.0, %v1060
      %v1062 = vpop.f32.mrf.mxu0
      %v1063 = vadd.f32 0.0, %v1062
      %1064 = vdwg.mxu0
      %v1065 = vadd.f32 %v1028, %v1061
      %v1066 = vadd.f32 %v1029, %v1063
      %v1067 = vld [vmem:[%s489] sm:$0x3]
      %v1068 = vrot.slane %v1007, 1
      %v1069 = vrot.slane %v1033, 1
      %v1070 = vsel %vm392, %v1068, %v1069
      %v1072 = vsel %vm349, %v1070, 0
      %v1075 = vsel %vm353, %v1067, 0
      %1077 = vmatpush.bf16.msra.mxu0 0
      %1078 = vmatpush.bf16.msra.mxu0 0
      %1079 = vmatpush.bf16.msra.mxu0 0
      %1080 = vmatpush.bf16.msra.mxu0 0
      %1081 = vmatpush.bf16.msra.mxu0 0
      %1082 = vmatpush.bf16.msra.mxu0 0
      %1083 = vmatpush.bf16.msra.mxu0 0
      %1084 = vmatpush.bf16.msra.mxu0 %v1075
      %1085 = vmatmul.bf16.gmra.mxu0 %v1072
      %v1086 = vpop.f32.mrf.mxu0
      %v1087 = vadd.f32 0.0, %v1086
      %v1088 = vpop.f32.mrf.mxu0
      %v1089 = vadd.f32 0.0, %v1088
      %1090 = vdwg.mxu0
      %v1091 = vadd.f32 %v1065, %v1087
      %v1092 = vadd.f32 %v1066, %v1089
      %s1093 = scalar_lea.vmem %s287, 48
      %v1094 = vld [vmem:[%s1093] sm:$0xf]
      %v1095 = vld [vmem:[%s1093 + $0x4] sm:$0xf]
      %v1096 = vld [vmem:[%s1093 + $0x8] sm:$0x1]
      %v1097 = vld [vmem:[%s520] sm:$0x3]
      %v1100 = vunpack.c.l.b16 %v1094
      %v1101 = vunpack.c.l.b16 %v1095
      %v1102 = vpack.c.b16 %v1101, %v1100
      %v1104 = vsel %vm349, %v1102, 0
      %v1107 = vsel %vm353, %v1097, 0
      %1109 = vmatpush.bf16.msra.mxu0 0
      %1110 = vmatpush.bf16.msra.mxu0 0
      %1111 = vmatpush.bf16.msra.mxu0 0
      %1112 = vmatpush.bf16.msra.mxu0 0
      %1113 = vmatpush.bf16.msra.mxu0 0
      %1114 = vmatpush.bf16.msra.mxu0 0
      %1115 = vmatpush.bf16.msra.mxu0 0
      %1116 = vmatpush.bf16.msra.mxu0 %v1107
      %1117 = vmatmul.bf16.gmra.mxu0 %v1104
      %v1118 = vpop.f32.mrf.mxu0
      %v1119 = vadd.f32 0.0, %v1118
      %v1120 = vpop.f32.mrf.mxu0
      %v1121 = vadd.f32 0.0, %v1120
      %1122 = vdwg.mxu0
      %v1123 = vadd.f32 %v1091, %v1119
      %v1124 = vadd.f32 %v1092, %v1121
      %v1125 = vld [vmem:[%s549] sm:$0x3]
      %v1127 = vunpack.c.l.b16 %v1096
      %v1128 = vpack.c.b16 %v1127, %v1127
      %v1129 = vshrl.u32 %v1102, 16
      %v1131 = vshll.u32 %v1102, 16
      %v1133 = vrot.slane %v1131, 1
      %v1134 = vor.u32 %v1129, %v1133
      %v1136 = vshll.u32 %v1128, 16
      %v1138 = vrot.slane %v1136, 1
      %v1139 = vsel %vm336, %v1134, %v1138
      %v1141 = vsel %vm349, %v1139, 0
      %v1144 = vsel %vm353, %v1125, 0
      %1146 = vmatpush.bf16.msra.mxu0 0
      %1147 = vmatpush.bf16.msra.mxu0 0
      %1148 = vmatpush.bf16.msra.mxu0 0
      %1149 = vmatpush.bf16.msra.mxu0 0
      %1150 = vmatpush.bf16.msra.mxu0 0
      %1151 = vmatpush.bf16.msra.mxu0 0
      %1152 = vmatpush.bf16.msra.mxu0 0
      %1153 = vmatpush.bf16.msra.mxu0 %v1144
      %1154 = vmatmul.bf16.gmra.mxu0 %v1141
      %v1155 = vpop.f32.mrf.mxu0
      %v1156 = vadd.f32 0.0, %v1155
      %v1157 = vpop.f32.mrf.mxu0
      %v1158 = vadd.f32 0.0, %v1157
      %1159 = vdwg.mxu0
      %v1160 = vadd.f32 %v1123, %v1156
      %v1161 = vadd.f32 %v1124, %v1158
      %v1162 = vld [vmem:[%s587] sm:$0x3]
      %v1163 = vrot.slane %v1102, 1
      %v1164 = vrot.slane %v1128, 1
      %v1165 = vsel %vm392, %v1163, %v1164
      %v1167 = vsel %vm349, %v1165, 0
      %v1170 = vsel %vm353, %v1162, 0
      %1172 = vmatpush.bf16.msra.mxu0 0
      %1173 = vmatpush.bf16.msra.mxu0 0
      %1174 = vmatpush.bf16.msra.mxu0 0
      %1175 = vmatpush.bf16.msra.mxu0 0
      %1176 = vmatpush.bf16.msra.mxu0 0
      %1177 = vmatpush.bf16.msra.mxu0 0
      %1178 = vmatpush.bf16.msra.mxu0 0
      %1179 = vmatpush.bf16.msra.mxu0 %v1170
      %1180 = vmatmul.bf16.gmra.mxu0 %v1167
      %v1181 = vpop.f32.mrf.mxu0
      %v1182 = vadd.f32 0.0, %v1181
      %v1183 = vpop.f32.mrf.mxu0
      %v1184 = vadd.f32 0.0, %v1183
      %1185 = vdwg.mxu0
      %v1186 = vadd.f32 %v1160, %v1182
      %v1187 = vadd.f32 %v1161, %v1184
      %v1188 = vadd.f32 %v1186, %v615
      %v1189 = vadd.f32 %v1187, %v615
      %v1190 = vmax.f32 %v1188, 0.0
      %v1191 = vmax.f32 %v1189, 0.0
      %s1192 = scalar_lea.vmem %s318, 32
      %1193 = vst [vmem:[%s1192] sm:$0xff] %v1190
      %1194 = vst [vmem:[%s1192 + $0x8] sm:$0xff] %v1191
      %v1195 = vld [vmem:[%s807] sm:$0xf]
      %v1196 = vld [vmem:[%s807 + $0x4] sm:$0xf]
      %v1197 = vld [vmem:[%s807 + $0x8] sm:$0x1]
      %v1198 = vld [vmem:[%s2] sm:$0x3]
      %v1199 = vld [vmem:[%s326] sm:$0x3]
      %v1203 = vunpack.c.l.b16 %v1195
      %v1204 = vunpack.c.l.b16 %v1196
      %v1205 = vunpack.c.l.b16 %v1197
      %v1206 = vpack.c.b16 %v1204, %v1203
      %v1207 = vpack.c.b16 %v1205, %v1205
      %v1209 = vshrl.u32 %v1206, 16
      %v1211 = vshll.u32 %v1206, 16
      %v1213 = vrot.slane %v1211, 1
      %v1214 = vor.u32 %v1209, %v1213
      %v1216 = vshll.u32 %v1207, 16
      %v1218 = vrot.slane %v1216, 1
      %v1219 = vsel %vm336, %v1214, %v1218
      %v1221 = vsel %vm349, %v1219, 0
      %v1224 = vsel %vm353, %v1199, 0
      %1226 = vmatpush.bf16.msra.mxu0 0
      %1227 = vmatpush.bf16.msra.mxu0 0
      %1228 = vmatpush.bf16.msra.mxu0 0
      %1229 = vmatpush.bf16.msra.mxu0 0
      %1230 = vmatpush.bf16.msra.mxu0 0
      %1231 = vmatpush.bf16.msra.mxu0 0
      %1232 = vmatpush.bf16.msra.mxu0 0
      %1233 = vmatpush.bf16.msra.mxu0 %v1224
      %1234 = vmatmul.bf16.gmra.mxu0 %v1221
      %v1235 = vpop.f32.mrf.mxu0
      %v1236 = vadd.f32 0.0, %v1235
      %v1237 = vpop.f32.mrf.mxu0
      %v1238 = vadd.f32 0.0, %v1237
      %1239 = vdwg.mxu0
      %v1240 = vsel %vm349, %v1206, 0
      %v1243 = vsel %vm353, %v1198, 0
      %1245 = vmatpush.bf16.msra.mxu0 0
      %1246 = vmatpush.bf16.msra.mxu0 0
      %1247 = vmatpush.bf16.msra.mxu0 0
      %1248 = vmatpush.bf16.msra.mxu0 0
      %1249 = vmatpush.bf16.msra.mxu0 0
      %1250 = vmatpush.bf16.msra.mxu0 0
      %1251 = vmatpush.bf16.msra.mxu0 0
      %1252 = vmatpush.bf16.msra.mxu0 %v1243
      %1253 = vmatmul.bf16.gmra.mxu0 %v1240
      %v1254 = vpop.f32.mrf.mxu0
      %v1255 = vadd.f32 %v1236, %v1254
      %v1256 = vpop.f32.mrf.mxu0
      %v1257 = vadd.f32 %v1238, %v1256
      %1258 = vdwg.mxu0
      %v1259 = vld [vmem:[%s390] sm:$0x3]
      %v1260 = vrot.slane %v1206, 1
      %v1261 = vrot.slane %v1207, 1
      %v1262 = vsel %vm392, %v1260, %v1261
      %v1264 = vsel %vm349, %v1262, 0
      %v1267 = vsel %vm353, %v1259, 0
      %1269 = vmatpush.bf16.msra.mxu0 0
      %1270 = vmatpush.bf16.msra.mxu0 0
      %1271 = vmatpush.bf16.msra.mxu0 0
      %1272 = vmatpush.bf16.msra.mxu0 0
      %1273 = vmatpush.bf16.msra.mxu0 0
      %1274 = vmatpush.bf16.msra.mxu0 0
      %1275 = vmatpush.bf16.msra.mxu0 0
      %1276 = vmatpush.bf16.msra.mxu0 %v1267
      %1277 = vmatmul.bf16.gmra.mxu0 %v1264
      %v1278 = vpop.f32.mrf.mxu0
      %v1279 = vadd.f32 0.0, %v1278
      %v1280 = vpop.f32.mrf.mxu0
      %v1281 = vadd.f32 0.0, %v1280
      %1282 = vdwg.mxu0
      %v1283 = vadd.f32 %v1255, %v1279
      %v1284 = vadd.f32 %v1257, %v1281
      %v1285 = vld [vmem:[%s1093] sm:$0xf]
      %v1286 = vld [vmem:[%s1093 + $0x4] sm:$0xf]
      %v1287 = vld [vmem:[%s1093 + $0x8] sm:$0x1]
      %v1288 = vld [vmem:[%s422] sm:$0x3]
      %v1291 = vunpack.c.l.b16 %v1285
      %v1292 = vunpack.c.l.b16 %v1286
      %v1293 = vpack.c.b16 %v1292, %v1291
      %v1295 = vsel %vm349, %v1293, 0
      %v1298 = vsel %vm353, %v1288, 0
      %1300 = vmatpush.bf16.msra.mxu0 0
      %1301 = vmatpush.bf16.msra.mxu0 0
      %1302 = vmatpush.bf16.msra.mxu0 0
      %1303 = vmatpush.bf16.msra.mxu0 0
      %1304 = vmatpush.bf16.msra.mxu0 0
      %1305 = vmatpush.bf16.msra.mxu0 0
      %1306 = vmatpush.bf16.msra.mxu0 0
      %1307 = vmatpush.bf16.msra.mxu0 %v1298
      %1308 = vmatmul.bf16.gmra.mxu0 %v1295
      %v1309 = vpop.f32.mrf.mxu0
      %v1310 = vadd.f32 0.0, %v1309
      %v1311 = vpop.f32.mrf.mxu0
      %v1312 = vadd.f32 0.0, %v1311
      %1313 = vdwg.mxu0
      %v1314 = vadd.f32 %v1283, %v1310
      %v1315 = vadd.f32 %v1284, %v1312
      %v1316 = vld [vmem:[%s451] sm:$0x3]
      %v1318 = vunpack.c.l.b16 %v1287
      %v1319 = vpack.c.b16 %v1318, %v1318
      %v1320 = vshrl.u32 %v1293, 16
      %v1322 = vshll.u32 %v1293, 16
      %v1324 = vrot.slane %v1322, 1
      %v1325 = vor.u32 %v1320, %v1324
      %v1327 = vshll.u32 %v1319, 16
      %v1329 = vrot.slane %v1327, 1
      %v1330 = vsel %vm336, %v1325, %v1329
      %v1332 = vsel %vm349, %v1330, 0
      %v1335 = vsel %vm353, %v1316, 0
      %1337 = vmatpush.bf16.msra.mxu0 0
      %1338 = vmatpush.bf16.msra.mxu0 0
      %1339 = vmatpush.bf16.msra.mxu0 0
      %1340 = vmatpush.bf16.msra.mxu0 0
      %1341 = vmatpush.bf16.msra.mxu0 0
      %1342 = vmatpush.bf16.msra.mxu0 0
      %1343 = vmatpush.bf16.msra.mxu0 0
      %1344 = vmatpush.bf16.msra.mxu0 %v1335
      %1345 = vmatmul.bf16.gmra.mxu0 %v1332
      %v1346 = vpop.f32.mrf.mxu0
      %v1347 = vadd.f32 0.0, %v1346
      %v1348 = vpop.f32.mrf.mxu0
      %v1349 = vadd.f32 0.0, %v1348
      %1350 = vdwg.mxu0
      %v1351 = vadd.f32 %v1314, %v1347
      %v1352 = vadd.f32 %v1315, %v1349
      %v1353 = vld [vmem:[%s489] sm:$0x3]
      %v1354 = vrot.slane %v1293, 1
      %v1355 = vrot.slane %v1319, 1
      %v1356 = vsel %vm392, %v1354, %v1355
      %v1358 = vsel %vm349, %v1356, 0
      %v1361 = vsel %vm353, %v1353, 0
      %1363 = vmatpush.bf16.msra.mxu0 0
      %1364 = vmatpush.bf16.msra.mxu0 0
      %1365 = vmatpush.bf16.msra.mxu0 0
      %1366 = vmatpush.bf16.msra.mxu0 0
      %1367 = vmatpush.bf16.msra.mxu0 0
      %1368 = vmatpush.bf16.msra.mxu0 0
      %1369 = vmatpush.bf16.msra.mxu0 0
      %1370 = vmatpush.bf16.msra.mxu0 %v1361
      %1371 = vmatmul.bf16.gmra.mxu0 %v1358
      %v1372 = vpop.f32.mrf.mxu0
      %v1373 = vadd.f32 0.0, %v1372
      %v1374 = vpop.f32.mrf.mxu0
      %v1375 = vadd.f32 0.0, %v1374
      %1376 = vdwg.mxu0
      %v1377 = vadd.f32 %v1351, %v1373
      %v1378 = vadd.f32 %v1352, %v1375
      %s1379 = scalar_lea.vmem %s287, 60
      %v1380 = vld [vmem:[%s1379] sm:$0xf]
      %v1381 = vld [vmem:[%s1379 + $0x4] sm:$0xf]
      %v1382 = vld [vmem:[%s1379 + $0x8] sm:$0x1]
      %v1383 = vld [vmem:[%s520] sm:$0x3]
      %v1386 = vunpack.c.l.b16 %v1380
      %v1387 = vunpack.c.l.b16 %v1381
      %v1388 = vpack.c.b16 %v1387, %v1386
      %v1390 = vsel %vm349, %v1388, 0
      %v1393 = vsel %vm353, %v1383, 0
      %1395 = vmatpush.bf16.msra.mxu0 0
      %1396 = vmatpush.bf16.msra.mxu0 0
      %1397 = vmatpush.bf16.msra.mxu0 0
      %1398 = vmatpush.bf16.msra.mxu0 0
      %1399 = vmatpush.bf16.msra.mxu0 0
      %1400 = vmatpush.bf16.msra.mxu0 0
      %1401 = vmatpush.bf16.msra.mxu0 0
      %1402 = vmatpush.bf16.msra.mxu0 %v1393
      %1403 = vmatmul.bf16.gmra.mxu0 %v1390
      %v1404 = vpop.f32.mrf.mxu0
      %v1405 = vadd.f32 0.0, %v1404
      %v1406 = vpop.f32.mrf.mxu0
      %v1407 = vadd.f32 0.0, %v1406
      %1408 = vdwg.mxu0
      %v1409 = vadd.f32 %v1377, %v1405
      %v1410 = vadd.f32 %v1378, %v1407
      %v1411 = vld [vmem:[%s549] sm:$0x3]
      %v1413 = vunpack.c.l.b16 %v1382
      %v1414 = vpack.c.b16 %v1413, %v1413
      %v1415 = vshrl.u32 %v1388, 16
      %v1417 = vshll.u32 %v1388, 16
      %v1419 = vrot.slane %v1417, 1
      %v1420 = vor.u32 %v1415, %v1419
      %v1422 = vshll.u32 %v1414, 16
      %v1424 = vrot.slane %v1422, 1
      %v1425 = vsel %vm336, %v1420, %v1424
      %v1427 = vsel %vm349, %v1425, 0
      %v1430 = vsel %vm353, %v1411, 0
      %1432 = vmatpush.bf16.msra.mxu0 0
      %1433 = vmatpush.bf16.msra.mxu0 0
      %1434 = vmatpush.bf16.msra.mxu0 0
      %1435 = vmatpush.bf16.msra.mxu0 0
      %1436 = vmatpush.bf16.msra.mxu0 0
      %1437 = vmatpush.bf16.msra.mxu0 0
      %1438 = vmatpush.bf16.msra.mxu0 0
      %1439 = vmatpush.bf16.msra.mxu0 %v1430
      %1440 = vmatmul.bf16.gmra.mxu0 %v1427
      %v1441 = vpop.f32.mrf.mxu0
      %v1442 = vadd.f32 0.0, %v1441
      %v1443 = vpop.f32.mrf.mxu0
      %v1444 = vadd.f32 0.0, %v1443
      %1445 = vdwg.mxu0
      %v1446 = vadd.f32 %v1409, %v1442
      %v1447 = vadd.f32 %v1410, %v1444
      %v1448 = vld [vmem:[%s587] sm:$0x3]
      %v1449 = vrot.slane %v1388, 1
      %v1450 = vrot.slane %v1414, 1
      %v1451 = vsel %vm392, %v1449, %v1450
      %v1453 = vsel %vm349, %v1451, 0
      %v1456 = vsel %vm353, %v1448, 0
      %1458 = vmatpush.bf16.msra.mxu0 0
      %1459 = vmatpush.bf16.msra.mxu0 0
      %1460 = vmatpush.bf16.msra.mxu0 0
      %1461 = vmatpush.bf16.msra.mxu0 0
      %1462 = vmatpush.bf16.msra.mxu0 0
      %1463 = vmatpush.bf16.msra.mxu0 0
      %1464 = vmatpush.bf16.msra.mxu0 0
      %1465 = vmatpush.bf16.msra.mxu0 %v1456
      %1466 = vmatmul.bf16.gmra.mxu0 %v1453
      %v1467 = vpop.f32.mrf.mxu0
      %v1468 = vadd.f32 0.0, %v1467
      %v1469 = vpop.f32.mrf.mxu0
      %v1470 = vadd.f32 0.0, %v1469
      %1471 = vdwg.mxu0
      %v1472 = vadd.f32 %v1446, %v1468
      %v1473 = vadd.f32 %v1447, %v1470
      %v1474 = vadd.f32 %v1472, %v615
      %v1475 = vadd.f32 %v1473, %v615
      %v1476 = vmax.f32 %v1474, 0.0
      %v1477 = vmax.f32 %v1475, 0.0
      %s1478 = scalar_lea.vmem %s318, 48
      %1479 = vst [vmem:[%s1478] sm:$0xff] %v1476
      %1480 = vst [vmem:[%s1478 + $0x8] sm:$0xff] %v1477
      %v1481 = vld [vmem:[%s1093] sm:$0xf]
      %v1482 = vld [vmem:[%s1093 + $0x4] sm:$0xf]
      %v1483 = vld [vmem:[%s1093 + $0x8] sm:$0x1]
      %v1484 = vld [vmem:[%s2] sm:$0x3]
      %v1485 = vld [vmem:[%s326] sm:$0x3]
      %v1489 = vunpack.c.l.b16 %v1481
      %v1490 = vunpack.c.l.b16 %v1482
      %v1491 = vunpack.c.l.b16 %v1483
      %v1492 = vpack.c.b16 %v1490, %v1489
      %v1493 = vpack.c.b16 %v1491, %v1491
      %v1495 = vshrl.u32 %v1492, 16
      %v1497 = vshll.u32 %v1492, 16
      %v1499 = vrot.slane %v1497, 1
      %v1500 = vor.u32 %v1495, %v1499
      %v1502 = vshll.u32 %v1493, 16
      %v1504 = vrot.slane %v1502, 1
      %v1505 = vsel %vm336, %v1500, %v1504
      %v1507 = vsel %vm349, %v1505, 0
      %v1510 = vsel %vm353, %v1485, 0
      %1512 = vmatpush.bf16.msra.mxu0 0
      %1513 = vmatpush.bf16.msra.mxu0 0
      %1514 = vmatpush.bf16.msra.mxu0 0
      %1515 = vmatpush.bf16.msra.mxu0 0
      %1516 = vmatpush.bf16.msra.mxu0 0
      %1517 = vmatpush.bf16.msra.mxu0 0
      %1518 = vmatpush.bf16.msra.mxu0 0
      %1519 = vmatpush.bf16.msra.mxu0 %v1510
      %1520 = vmatmul.bf16.gmra.mxu0 %v1507
      %v1521 = vpop.f32.mrf.mxu0
      %v1522 = vadd.f32 0.0, %v1521
      %v1523 = vpop.f32.mrf.mxu0
      %v1524 = vadd.f32 0.0, %v1523
      %1525 = vdwg.mxu0
      %v1526 = vsel %vm349, %v1492, 0
      %v1529 = vsel %vm353, %v1484, 0
      %1531 = vmatpush.bf16.msra.mxu0 0
      %1532 = vmatpush.bf16.msra.mxu0 0
      %1533 = vmatpush.bf16.msra.mxu0 0
      %1534 = vmatpush.bf16.msra.mxu0 0
      %1535 = vmatpush.bf16.msra.mxu0 0
      %1536 = vmatpush.bf16.msra.mxu0 0
      %1537 = vmatpush.bf16.msra.mxu0 0
      %1538 = vmatpush.bf16.msra.mxu0 %v1529
      %1539 = vmatmul.bf16.gmra.mxu0 %v1526
      %v1540 = vpop.f32.mrf.mxu0
      %v1541 = vadd.f32 %v1522, %v1540
      %v1542 = vpop.f32.mrf.mxu0
      %v1543 = vadd.f32 %v1524, %v1542
      %1544 = vdwg.mxu0
      %v1545 = vld [vmem:[%s390] sm:$0x3]
      %v1546 = vrot.slane %v1492, 1
      %v1547 = vrot.slane %v1493, 1
      %v1548 = vsel %vm392, %v1546, %v1547
      %v1550 = vsel %vm349, %v1548, 0
      %v1553 = vsel %vm353, %v1545, 0
      %1555 = vmatpush.bf16.msra.mxu0 0
      %1556 = vmatpush.bf16.msra.mxu0 0
      %1557 = vmatpush.bf16.msra.mxu0 0
      %1558 = vmatpush.bf16.msra.mxu0 0
      %1559 = vmatpush.bf16.msra.mxu0 0
      %1560 = vmatpush.bf16.msra.mxu0 0
      %1561 = vmatpush.bf16.msra.mxu0 0
      %1562 = vmatpush.bf16.msra.mxu0 %v1553
      %1563 = vmatmul.bf16.gmra.mxu0 %v1550
      %v1564 = vpop.f32.mrf.mxu0
      %v1565 = vadd.f32 0.0, %v1564
      %v1566 = vpop.f32.mrf.mxu0
      %v1567 = vadd.f32 0.0, %v1566
      %1568 = vdwg.mxu0
      %v1569 = vadd.f32 %v1541, %v1565
      %v1570 = vadd.f32 %v1543, %v1567
      %v1571 = vld [vmem:[%s1379] sm:$0xf]
      %v1572 = vld [vmem:[%s1379 + $0x4] sm:$0xf]
      %v1573 = vld [vmem:[%s1379 + $0x8] sm:$0x1]
      %v1574 = vld [vmem:[%s422] sm:$0x3]
      %v1577 = vunpack.c.l.b16 %v1571
      %v1578 = vunpack.c.l.b16 %v1572
      %v1579 = vpack.c.b16 %v1578, %v1577
      %v1581 = vsel %vm349, %v1579, 0
      %v1584 = vsel %vm353, %v1574, 0
      %1586 = vmatpush.bf16.msra.mxu0 0
      %1587 = vmatpush.bf16.msra.mxu0 0
      %1588 = vmatpush.bf16.msra.mxu0 0
      %1589 = vmatpush.bf16.msra.mxu0 0
      %1590 = vmatpush.bf16.msra.mxu0 0
      %1591 = vmatpush.bf16.msra.mxu0 0
      %1592 = vmatpush.bf16.msra.mxu0 0
      %1593 = vmatpush.bf16.msra.mxu0 %v1584
      %1594 = vmatmul.bf16.gmra.mxu0 %v1581
      %v1595 = vpop.f32.mrf.mxu0
      %v1596 = vadd.f32 0.0, %v1595
      %v1597 = vpop.f32.mrf.mxu0
      %v1598 = vadd.f32 0.0, %v1597
      %1599 = vdwg.mxu0
      %v1600 = vadd.f32 %v1569, %v1596
      %v1601 = vadd.f32 %v1570, %v1598
      %v1602 = vld [vmem:[%s451] sm:$0x3]
      %v1604 = vunpack.c.l.b16 %v1573
      %v1605 = vpack.c.b16 %v1604, %v1604
      %v1606 = vshrl.u32 %v1579, 16
      %v1608 = vshll.u32 %v1579, 16
      %v1610 = vrot.slane %v1608, 1
      %v1611 = vor.u32 %v1606, %v1610
      %v1613 = vshll.u32 %v1605, 16
      %v1615 = vrot.slane %v1613, 1
      %v1616 = vsel %vm336, %v1611, %v1615
      %v1618 = vsel %vm349, %v1616, 0
      %v1621 = vsel %vm353, %v1602, 0
      %1623 = vmatpush.bf16.msra.mxu0 0
      %1624 = vmatpush.bf16.msra.mxu0 0
      %1625 = vmatpush.bf16.msra.mxu0 0
      %1626 = vmatpush.bf16.msra.mxu0 0
      %1627 = vmatpush.bf16.msra.mxu0 0
      %1628 = vmatpush.bf16.msra.mxu0 0
      %1629 = vmatpush.bf16.msra.mxu0 0
      %1630 = vmatpush.bf16.msra.mxu0 %v1621
      %1631 = vmatmul.bf16.gmra.mxu0 %v1618
      %v1632 = vpop.f32.mrf.mxu0
      %v1633 = vadd.f32 0.0, %v1632
      %v1634 = vpop.f32.mrf.mxu0
      %v1635 = vadd.f32 0.0, %v1634
      %1636 = vdwg.mxu0
      %v1637 = vadd.f32 %v1600, %v1633
      %v1638 = vadd.f32 %v1601, %v1635
      %v1639 = vld [vmem:[%s489] sm:$0x3]
      %v1640 = vrot.slane %v1579, 1
      %v1641 = vrot.slane %v1605, 1
      %v1642 = vsel %vm392, %v1640, %v1641
      %v1644 = vsel %vm349, %v1642, 0
      %v1647 = vsel %vm353, %v1639, 0
      %1649 = vmatpush.bf16.msra.mxu0 0
      %1650 = vmatpush.bf16.msra.mxu0 0
      %1651 = vmatpush.bf16.msra.mxu0 0
      %1652 = vmatpush.bf16.msra.mxu0 0
      %1653 = vmatpush.bf16.msra.mxu0 0
      %1654 = vmatpush.bf16.msra.mxu0 0
      %1655 = vmatpush.bf16.msra.mxu0 0
      %1656 = vmatpush.bf16.msra.mxu0 %v1647
      %1657 = vmatmul.bf16.gmra.mxu0 %v1644
      %v1658 = vpop.f32.mrf.mxu0
      %v1659 = vadd.f32 0.0, %v1658
      %v1660 = vpop.f32.mrf.mxu0
      %v1661 = vadd.f32 0.0, %v1660
      %1662 = vdwg.mxu0
      %v1663 = vadd.f32 %v1637, %v1659
      %v1664 = vadd.f32 %v1638, %v1661
      %s1665 = scalar_lea.vmem %s287, 72
      %v1666 = vld [vmem:[%s1665] sm:$0xf]
      %v1667 = vld [vmem:[%s1665 + $0x4] sm:$0xf]
      %v1668 = vld [vmem:[%s1665 + $0x8] sm:$0x1]
      %v1669 = vld [vmem:[%s520] sm:$0x3]
      %v1672 = vunpack.c.l.b16 %v1666
      %v1673 = vunpack.c.l.b16 %v1667
      %v1674 = vpack.c.b16 %v1673, %v1672
      %v1676 = vsel %vm349, %v1674, 0
      %v1679 = vsel %vm353, %v1669, 0
      %1681 = vmatpush.bf16.msra.mxu0 0
      %1682 = vmatpush.bf16.msra.mxu0 0
      %1683 = vmatpush.bf16.msra.mxu0 0
      %1684 = vmatpush.bf16.msra.mxu0 0
      %1685 = vmatpush.bf16.msra.mxu0 0
      %1686 = vmatpush.bf16.msra.mxu0 0
      %1687 = vmatpush.bf16.msra.mxu0 0
      %1688 = vmatpush.bf16.msra.mxu0 %v1679
      %1689 = vmatmul.bf16.gmra.mxu0 %v1676
      %v1690 = vpop.f32.mrf.mxu0
      %v1691 = vadd.f32 0.0, %v1690
      %v1692 = vpop.f32.mrf.mxu0
      %v1693 = vadd.f32 0.0, %v1692
      %1694 = vdwg.mxu0
      %v1695 = vadd.f32 %v1663, %v1691
      %v1696 = vadd.f32 %v1664, %v1693
      %v1697 = vld [vmem:[%s549] sm:$0x3]
      %v1699 = vunpack.c.l.b16 %v1668
      %v1700 = vpack.c.b16 %v1699, %v1699
      %v1701 = vshrl.u32 %v1674, 16
      %v1703 = vshll.u32 %v1674, 16
      %v1705 = vrot.slane %v1703, 1
      %v1706 = vor.u32 %v1701, %v1705
      %v1708 = vshll.u32 %v1700, 16
      %v1710 = vrot.slane %v1708, 1
      %v1711 = vsel %vm336, %v1706, %v1710
      %v1713 = vsel %vm349, %v1711, 0
      %v1716 = vsel %vm353, %v1697, 0
      %1718 = vmatpush.bf16.msra.mxu0 0
      %1719 = vmatpush.bf16.msra.mxu0 0
      %1720 = vmatpush.bf16.msra.mxu0 0
      %1721 = vmatpush.bf16.msra.mxu0 0
      %1722 = vmatpush.bf16.msra.mxu0 0
      %1723 = vmatpush.bf16.msra.mxu0 0
      %1724 = vmatpush.bf16.msra.mxu0 0
      %1725 = vmatpush.bf16.msra.mxu0 %v1716
      %1726 = vmatmul.bf16.gmra.mxu0 %v1713
      %v1727 = vpop.f32.mrf.mxu0
      %v1728 = vadd.f32 0.0, %v1727
      %v1729 = vpop.f32.mrf.mxu0
      %v1730 = vadd.f32 0.0, %v1729
      %1731 = vdwg.mxu0
      %v1732 = vadd.f32 %v1695, %v1728
      %v1733 = vadd.f32 %v1696, %v1730
      %v1734 = vld [vmem:[%s587] sm:$0x3]
      %v1735 = vrot.slane %v1674, 1
      %v1736 = vrot.slane %v1700, 1
      %v1737 = vsel %vm392, %v1735, %v1736
      %v1739 = vsel %vm349, %v1737, 0
      %v1742 = vsel %vm353, %v1734, 0
      %1744 = vmatpush.bf16.msra.mxu0 0
      %1745 = vmatpush.bf16.msra.mxu0 0
      %1746 = vmatpush.bf16.msra.mxu0 0
      %1747 = vmatpush.bf16.msra.mxu0 0
      %1748 = vmatpush.bf16.msra.mxu0 0
      %1749 = vmatpush.bf16.msra.mxu0 0
      %1750 = vmatpush.bf16.msra.mxu0 0
      %1751 = vmatpush.bf16.msra.mxu0 %v1742
      %1752 = vmatmul.bf16.gmra.mxu0 %v1739
      %v1753 = vpop.f32.mrf.mxu0
      %v1754 = vadd.f32 0.0, %v1753
      %v1755 = vpop.f32.mrf.mxu0
      %v1756 = vadd.f32 0.0, %v1755
      %1757 = vdwg.mxu0
      %v1758 = vadd.f32 %v1732, %v1754
      %v1759 = vadd.f32 %v1733, %v1756
      %v1760 = vadd.f32 %v1758, %v615
      %v1761 = vadd.f32 %v1759, %v615
      %v1762 = vmax.f32 %v1760, 0.0
      %v1763 = vmax.f32 %v1761, 0.0
      %s1764 = scalar_lea.vmem %s318, 64
      %1765 = vst [vmem:[%s1764] sm:$0xff] %v1762
      %1766 = vst [vmem:[%s1764 + $0x8] sm:$0xff] %v1763
      %v1767 = vld [vmem:[%s1379] sm:$0xf]
      %v1768 = vld [vmem:[%s1379 + $0x4] sm:$0xf]
      %v1769 = vld [vmem:[%s1379 + $0x8] sm:$0x1]
      %v1770 = vld [vmem:[%s2] sm:$0x3]
      %v1771 = vld [vmem:[%s326] sm:$0x3]
      %v1775 = vunpack.c.l.b16 %v1767
      %v1776 = vunpack.c.l.b16 %v1768
      %v1777 = vunpack.c.l.b16 %v1769
      %v1778 = vpack.c.b16 %v1776, %v1775
      %v1779 = vpack.c.b16 %v1777, %v1777
      %v1781 = vshrl.u32 %v1778, 16
      %v1783 = vshll.u32 %v1778, 16
      %v1785 = vrot.slane %v1783, 1
      %v1786 = vor.u32 %v1781, %v1785
      %v1788 = vshll.u32 %v1779, 16
      %v1790 = vrot.slane %v1788, 1
      %v1791 = vsel %vm336, %v1786, %v1790
      %v1793 = vsel %vm349, %v1791, 0
      %v1796 = vsel %vm353, %v1771, 0
      %1798 = vmatpush.bf16.msra.mxu0 0
      %1799 = vmatpush.bf16.msra.mxu0 0
      %1800 = vmatpush.bf16.msra.mxu0 0
      %1801 = vmatpush.bf16.msra.mxu0 0
      %1802 = vmatpush.bf16.msra.mxu0 0
      %1803 = vmatpush.bf16.msra.mxu0 0
      %1804 = vmatpush.bf16.msra.mxu0 0
      %1805 = vmatpush.bf16.msra.mxu0 %v1796
      %1806 = vmatmul.bf16.gmra.mxu0 %v1793
      %v1807 = vpop.f32.mrf.mxu0
      %v1808 = vadd.f32 0.0, %v1807
      %v1809 = vpop.f32.mrf.mxu0
      %v1810 = vadd.f32 0.0, %v1809
      %1811 = vdwg.mxu0
      %v1812 = vsel %vm349, %v1778, 0
      %v1815 = vsel %vm353, %v1770, 0
      %1817 = vmatpush.bf16.msra.mxu0 0
      %1818 = vmatpush.bf16.msra.mxu0 0
      %1819 = vmatpush.bf16.msra.mxu0 0
      %1820 = vmatpush.bf16.msra.mxu0 0
      %1821 = vmatpush.bf16.msra.mxu0 0
      %1822 = vmatpush.bf16.msra.mxu0 0
      %1823 = vmatpush.bf16.msra.mxu0 0
      %1824 = vmatpush.bf16.msra.mxu0 %v1815
      %1825 = vmatmul.bf16.gmra.mxu0 %v1812
      %v1826 = vpop.f32.mrf.mxu0
      %v1827 = vadd.f32 %v1808, %v1826
      %v1828 = vpop.f32.mrf.mxu0
      %v1829 = vadd.f32 %v1810, %v1828
      %1830 = vdwg.mxu0
      %v1831 = vld [vmem:[%s390] sm:$0x3]
      %v1832 = vrot.slane %v1778, 1
      %v1833 = vrot.slane %v1779, 1
      %v1834 = vsel %vm392, %v1832, %v1833
      %v1836 = vsel %vm349, %v1834, 0
      %v1839 = vsel %vm353, %v1831, 0
      %1841 = vmatpush.bf16.msra.mxu0 0
      %1842 = vmatpush.bf16.msra.mxu0 0
      %1843 = vmatpush.bf16.msra.mxu0 0
      %1844 = vmatpush.bf16.msra.mxu0 0
      %1845 = vmatpush.bf16.msra.mxu0 0
      %1846 = vmatpush.bf16.msra.mxu0 0
      %1847 = vmatpush.bf16.msra.mxu0 0
      %1848 = vmatpush.bf16.msra.mxu0 %v1839
      %1849 = vmatmul.bf16.gmra.mxu0 %v1836
      %v1850 = vpop.f32.mrf.mxu0
      %v1851 = vadd.f32 0.0, %v1850
      %v1852 = vpop.f32.mrf.mxu0
      %v1853 = vadd.f32 0.0, %v1852
      %1854 = vdwg.mxu0
      %v1855 = vadd.f32 %v1827, %v1851
      %v1856 = vadd.f32 %v1829, %v1853
      %v1857 = vld [vmem:[%s1665] sm:$0xf]
      %v1858 = vld [vmem:[%s1665 + $0x4] sm:$0xf]
      %v1859 = vld [vmem:[%s1665 + $0x8] sm:$0x1]
      %v1860 = vld [vmem:[%s422] sm:$0x3]
      %v1863 = vunpack.c.l.b16 %v1857
      %v1864 = vunpack.c.l.b16 %v1858
      %v1865 = vpack.c.b16 %v1864, %v1863
      %v1867 = vsel %vm349, %v1865, 0
      %v1870 = vsel %vm353, %v1860, 0
      %1872 = vmatpush.bf16.msra.mxu0 0
      %1873 = vmatpush.bf16.msra.mxu0 0
      %1874 = vmatpush.bf16.msra.mxu0 0
      %1875 = vmatpush.bf16.msra.mxu0 0
      %1876 = vmatpush.bf16.msra.mxu0 0
      %1877 = vmatpush.bf16.msra.mxu0 0
      %1878 = vmatpush.bf16.msra.mxu0 0
      %1879 = vmatpush.bf16.msra.mxu0 %v1870
      %1880 = vmatmul.bf16.gmra.mxu0 %v1867
      %v1881 = vpop.f32.mrf.mxu0
      %v1882 = vadd.f32 0.0, %v1881
      %v1883 = vpop.f32.mrf.mxu0
      %v1884 = vadd.f32 0.0, %v1883
      %1885 = vdwg.mxu0
      %v1886 = vadd.f32 %v1855, %v1882
      %v1887 = vadd.f32 %v1856, %v1884
      %v1888 = vld [vmem:[%s451] sm:$0x3]
      %v1890 = vunpack.c.l.b16 %v1859
      %v1891 = vpack.c.b16 %v1890, %v1890
      %v1892 = vshrl.u32 %v1865, 16
      %v1894 = vshll.u32 %v1865, 16
      %v1896 = vrot.slane %v1894, 1
      %v1897 = vor.u32 %v1892, %v1896
      %v1899 = vshll.u32 %v1891, 16
      %v1901 = vrot.slane %v1899, 1
      %v1902 = vsel %vm336, %v1897, %v1901
      %v1904 = vsel %vm349, %v1902, 0
      %v1907 = vsel %vm353, %v1888, 0
      %1909 = vmatpush.bf16.msra.mxu0 0
      %1910 = vmatpush.bf16.msra.mxu0 0
      %1911 = vmatpush.bf16.msra.mxu0 0
      %1912 = vmatpush.bf16.msra.mxu0 0
      %1913 = vmatpush.bf16.msra.mxu0 0
      %1914 = vmatpush.bf16.msra.mxu0 0
      %1915 = vmatpush.bf16.msra.mxu0 0
      %1916 = vmatpush.bf16.msra.mxu0 %v1907
      %1917 = vmatmul.bf16.gmra.mxu0 %v1904
      %v1918 = vpop.f32.mrf.mxu0
      %v1919 = vadd.f32 0.0, %v1918
      %v1920 = vpop.f32.mrf.mxu0
      %v1921 = vadd.f32 0.0, %v1920
      %1922 = vdwg.mxu0
      %v1923 = vadd.f32 %v1886, %v1919
      %v1924 = vadd.f32 %v1887, %v1921
      %v1925 = vld [vmem:[%s489] sm:$0x3]
      %v1926 = vrot.slane %v1865, 1
      %v1927 = vrot.slane %v1891, 1
      %v1928 = vsel %vm392, %v1926, %v1927
      %v1930 = vsel %vm349, %v1928, 0
      %v1933 = vsel %vm353, %v1925, 0
      %1935 = vmatpush.bf16.msra.mxu0 0
      %1936 = vmatpush.bf16.msra.mxu0 0
      %1937 = vmatpush.bf16.msra.mxu0 0
      %1938 = vmatpush.bf16.msra.mxu0 0
      %1939 = vmatpush.bf16.msra.mxu0 0
      %1940 = vmatpush.bf16.msra.mxu0 0
      %1941 = vmatpush.bf16.msra.mxu0 0
      %1942 = vmatpush.bf16.msra.mxu0 %v1933
      %1943 = vmatmul.bf16.gmra.mxu0 %v1930
      %v1944 = vpop.f32.mrf.mxu0
      %v1945 = vadd.f32 0.0, %v1944
      %v1946 = vpop.f32.mrf.mxu0
      %v1947 = vadd.f32 0.0, %v1946
      %1948 = vdwg.mxu0
      %v1949 = vadd.f32 %v1923, %v1945
      %v1950 = vadd.f32 %v1924, %v1947
      %s1951 = scalar_lea.vmem %s287, 84
      %v1952 = vld [vmem:[%s1951] sm:$0xf]
      %v1953 = vld [vmem:[%s1951 + $0x4] sm:$0xf]
      %v1954 = vld [vmem:[%s1951 + $0x8] sm:$0x1]
      %v1955 = vld [vmem:[%s520] sm:$0x3]
      %v1958 = vunpack.c.l.b16 %v1952
      %v1959 = vunpack.c.l.b16 %v1953
      %v1960 = vpack.c.b16 %v1959, %v1958
      %v1962 = vsel %vm349, %v1960, 0
      %v1965 = vsel %vm353, %v1955, 0
      %1967 = vmatpush.bf16.msra.mxu0 0
      %1968 = vmatpush.bf16.msra.mxu0 0
      %1969 = vmatpush.bf16.msra.mxu0 0
      %1970 = vmatpush.bf16.msra.mxu0 0
      %1971 = vmatpush.bf16.msra.mxu0 0
      %1972 = vmatpush.bf16.msra.mxu0 0
      %1973 = vmatpush.bf16.msra.mxu0 0
      %1974 = vmatpush.bf16.msra.mxu0 %v1965
      %1975 = vmatmul.bf16.gmra.mxu0 %v1962
      %v1976 = vpop.f32.mrf.mxu0
      %v1977 = vadd.f32 0.0, %v1976
      %v1978 = vpop.f32.mrf.mxu0
      %v1979 = vadd.f32 0.0, %v1978
      %1980 = vdwg.mxu0
      %v1981 = vadd.f32 %v1949, %v1977
      %v1982 = vadd.f32 %v1950, %v1979
      %v1983 = vld [vmem:[%s549] sm:$0x3]
      %v1985 = vunpack.c.l.b16 %v1954
      %v1986 = vpack.c.b16 %v1985, %v1985
      %v1987 = vshrl.u32 %v1960, 16
      %v1989 = vshll.u32 %v1960, 16
      %v1991 = vrot.slane %v1989, 1
      %v1992 = vor.u32 %v1987, %v1991
      %v1994 = vshll.u32 %v1986, 16
      %v1996 = vrot.slane %v1994, 1
      %v1997 = vsel %vm336, %v1992, %v1996
      %v1999 = vsel %vm349, %v1997, 0
      %v2002 = vsel %vm353, %v1983, 0
      %2004 = vmatpush.bf16.msra.mxu0 0
      %2005 = vmatpush.bf16.msra.mxu0 0
      %2006 = vmatpush.bf16.msra.mxu0 0
      %2007 = vmatpush.bf16.msra.mxu0 0
      %2008 = vmatpush.bf16.msra.mxu0 0
      %2009 = vmatpush.bf16.msra.mxu0 0
      %2010 = vmatpush.bf16.msra.mxu0 0
      %2011 = vmatpush.bf16.msra.mxu0 %v2002
      %2012 = vmatmul.bf16.gmra.mxu0 %v1999
      %v2013 = vpop.f32.mrf.mxu0
      %v2014 = vadd.f32 0.0, %v2013
      %v2015 = vpop.f32.mrf.mxu0
      %v2016 = vadd.f32 0.0, %v2015
      %2017 = vdwg.mxu0
      %v2018 = vadd.f32 %v1981, %v2014
      %v2019 = vadd.f32 %v1982, %v2016
      %v2020 = vld [vmem:[%s587] sm:$0x3]
      %v2021 = vrot.slane %v1960, 1
      %v2022 = vrot.slane %v1986, 1
      %v2023 = vsel %vm392, %v2021, %v2022
      %v2025 = vsel %vm349, %v2023, 0
      %v2028 = vsel %vm353, %v2020, 0
      %2030 = vmatpush.bf16.msra.mxu0 0
      %2031 = vmatpush.bf16.msra.mxu0 0
      %2032 = vmatpush.bf16.msra.mxu0 0
      %2033 = vmatpush.bf16.msra.mxu0 0
      %2034 = vmatpush.bf16.msra.mxu0 0
      %2035 = vmatpush.bf16.msra.mxu0 0
      %2036 = vmatpush.bf16.msra.mxu0 0
      %2037 = vmatpush.bf16.msra.mxu0 %v2028
      %2038 = vmatmul.bf16.gmra.mxu0 %v2025
      %v2039 = vpop.f32.mrf.mxu0
      %v2040 = vadd.f32 0.0, %v2039
      %v2041 = vpop.f32.mrf.mxu0
      %v2042 = vadd.f32 0.0, %v2041
      %2043 = vdwg.mxu0
      %v2044 = vadd.f32 %v2018, %v2040
      %v2045 = vadd.f32 %v2019, %v2042
      %v2046 = vadd.f32 %v2044, %v615
      %v2047 = vadd.f32 %v2045, %v615
      %v2048 = vmax.f32 %v2046, 0.0
      %v2049 = vmax.f32 %v2047, 0.0
      %s2050 = scalar_lea.vmem %s318, 80
      %2051 = vst [vmem:[%s2050] sm:$0xff] %v2048
      %2052 = vst [vmem:[%s2050 + $0x8] sm:$0xff] %v2049
      %v2053 = vld [vmem:[%s1665] sm:$0xf]
      %v2054 = vld [vmem:[%s1665 + $0x4] sm:$0xf]
      %v2055 = vld [vmem:[%s1665 + $0x8] sm:$0x1]
      %v2056 = vld [vmem:[%s2] sm:$0x3]
      %v2057 = vld [vmem:[%s326] sm:$0x3]
      %v2061 = vunpack.c.l.b16 %v2053
      %v2062 = vunpack.c.l.b16 %v2054
      %v2063 = vunpack.c.l.b16 %v2055
      %v2064 = vpack.c.b16 %v2062, %v2061
      %v2065 = vpack.c.b16 %v2063, %v2063
      %v2067 = vshrl.u32 %v2064, 16
      %v2069 = vshll.u32 %v2064, 16
      %v2071 = vrot.slane %v2069, 1
      %v2072 = vor.u32 %v2067, %v2071
      %v2074 = vshll.u32 %v2065, 16
      %v2076 = vrot.slane %v2074, 1
      %v2077 = vsel %vm336, %v2072, %v2076
      %v2079 = vsel %vm349, %v2077, 0
      %v2082 = vsel %vm353, %v2057, 0
      %2084 = vmatpush.bf16.msra.mxu0 0
      %2085 = vmatpush.bf16.msra.mxu0 0
      %2086 = vmatpush.bf16.msra.mxu0 0
      %2087 = vmatpush.bf16.msra.mxu0 0
      %2088 = vmatpush.bf16.msra.mxu0 0
      %2089 = vmatpush.bf16.msra.mxu0 0
      %2090 = vmatpush.bf16.msra.mxu0 0
      %2091 = vmatpush.bf16.msra.mxu0 %v2082
      %2092 = vmatmul.bf16.gmra.mxu0 %v2079
      %v2093 = vpop.f32.mrf.mxu0
      %v2094 = vadd.f32 0.0, %v2093
      %v2095 = vpop.f32.mrf.mxu0
      %v2096 = vadd.f32 0.0, %v2095
      %2097 = vdwg.mxu0
      %v2098 = vsel %vm349, %v2064, 0
      %v2101 = vsel %vm353, %v2056, 0
      %2103 = vmatpush.bf16.msra.mxu0 0
      %2104 = vmatpush.bf16.msra.mxu0 0
      %2105 = vmatpush.bf16.msra.mxu0 0
      %2106 = vmatpush.bf16.msra.mxu0 0
      %2107 = vmatpush.bf16.msra.mxu0 0
      %2108 = vmatpush.bf16.msra.mxu0 0
      %2109 = vmatpush.bf16.msra.mxu0 0
      %2110 = vmatpush.bf16.msra.mxu0 %v2101
      %2111 = vmatmul.bf16.gmra.mxu0 %v2098
      %v2112 = vpop.f32.mrf.mxu0
      %v2113 = vadd.f32 %v2094, %v2112
      %v2114 = vpop.f32.mrf.mxu0
      %v2115 = vadd.f32 %v2096, %v2114
      %2116 = vdwg.mxu0
      %v2117 = vld [vmem:[%s390] sm:$0x3]
      %v2118 = vrot.slane %v2064, 1
      %v2119 = vrot.slane %v2065, 1
      %v2120 = vsel %vm392, %v2118, %v2119
      %v2122 = vsel %vm349, %v2120, 0
      %v2125 = vsel %vm353, %v2117, 0
      %2127 = vmatpush.bf16.msra.mxu0 0
      %2128 = vmatpush.bf16.msra.mxu0 0
      %2129 = vmatpush.bf16.msra.mxu0 0
      %2130 = vmatpush.bf16.msra.mxu0 0
      %2131 = vmatpush.bf16.msra.mxu0 0
      %2132 = vmatpush.bf16.msra.mxu0 0
      %2133 = vmatpush.bf16.msra.mxu0 0
      %2134 = vmatpush.bf16.msra.mxu0 %v2125
      %2135 = vmatmul.bf16.gmra.mxu0 %v2122
      %v2136 = vpop.f32.mrf.mxu0
      %v2137 = vadd.f32 0.0, %v2136
      %v2138 = vpop.f32.mrf.mxu0
      %v2139 = vadd.f32 0.0, %v2138
      %2140 = vdwg.mxu0
      %v2141 = vadd.f32 %v2113, %v2137
      %v2142 = vadd.f32 %v2115, %v2139
      %v2143 = vld [vmem:[%s1951] sm:$0xf]
      %v2144 = vld [vmem:[%s1951 + $0x4] sm:$0xf]
      %v2145 = vld [vmem:[%s1951 + $0x8] sm:$0x1]
      %v2146 = vld [vmem:[%s422] sm:$0x3]
      %v2149 = vunpack.c.l.b16 %v2143
      %v2150 = vunpack.c.l.b16 %v2144
      %v2151 = vpack.c.b16 %v2150, %v2149
      %v2153 = vsel %vm349, %v2151, 0
      %v2156 = vsel %vm353, %v2146, 0
      %2158 = vmatpush.bf16.msra.mxu0 0
      %2159 = vmatpush.bf16.msra.mxu0 0
      %2160 = vmatpush.bf16.msra.mxu0 0
      %2161 = vmatpush.bf16.msra.mxu0 0
      %2162 = vmatpush.bf16.msra.mxu0 0
      %2163 = vmatpush.bf16.msra.mxu0 0
      %2164 = vmatpush.bf16.msra.mxu0 0
      %2165 = vmatpush.bf16.msra.mxu0 %v2156
      %2166 = vmatmul.bf16.gmra.mxu0 %v2153
      %v2167 = vpop.f32.mrf.mxu0
      %v2168 = vadd.f32 0.0, %v2167
      %v2169 = vpop.f32.mrf.mxu0
      %v2170 = vadd.f32 0.0, %v2169
      %2171 = vdwg.mxu0
      %v2172 = vadd.f32 %v2141, %v2168
      %v2173 = vadd.f32 %v2142, %v2170
      %v2174 = vld [vmem:[%s451] sm:$0x3]
      %v2176 = vunpack.c.l.b16 %v2145
      %v2177 = vpack.c.b16 %v2176, %v2176
      %v2178 = vshrl.u32 %v2151, 16
      %v2180 = vshll.u32 %v2151, 16
      %v2182 = vrot.slane %v2180, 1
      %v2183 = vor.u32 %v2178, %v2182
      %v2185 = vshll.u32 %v2177, 16
      %v2187 = vrot.slane %v2185, 1
      %v2188 = vsel %vm336, %v2183, %v2187
      %v2190 = vsel %vm349, %v2188, 0
      %v2193 = vsel %vm353, %v2174, 0
      %2195 = vmatpush.bf16.msra.mxu0 0
      %2196 = vmatpush.bf16.msra.mxu0 0
      %2197 = vmatpush.bf16.msra.mxu0 0
      %2198 = vmatpush.bf16.msra.mxu0 0
      %2199 = vmatpush.bf16.msra.mxu0 0
      %2200 = vmatpush.bf16.msra.mxu0 0
      %2201 = vmatpush.bf16.msra.mxu0 0
      %2202 = vmatpush.bf16.msra.mxu0 %v2193
      %2203 = vmatmul.bf16.gmra.mxu0 %v2190
      %v2204 = vpop.f32.mrf.mxu0
      %v2205 = vadd.f32 0.0, %v2204
      %v2206 = vpop.f32.mrf.mxu0
      %v2207 = vadd.f32 0.0, %v2206
      %2208 = vdwg.mxu0
      %v2209 = vadd.f32 %v2172, %v2205
      %v2210 = vadd.f32 %v2173, %v2207
      %v2211 = vld [vmem:[%s489] sm:$0x3]
      %v2212 = vrot.slane %v2151, 1
      %v2213 = vrot.slane %v2177, 1
      %v2214 = vsel %vm392, %v2212, %v2213
      %v2216 = vsel %vm349, %v2214, 0
      %v2219 = vsel %vm353, %v2211, 0
      %2221 = vmatpush.bf16.msra.mxu0 0
      %2222 = vmatpush.bf16.msra.mxu0 0
      %2223 = vmatpush.bf16.msra.mxu0 0
      %2224 = vmatpush.bf16.msra.mxu0 0
      %2225 = vmatpush.bf16.msra.mxu0 0
      %2226 = vmatpush.bf16.msra.mxu0 0
      %2227 = vmatpush.bf16.msra.mxu0 0
      %2228 = vmatpush.bf16.msra.mxu0 %v2219
      %2229 = vmatmul.bf16.gmra.mxu0 %v2216
      %v2230 = vpop.f32.mrf.mxu0
      %v2231 = vadd.f32 0.0, %v2230
      %v2232 = vpop.f32.mrf.mxu0
      %v2233 = vadd.f32 0.0, %v2232
      %2234 = vdwg.mxu0
      %v2235 = vadd.f32 %v2209, %v2231
      %v2236 = vadd.f32 %v2210, %v2233
      %v2237 = vld [vmem:[%s305] sm:$0xf]
      %v2238 = vld [vmem:[%s305 + $0x4] sm:$0xf]
      %v2239 = vld [vmem:[%s305 + $0x8] sm:$0x1]
      %v2240 = vld [vmem:[%s520] sm:$0x3]
      %v2243 = vunpack.c.l.b16 %v2237
      %v2244 = vunpack.c.l.b16 %v2238
      %v2245 = vpack.c.b16 %v2244, %v2243
      %v2247 = vsel %vm349, %v2245, 0
      %v2250 = vsel %vm353, %v2240, 0
      %2252 = vmatpush.bf16.msra.mxu0 0
      %2253 = vmatpush.bf16.msra.mxu0 0
      %2254 = vmatpush.bf16.msra.mxu0 0
      %2255 = vmatpush.bf16.msra.mxu0 0
      %2256 = vmatpush.bf16.msra.mxu0 0
      %2257 = vmatpush.bf16.msra.mxu0 0
      %2258 = vmatpush.bf16.msra.mxu0 0
      %2259 = vmatpush.bf16.msra.mxu0 %v2250
      %2260 = vmatmul.bf16.gmra.mxu0 %v2247
      %v2261 = vpop.f32.mrf.mxu0
      %v2262 = vadd.f32 0.0, %v2261
      %v2263 = vpop.f32.mrf.mxu0
      %v2264 = vadd.f32 0.0, %v2263
      %2265 = vdwg.mxu0
      %v2266 = vadd.f32 %v2235, %v2262
      %v2267 = vadd.f32 %v2236, %v2264
      %v2268 = vld [vmem:[%s549] sm:$0x3]
      %v2270 = vunpack.c.l.b16 %v2239
      %v2271 = vpack.c.b16 %v2270, %v2270
      %v2272 = vshrl.u32 %v2245, 16
      %v2274 = vshll.u32 %v2245, 16
      %v2276 = vrot.slane %v2274, 1
      %v2277 = vor.u32 %v2272, %v2276
      %v2279 = vshll.u32 %v2271, 16
      %v2281 = vrot.slane %v2279, 1
      %v2282 = vsel %vm336, %v2277, %v2281
      %v2284 = vsel %vm349, %v2282, 0
      %v2287 = vsel %vm353, %v2268, 0
      %2289 = vmatpush.bf16.msra.mxu0 0
      %2290 = vmatpush.bf16.msra.mxu0 0
      %2291 = vmatpush.bf16.msra.mxu0 0
      %2292 = vmatpush.bf16.msra.mxu0 0
      %2293 = vmatpush.bf16.msra.mxu0 0
      %2294 = vmatpush.bf16.msra.mxu0 0
      %2295 = vmatpush.bf16.msra.mxu0 0
      %2296 = vmatpush.bf16.msra.mxu0 %v2287
      %2297 = vmatmul.bf16.gmra.mxu0 %v2284
      %v2298 = vpop.f32.mrf.mxu0
      %v2299 = vadd.f32 0.0, %v2298
      %v2300 = vpop.f32.mrf.mxu0
      %v2301 = vadd.f32 0.0, %v2300
      %2302 = vdwg.mxu0
      %v2303 = vadd.f32 %v2266, %v2299
      %v2304 = vadd.f32 %v2267, %v2301
      %v2305 = vld [vmem:[%s587] sm:$0x3]
      %v2306 = vrot.slane %v2245, 1
      %v2307 = vrot.slane %v2271, 1
      %v2308 = vsel %vm392, %v2306, %v2307
      %v2310 = vsel %vm349, %v2308, 0
      %v2313 = vsel %vm353, %v2305, 0
      %2315 = vmatpush.bf16.msra.mxu0 0
      %2316 = vmatpush.bf16.msra.mxu0 0
      %2317 = vmatpush.bf16.msra.mxu0 0
      %2318 = vmatpush.bf16.msra.mxu0 0
      %2319 = vmatpush.bf16.msra.mxu0 0
      %2320 = vmatpush.bf16.msra.mxu0 0
      %2321 = vmatpush.bf16.msra.mxu0 0
      %2322 = vmatpush.bf16.msra.mxu0 %v2313
      %2323 = vmatmul.bf16.gmra.mxu0 %v2310
      %v2324 = vpop.f32.mrf.mxu0
      %v2325 = vadd.f32 0.0, %v2324
      %v2326 = vpop.f32.mrf.mxu0
      %v2327 = vadd.f32 0.0, %v2326
      %2328 = vdwg.mxu0
      %v2329 = vadd.f32 %v2303, %v2325
      %v2330 = vadd.f32 %v2304, %v2327
      %v2331 = vadd.f32 %v2329, %v615
      %v2332 = vadd.f32 %v2330, %v615
      %v2333 = vmax.f32 %v2331, 0.0
      %v2334 = vmax.f32 %v2332, 0.0
      %s2335 = scalar_lea.vmem %s318, 96
      %2336 = vst [vmem:[%s2335] sm:$0xff] %v2333
      %2337 = vst [vmem:[%s2335 + $0x8] sm:$0xff] %v2334
      %v2338 = vld [vmem:[%s1951] sm:$0xf]
      %v2339 = vld [vmem:[%s1951 + $0x4] sm:$0xf]
      %v2340 = vld [vmem:[%s1951 + $0x8] sm:$0x1]
      %v2341 = vld [vmem:[%s2] sm:$0x3]
      %v2342 = vld [vmem:[%s326] sm:$0x3]
      %v2346 = vunpack.c.l.b16 %v2338
      %v2347 = vunpack.c.l.b16 %v2339
      %v2348 = vunpack.c.l.b16 %v2340
      %v2349 = vpack.c.b16 %v2347, %v2346
      %v2350 = vpack.c.b16 %v2348, %v2348
      %v2352 = vshrl.u32 %v2349, 16
      %v2354 = vshll.u32 %v2349, 16
      %v2356 = vrot.slane %v2354, 1
      %v2357 = vor.u32 %v2352, %v2356
      %v2359 = vshll.u32 %v2350, 16
      %v2361 = vrot.slane %v2359, 1
      %v2362 = vsel %vm336, %v2357, %v2361
      %v2364 = vsel %vm349, %v2362, 0
      %v2367 = vsel %vm353, %v2342, 0
      %2369 = vmatpush.bf16.msra.mxu0 0
      %2370 = vmatpush.bf16.msra.mxu0 0
      %2371 = vmatpush.bf16.msra.mxu0 0
      %2372 = vmatpush.bf16.msra.mxu0 0
      %2373 = vmatpush.bf16.msra.mxu0 0
      %2374 = vmatpush.bf16.msra.mxu0 0
      %2375 = vmatpush.bf16.msra.mxu0 0
      %2376 = vmatpush.bf16.msra.mxu0 %v2367
      %2377 = vmatmul.bf16.gmra.mxu0 %v2364
      %v2378 = vpop.f32.mrf.mxu0
      %v2379 = vadd.f32 0.0, %v2378
      %v2380 = vpop.f32.mrf.mxu0
      %v2381 = vadd.f32 0.0, %v2380
      %2382 = vdwg.mxu0
      %v2383 = vsel %vm349, %v2349, 0
      %v2386 = vsel %vm353, %v2341, 0
      %2388 = vmatpush.bf16.msra.mxu0 0
      %2389 = vmatpush.bf16.msra.mxu0 0
      %2390 = vmatpush.bf16.msra.mxu0 0
      %2391 = vmatpush.bf16.msra.mxu0 0
      %2392 = vmatpush.bf16.msra.mxu0 0
      %2393 = vmatpush.bf16.msra.mxu0 0
      %2394 = vmatpush.bf16.msra.mxu0 0
      %2395 = vmatpush.bf16.msra.mxu0 %v2386
      %2396 = vmatmul.bf16.gmra.mxu0 %v2383
      %v2397 = vpop.f32.mrf.mxu0
      %v2398 = vadd.f32 %v2379, %v2397
      %v2399 = vpop.f32.mrf.mxu0
      %v2400 = vadd.f32 %v2381, %v2399
      %2401 = vdwg.mxu0
      %v2402 = vld [vmem:[%s390] sm:$0x3]
      %v2403 = vrot.slane %v2349, 1
      %v2404 = vrot.slane %v2350, 1
      %v2405 = vsel %vm392, %v2403, %v2404
      %v2407 = vsel %vm349, %v2405, 0
      %v2410 = vsel %vm353, %v2402, 0
      %2412 = vmatpush.bf16.msra.mxu0 0
      %2413 = vmatpush.bf16.msra.mxu0 0
      %2414 = vmatpush.bf16.msra.mxu0 0
      %2415 = vmatpush.bf16.msra.mxu0 0
      %2416 = vmatpush.bf16.msra.mxu0 0
      %2417 = vmatpush.bf16.msra.mxu0 0
      %2418 = vmatpush.bf16.msra.mxu0 0
      %2419 = vmatpush.bf16.msra.mxu0 %v2410
      %2420 = vmatmul.bf16.gmra.mxu0 %v2407
      %v2421 = vpop.f32.mrf.mxu0
      %v2422 = vadd.f32 0.0, %v2421
      %v2423 = vpop.f32.mrf.mxu0
      %v2424 = vadd.f32 0.0, %v2423
      %2425 = vdwg.mxu0
      %v2426 = vadd.f32 %v2398, %v2422
      %v2427 = vadd.f32 %v2400, %v2424
      %v2428 = vld [vmem:[%s305] sm:$0xf]
      %v2429 = vld [vmem:[%s305 + $0x4] sm:$0xf]
      %v2430 = vld [vmem:[%s305 + $0x8] sm:$0x1]
      %v2431 = vld [vmem:[%s422] sm:$0x3]
      %v2434 = vunpack.c.l.b16 %v2428
      %v2435 = vunpack.c.l.b16 %v2429
      %v2436 = vpack.c.b16 %v2435, %v2434
      %v2438 = vsel %vm349, %v2436, 0
      %v2441 = vsel %vm353, %v2431, 0
      %2443 = vmatpush.bf16.msra.mxu0 0
      %2444 = vmatpush.bf16.msra.mxu0 0
      %2445 = vmatpush.bf16.msra.mxu0 0
      %2446 = vmatpush.bf16.msra.mxu0 0
      %2447 = vmatpush.bf16.msra.mxu0 0
      %2448 = vmatpush.bf16.msra.mxu0 0
      %2449 = vmatpush.bf16.msra.mxu0 0
      %2450 = vmatpush.bf16.msra.mxu0 %v2441
      %2451 = vmatmul.bf16.gmra.mxu0 %v2438
      %v2452 = vpop.f32.mrf.mxu0
      %v2453 = vadd.f32 0.0, %v2452
      %v2454 = vpop.f32.mrf.mxu0
      %v2455 = vadd.f32 0.0, %v2454
      %2456 = vdwg.mxu0
      %v2457 = vadd.f32 %v2426, %v2453
      %v2458 = vadd.f32 %v2427, %v2455
      %v2459 = vld [vmem:[%s451] sm:$0x3]
      %v2461 = vunpack.c.l.b16 %v2430
      %v2462 = vpack.c.b16 %v2461, %v2461
      %v2463 = vshrl.u32 %v2436, 16
      %v2465 = vshll.u32 %v2436, 16
      %v2467 = vrot.slane %v2465, 1
      %v2468 = vor.u32 %v2463, %v2467
      %v2470 = vshll.u32 %v2462, 16
      %v2472 = vrot.slane %v2470, 1
      %v2473 = vsel %vm336, %v2468, %v2472
      %v2475 = vsel %vm349, %v2473, 0
      %v2478 = vsel %vm353, %v2459, 0
      %2480 = vmatpush.bf16.msra.mxu0 0
      %2481 = vmatpush.bf16.msra.mxu0 0
      %2482 = vmatpush.bf16.msra.mxu0 0
      %2483 = vmatpush.bf16.msra.mxu0 0
      %2484 = vmatpush.bf16.msra.mxu0 0
      %2485 = vmatpush.bf16.msra.mxu0 0
      %2486 = vmatpush.bf16.msra.mxu0 0
      %2487 = vmatpush.bf16.msra.mxu0 %v2478
      %2488 = vmatmul.bf16.gmra.mxu0 %v2475
      %v2489 = vpop.f32.mrf.mxu0
      %v2490 = vadd.f32 0.0, %v2489
      %v2491 = vpop.f32.mrf.mxu0
      %v2492 = vadd.f32 0.0, %v2491
      %2493 = vdwg.mxu0
      %v2494 = vadd.f32 %v2457, %v2490
      %v2495 = vadd.f32 %v2458, %v2492
      %v2496 = vld [vmem:[%s489] sm:$0x3]
      %v2497 = vrot.slane %v2436, 1
      %v2498 = vrot.slane %v2462, 1
      %v2499 = vsel %vm392, %v2497, %v2498
      %v2501 = vsel %vm349, %v2499, 0
      %v2504 = vsel %vm353, %v2496, 0
      %2506 = vmatpush.bf16.msra.mxu0 0
      %2507 = vmatpush.bf16.msra.mxu0 0
      %2508 = vmatpush.bf16.msra.mxu0 0
      %2509 = vmatpush.bf16.msra.mxu0 0
      %2510 = vmatpush.bf16.msra.mxu0 0
      %2511 = vmatpush.bf16.msra.mxu0 0
      %2512 = vmatpush.bf16.msra.mxu0 0
      %2513 = vmatpush.bf16.msra.mxu0 %v2504
      %2514 = vmatmul.bf16.gmra.mxu0 %v2501
      %v2515 = vpop.f32.mrf.mxu0
      %v2516 = vadd.f32 0.0, %v2515
      %v2517 = vpop.f32.mrf.mxu0
      %v2518 = vadd.f32 0.0, %v2517
      %2519 = vdwg.mxu0
      %v2520 = vadd.f32 %v2494, %v2516
      %v2521 = vadd.f32 %v2495, %v2518
      %s2522 = scalar_lea.vmem %s305, 12
      %v2523 = vld [vmem:[%s2522] sm:$0xf]
      %v2524 = vld [vmem:[%s2522 + $0x4] sm:$0xf]
      %v2525 = vld [vmem:[%s2522 + $0x8] sm:$0x1]
      %v2526 = vld [vmem:[%s520] sm:$0x3]
      %v2529 = vunpack.c.l.b16 %v2523
      %v2530 = vunpack.c.l.b16 %v2524
      %v2531 = vpack.c.b16 %v2530, %v2529
      %v2533 = vsel %vm349, %v2531, 0
      %v2536 = vsel %vm353, %v2526, 0
      %2538 = vmatpush.bf16.msra.mxu0 0
      %2539 = vmatpush.bf16.msra.mxu0 0
      %2540 = vmatpush.bf16.msra.mxu0 0
      %2541 = vmatpush.bf16.msra.mxu0 0
      %2542 = vmatpush.bf16.msra.mxu0 0
      %2543 = vmatpush.bf16.msra.mxu0 0
      %2544 = vmatpush.bf16.msra.mxu0 0
      %2545 = vmatpush.bf16.msra.mxu0 %v2536
      %2546 = vmatmul.bf16.gmra.mxu0 %v2533
      %v2547 = vpop.f32.mrf.mxu0
      %v2548 = vadd.f32 0.0, %v2547
      %v2549 = vpop.f32.mrf.mxu0
      %v2550 = vadd.f32 0.0, %v2549
      %2551 = vdwg.mxu0
      %v2552 = vadd.f32 %v2520, %v2548
      %v2553 = vadd.f32 %v2521, %v2550
      %v2554 = vld [vmem:[%s549] sm:$0x3]
      %v2556 = vunpack.c.l.b16 %v2525
      %v2557 = vpack.c.b16 %v2556, %v2556
      %v2558 = vshrl.u32 %v2531, 16
      %v2560 = vshll.u32 %v2531, 16
      %v2562 = vrot.slane %v2560, 1
      %v2563 = vor.u32 %v2558, %v2562
      %v2565 = vshll.u32 %v2557, 16
      %v2567 = vrot.slane %v2565, 1
      %v2568 = vsel %vm336, %v2563, %v2567
      %v2570 = vsel %vm349, %v2568, 0
      %v2573 = vsel %vm353, %v2554, 0
      %2575 = vmatpush.bf16.msra.mxu0 0
      %2576 = vmatpush.bf16.msra.mxu0 0
      %2577 = vmatpush.bf16.msra.mxu0 0
      %2578 = vmatpush.bf16.msra.mxu0 0
      %2579 = vmatpush.bf16.msra.mxu0 0
      %2580 = vmatpush.bf16.msra.mxu0 0
      %2581 = vmatpush.bf16.msra.mxu0 0
      %2582 = vmatpush.bf16.msra.mxu0 %v2573
      %2583 = vmatmul.bf16.gmra.mxu0 %v2570
      %v2584 = vpop.f32.mrf.mxu0
      %v2585 = vadd.f32 0.0, %v2584
      %v2586 = vpop.f32.mrf.mxu0
      %v2587 = vadd.f32 0.0, %v2586
      %2588 = vdwg.mxu0
      %v2589 = vadd.f32 %v2552, %v2585
      %v2590 = vadd.f32 %v2553, %v2587
      %v2591 = vld [vmem:[%s587] sm:$0x3]
      %v2592 = vrot.slane %v2531, 1
      %v2593 = vrot.slane %v2557, 1
      %v2594 = vsel %vm392, %v2592, %v2593
      %v2596 = vsel %vm349, %v2594, 0
      %v2599 = vsel %vm353, %v2591, 0
      %2601 = vmatpush.bf16.msra.mxu0 0
      %2602 = vmatpush.bf16.msra.mxu0 0
      %2603 = vmatpush.bf16.msra.mxu0 0
      %2604 = vmatpush.bf16.msra.mxu0 0
      %2605 = vmatpush.bf16.msra.mxu0 0
      %2606 = vmatpush.bf16.msra.mxu0 0
      %2607 = vmatpush.bf16.msra.mxu0 0
      %2608 = vmatpush.bf16.msra.mxu0 %v2599
      %2609 = vmatmul.bf16.gmra.mxu0 %v2596
      %v2610 = vpop.f32.mrf.mxu0
      %v2611 = vadd.f32 0.0, %v2610
      %v2612 = vpop.f32.mrf.mxu0
      %v2613 = vadd.f32 0.0, %v2612
      %2614 = vdwg.mxu0
      %v2615 = vadd.f32 %v2589, %v2611
      %v2616 = vadd.f32 %v2590, %v2613
      %v2617 = vadd.f32 %v2615, %v615
      %v2618 = vadd.f32 %v2616, %v615
      %v2619 = vmax.f32 %v2617, 0.0
      %v2620 = vmax.f32 %v2618, 0.0
      %s2621 = scalar_lea.vmem %s318, 112
      %2622 = vst [vmem:[%s2621] sm:$0xff] %v2619
      %2623 = vst [vmem:[%s2621 + $0x8] sm:$0xff] %v2620
      %s2624 = smul.u32 8, %s20
      %p2625 = scmp.lt.s32.totalorder %s19, 1
      %s2626 = scalar_select %p2625, %s19, 1
      %p2627 = scmp.lt.s32.totalorder %s2624, 15
      %s2628 = scalar_select %p2627, %s2624, 15
      %s2629 = smul.addr %s2628, 2
      %s2630 = smul.addr %s2626, 32
      %s2631 = sadd.s32 %s2629, %s2630
      %s2632 = smul.addr %s2631, 8
      %s2633 = scalar_lea.vmem %s4, %s2632
      // Predicated region
      $region37: #{_forward.1} parent=35 // pred_check
        %p2634 = pneg %p149
      $region38: #{_forward.1} parent=35 // pred_check_branch
        %2636 = sbr.rel (%p2634) target = $region40
      $region39: #{_forward.1} parent=35 // pred_region
        %s2637 = smul.u32 8, %s20
      $region40: #{_forward.1} parent=35 // pred_fallthru
        _
    $region36: #{_forward.1} parent=5 // pred_fallthru
      _
    %p2638 = scmp.le.s32.totalorder 2, %s10
    // Predicated region
    $region41: #{_forward.1} parent=5 // pred_check
      %p2639 = pneg %p2638
    $region42: #{_forward.1} parent=5 // pred_check_branch
      %2641 = sbr.rel (%p2639) target = $region44
    $region43: #{_forward.1} parent=5 // pred_region
      %s2642 = ssub.s32 %s10, 2
      // Predicated region
      $region45: #{_forward.1} parent=43 // pred_check
        %p2643 = pneg %p155
      $region46: #{_forward.1} parent=43 // pred_check_branch
        %2645 = sbr.rel (%p2643) target = $region48
      $region47: #{_forward.1} parent=43 // pred_region
        %s2646 = smul.u32 8, %s22
        %p2647 = scmp.lt.s32.totalorder %s21, 1
        %s2648 = scalar_select %p2647, %s21, 1
        %p2649 = scmp.lt.s32.totalorder %s2646, 15
        %s2650 = scalar_select %p2649, %s2646, 15
        %s2651 = smul.addr %s2650, 2
        %s2652 = smul.addr %s2648, 32
        %s2653 = sadd.s32 %s2651, %s2652
        %s2654 = smul.addr %s2653, 8
        %s2655 = scalar_lea.vmem %s4, %s2654
      $region48: #{_forward.1} parent=43 // pred_fallthru
        _
    $region44: #{_forward.1} parent=5 // pred_fallthru
      _
  $region6: #{_forward.1} parent=0 // loop_footer
    %s14 = sadd.s32 1, %s10
  $region7: #{_forward.1} parent=0 // loop_footer_branch
    %9 = sbr.rel target = $region3
  $region8: #{_forward.1} parent=0 // loop_exit
    _

</llo_original>
